<compile_context>
chip_gen: v6e
topology: v6e:2x2x1
jax: 0.10.0
libtpu: 0.0.40
codegen_flags: <defaults>
</compile_context>

<pallas_src>
import numpy as np
import jax
import jax.numpy as jnp
from jax.experimental import pallas as pl
from jax.experimental.pallas import tpu as pltpu

# Model dims — matches ClassicTransformer(n_features=4, length_size=36,
# nhead=2, num_encoder_layers=2, dim_feedforward=64)
N_FEATURES = 4
D_MODEL = 8
NHEAD = 2
HEAD_DIM = D_MODEL // NHEAD
NUM_LAYERS = 2
DIM_FF = 64
LENGTH_SIZE = 36
LN_EPS = 1e-5
ATTN_SCALE = HEAD_DIM ** -0.5

LANES = 128

# ---- packed-parameter blob layout ----------------------------------------------
# Weight blob: (NW, 128, 128) f32, each tile zero-padded, data top-left justified.
# Bias blob:   (NB, L, 128)  f32, each vector pre-broadcast over the L rows.
W_TILES_PER_LAYER = 3 * NHEAD + NHEAD + 2      # q/k/v per head, out-proj per head, w1, w2  = 10
B_TILES_PER_LAYER = 3 * NHEAD + 1 + 4 + 2      # q/k/v biases, out_b, ln1/2 w&b, b1, b2     = 13

W_PROJ = 0
W_LAYER_BASE = 1
W_FC = W_LAYER_BASE + NUM_LAYERS * W_TILES_PER_LAYER     # 21
NW = W_FC + 1                                            # 22

B_PROJ = 0
B_LAYER_BASE = 1
B_FC = B_LAYER_BASE + NUM_LAYERS * B_TILES_PER_LAYER     # 27
NB = B_FC + 1                                            # 28

# per-layer weight-tile offsets
W_QKV = 0          # + 3*head + {0:q, 1:k, 2:v}
W_OUT = 6          # + head
W_FF1 = 8
W_FF2 = 9
# per-layer bias-tile offsets
B_QKV = 0          # + 3*head + {0:q, 1:k, 2:v}
B_OUT = 6
B_LN1W, B_LN1B, B_LN2W, B_LN2B = 7, 8, 9, 10
B_FF1, B_FF2 = 11, 12


def transformer_kernel(x_ref, w_ref, b_ref, out_ref):
    """x_ref: (L, 128)  w_ref: (NW, 128, 128)  b_ref: (NB, L, 128)  out_ref: (L, 128).

    The residual stream h is kept lane-dense: real data in lanes 0..D_MODEL-1,
    exact zeros elsewhere (weight tiles / bias tiles are zero-padded so the
    padding lanes never pick up garbage).  Every matmul is a full (·,128)x(128,128)
    tile op on the MXU; biases/LN params are whole-vreg adds (pre-broadcast).
    """

    def mm(a, b):
        return jnp.dot(a, b, preferred_element_type=jnp.float32)

    def layer_norm(h, w, b):
        # mean/var over the D_MODEL live lanes; padding lanes are exactly zero so
        # sums over 128 lanes equal sums over the 8 real features.
        mu = jnp.sum(h, axis=-1, keepdims=True) * (1.0 / D_MODEL)
        ex2 = jnp.sum(h * h, axis=-1, keepdims=True) * (1.0 / D_MODEL)
        var = ex2 - mu * mu
        # w, b are zero in padding lanes -> padding lanes of the result stay 0.
        return (h - mu) * jax.lax.rsqrt(var + LN_EPS) * w + b

    # input projection: (L,128) @ (128,128) + pre-broadcast bias -> lanes 0..7 live
    h = mm(x_ref[...], w_ref[W_PROJ]) + b_ref[B_PROJ]

    for layer in range(NUM_LAYERS):
        wb = W_LAYER_BASE + layer * W_TILES_PER_LAYER
        bb = B_LAYER_BASE + layer * B_TILES_PER_LAYER

        # ---- multi-head self-attention (per-head padded tiles, no lane slicing) ----
        attn = b_ref[bb + B_OUT]                       # start from out-proj bias
        for hh in range(NHEAD):
            q = mm(h, w_ref[wb + W_QKV + 3 * hh + 0]) + b_ref[bb + B_QKV + 3 * hh + 0]
            k = mm(h, w_ref[wb + W_QKV + 3 * hh + 1]) + b_ref[bb + B_QKV + 3 * hh + 1]
            v = mm(h, w_ref[wb + W_QKV + 3 * hh + 2]) + b_ref[bb + B_QKV + 3 * hh + 2]
            # scores = q @ k.T ; padding lanes of q/k are zero so the 128-lane
            # contraction equals the HEAD_DIM contraction.  Scale is folded into q.
            s = jax.lax.dot_general(q, k, (((1,), (1,)), ((), ())),
                                    preferred_element_type=jnp.float32)   # (L, L)
            m = jnp.max(s, axis=-1, keepdims=True)
            e = jnp.exp(s - m)
            p = e * pl.reciprocal(jnp.sum(e, axis=-1, keepdims=True), approx=True)
            head = mm(p, v)                                                # (L, 128)
            # out-projection applied per head and summed (replaces the concat)
            attn = attn + mm(head, w_ref[wb + W_OUT + hh])

        h = layer_norm(h + attn, b_ref[bb + B_LN1W], b_ref[bb + B_LN1B])

        # ---- feed-forward ----
        ff = mm(jnp.maximum(mm(h, w_ref[wb + W_FF1]) + b_ref[bb + B_FF1], 0.0),
                w_ref[wb + W_FF2]) + b_ref[bb + B_FF2]
        h = layer_norm(h + ff, b_ref[bb + B_LN2W], b_ref[bb + B_LN2B])

    # final fc — lane-dense (36 real output lanes, rest zero)
    out_ref[...] = mm(h, w_ref[W_FC]) + b_ref[B_FC]


def pack_params(params, seq_len):
    """Pack all parameters into two lane-dense f32 blobs (host-side, runs once).

    Weights are pre-transposed to (in, out) layout and zero-padded into
    (128, 128) tiles; biases / LN vectors are pre-broadcast to (seq_len, 128).
    The attention scale is folded into the per-head Q weight/bias tiles.
    """
    wblob = np.zeros((NW, LANES, LANES), np.float32)
    bblob = np.zeros((NB, seq_len, LANES), np.float32)

    def put_w(idx, mat):
        mat = np.asarray(mat, np.float32)
        r, c = mat.shape
        wblob[idx, :r, :c] = mat

    def put_b(idx, vec):
        vec = np.asarray(vec, np.float32)
        bblob[idx, :, :vec.shape[0]] = np.broadcast_to(vec, (seq_len, vec.shape[0]))

    put_w(W_PROJ, np.asarray(params["wproj"]).T)          # (F, D)
    put_b(B_PROJ, params["bproj"])
    put_w(W_FC, np.asarray(params["fc_w"]).T)             # (D, 36)
    put_b(B_FC, params["fc_b"])

    for l in range(NUM_LAYERS):
        wb = W_LAYER_BASE + l * W_TILES_PER_LAYER
        bb = B_LAYER_BASE + l * B_TILES_PER_LAYER
        in_w = np.asarray(params["in_w"][l])               # (3D, D)
        in_b = np.asarray(params["in_b"][l])               # (3D,)
        out_w = np.asarray(params["out_w"][l])             # (D, D)

        for hh in range(NHEAD):
            for j in range(3):                             # 0:q 1:k 2:v
                rows = slice(j * D_MODEL + hh * HEAD_DIM,
                             j * D_MODEL + (hh + 1) * HEAD_DIM)
                w = in_w[rows, :]                          # (HD, D)
                b = in_b[rows]                             # (HD,)
                if j == 0:                                 # fold attention scale into Q
                    w = w * ATTN_SCALE
                    b = b * ATTN_SCALE
                put_w(wb + W_QKV + 3 * hh + j, w.T)        # (D, HD)
                put_b(bb + B_QKV + 3 * hh + j, b)
            # out-proj rows consumed by head hh: (HD, D)
            put_w(wb + W_OUT + hh, out_w[:, hh * HEAD_DIM:(hh + 1) * HEAD_DIM].T)

        put_b(bb + B_OUT, params["out_b"][l])
        put_b(bb + B_LN1W, params["ln1_w"][l])
        put_b(bb + B_LN1B, params["ln1_b"][l])
        put_b(bb + B_LN2W, params["ln2_w"][l])
        put_b(bb + B_LN2B, params["ln2_b"][l])
        put_b(bb + B_FF1, params["b1"][l])
        put_b(bb + B_FF2, params["b2"][l])
        put_w(wb + W_FF1, np.asarray(params["w1"][l]).T)   # (D, FF)
        put_w(wb + W_FF2, np.asarray(params["w2"][l]).T)   # (FF, D)

    return jnp.asarray(wblob), jnp.asarray(bblob)


def classic_transformer_forward(x, packed):
    """x: (L, N, n_features) float32; packed = pack_params(...). Returns (L, length_size)."""
    wblob, bblob = packed
    L, N, F = x.shape
    # Only batch column -1 contributes to torch's fc(x[:, -1, :]); encoder columns
    # are independent, so the rest are skipped entirely.
    x_last = x[:, -1, :]                                    # (L, F)
    x_pad = jnp.pad(x_last, ((0, 0), (0, LANES - F)))       # lane-dense (L, 128)

    out = pl.pallas_call(
        transformer_kernel,
        out_shape=jax.ShapeDtypeStruct((L, LANES), jnp.float32),   # lane-dense store
        in_specs=[pl.BlockSpec(memory_space=pltpu.MemorySpace.VMEM)] * 3,
        out_specs=pl.BlockSpec(memory_space=pltpu.MemorySpace.VMEM),
    )(x_pad, wblob, bblob)
    return out[:, :LENGTH_SIZE]


def init_params(key):
    """Deterministic synthetic parameters in PyTorch (out_features, in_features) layout."""
    def dense(k, out_dim, in_dim, scale=0.1):
        kw, kb = jax.random.split(k)
        w = scale * jax.random.normal(kw, (out_dim, in_dim), jnp.float32)
        b = scale * jax.random.normal(kb, (out_dim,), jnp.float32)
        return w, b

    keys = jax.random.split(key, 2 + 4 * NUM_LAYERS)
    p = {"in_w": [], "in_b": [], "out_w": [], "out_b": [],
         "w1": [], "b1": [], "w2": [], "b2": [],
         "ln1_w": [], "ln1_b": [], "ln2_w": [], "ln2_b": []}
    p["wproj"], p["bproj"] = dense(keys[0], D_MODEL, N_FEATURES)
    p["fc_w"], p["fc_b"] = dense(keys[1], LENGTH_SIZE, D_MODEL)
    for l in range(NUM_LAYERS):
        kq, ko, k1, k2 = keys[2 + 4 * l: 2 + 4 * (l + 1)]
        iw, ib = dense(kq, 3 * D_MODEL, D_MODEL)
        ow, ob = dense(ko, D_MODEL, D_MODEL)
        w1, b1 = dense(k1, DIM_FF, D_MODEL)
        w2, b2 = dense(k2, D_MODEL, DIM_FF)
        p["in_w"].append(iw); p["in_b"].append(ib)
        p["out_w"].append(ow); p["out_b"].append(ob)
        p["w1"].append(w1); p["b1"].append(b1)
        p["w2"].append(w2); p["b2"].append(b2)
        p["ln1_w"].append(jnp.ones((D_MODEL,), jnp.float32))
        p["ln1_b"].append(jnp.zeros((D_MODEL,), jnp.float32))
        p["ln2_w"].append(jnp.ones((D_MODEL,), jnp.float32))
        p["ln2_b"].append(jnp.zeros((D_MODEL,), jnp.float32))
    return p


def reference_forward(x, params):
    """Plain-JAX reference mirroring PyTorch TransformerEncoder (eval mode)."""
    L, N, F = x.shape

    def layer_norm(h, w, b):
        mu = jnp.mean(h, axis=-1, keepdims=True)
        var = jnp.mean((h - mu) ** 2, axis=-1, keepdims=True)
        return (h - mu) * jax.lax.rsqrt(var + LN_EPS) * w + b

    h = x @ params["wproj"].T + params["bproj"]                          # (L, N, D)
    for l in range(NUM_LAYERS):
        qkv = h @ params["in_w"][l].T + params["in_b"][l]                # (L, N, 3D)
        q, k, v = jnp.split(qkv, 3, axis=-1)
        sh = lambda t: t.reshape(L, N, NHEAD, HEAD_DIM)
        qh, kh, vh = sh(q) * ATTN_SCALE, sh(k), sh(v)
        s = jnp.einsum("lnhd,mnhd->nhlm", qh, kh)
        p = jax.nn.softmax(s, axis=-1)
        o = jnp.einsum("nhlm,mnhd->lnhd", p, vh).reshape(L, N, D_MODEL)
        o = o @ params["out_w"][l].T + params["out_b"][l]
        h = layer_norm(h + o, params["ln1_w"][l], params["ln1_b"][l])
        ff = jax.nn.relu(h @ params["w1"][l].T + params["b1"][l]) @ params["w2"][l].T \
             + params["b2"][l]
        h = layer_norm(h + ff, params["ln2_w"][l], params["ln2_b"][l])
    return h[:, -1, :] @ params["fc_w"].T + params["fc_b"]               # (L, OUT)


if __name__ == "__main__":
    key = jax.random.PRNGKey(0)
    kx, kp = jax.random.split(key)

    L, N = 8, 2                                  # (seq, batch) in PyTorch convention
    x = jax.random.normal(kx, (L, N, N_FEATURES), jnp.float32)
    params = init_params(kp)

    # Pack parameters ONCE (host-side) — reused for every forward call.
    packed = pack_params(params, seq_len=L)
    fwd = jax.jit(classic_transformer_forward)

    out = jax.block_until_ready(fwd(x, packed))

    ref = reference_forward(x, params)
    assert out.shape == (L, LENGTH_SIZE), out.shape
    # Tolerance relaxed slightly vs 1e-4 to accommodate pl.reciprocal(approx=True)
    # in the softmax denominator (EUP approximation); any real bug is >> 1e-3.
    max_err = float(jnp.max(jnp.abs(out - ref)))
    assert jnp.allclose(out, ref, atol=1e-3, rtol=1e-3), max_err

    print("KERNEL_OK")
</pallas_src>

<mosaic_0001>
module attributes {stable_mosaic.version = 11 : i64} {
  func.func @transformer_kernel(%arg0: memref<8x128xf32, #tpu.memory_space<vmem>>, %arg1: memref<22x128x128xf32, #tpu.memory_space<vmem>>, %arg2: memref<28x8x128xf32, #tpu.memory_space<vmem>>, %arg3: memref<8x128xf32, #tpu.memory_space<vmem>>) attributes {dimension_semantics = [], scalar_prefetch = 0 : i64, scratch_operands = 0 : i64, tpu.core_type = #tpu.core_type<tc>} {
    %c0 = arith.constant 0 : index
    %c0_0 = arith.constant 0 : index
    %0 = vector.load %arg0[%c0, %c0_0] : memref<8x128xf32, #tpu.memory_space<vmem>>, vector<8x128xf32>
    %c0_1 = arith.constant 0 : index
    %c0_2 = arith.constant 0 : index
    %c0_3 = arith.constant 0 : index
    %1 = vector.load %arg1[%c0_1, %c0_2, %c0_3] : memref<22x128x128xf32, #tpu.memory_space<vmem>>, vector<1x128x128xf32>
    %2 = vector.shape_cast %1 : vector<1x128x128xf32> to vector<128x128xf32>
    %cst = arith.constant dense<0.000000e+00> : vector<8x128xf32>
    %3 = tpu.matmul %0, %2, %cst {dimension_numbers = #tpu.dot_dimension_numbers<[1], [0], [0], [1], [0, 0, 1, 1], [], []>} : vector<8x128xf32>, vector<128x128xf32>, vector<8x128xf32> -> vector<8x128xf32>
    %c0_4 = arith.constant 0 : index
    %c0_5 = arith.constant 0 : index
    %c0_6 = arith.constant 0 : index
    %4 = vector.load %arg2[%c0_4, %c0_5, %c0_6] : memref<28x8x128xf32, #tpu.memory_space<vmem>>, vector<1x8x128xf32>
    %5 = vector.shape_cast %4 : vector<1x8x128xf32> to vector<8x128xf32>
    %6 = arith.addf %3, %5 : vector<8x128xf32>
    %c7 = arith.constant 7 : index
    %c0_7 = arith.constant 0 : index
    %c0_8 = arith.constant 0 : index
    %7 = vector.load %arg2[%c7, %c0_7, %c0_8] : memref<28x8x128xf32, #tpu.memory_space<vmem>>, vector<1x8x128xf32>
    %8 = vector.shape_cast %7 : vector<1x8x128xf32> to vector<8x128xf32>
    %c1 = arith.constant 1 : index
    %c0_9 = arith.constant 0 : index
    %c0_10 = arith.constant 0 : index
    %9 = vector.load %arg1[%c1, %c0_9, %c0_10] : memref<22x128x128xf32, #tpu.memory_space<vmem>>, vector<1x128x128xf32>
    %10 = vector.shape_cast %9 : vector<1x128x128xf32> to vector<128x128xf32>
    %cst_11 = arith.constant dense<0.000000e+00> : vector<8x128xf32>
    %11 = tpu.matmul %6, %10, %cst_11 {dimension_numbers = #tpu.dot_dimension_numbers<[1], [0], [0], [1], [0, 0, 1, 1], [], []>} : vector<8x128xf32>, vector<128x128xf32>, vector<8x128xf32> -> vector<8x128xf32>
    %c1_12 = arith.constant 1 : index
    %c0_13 = arith.constant 0 : index
    %c0_14 = arith.constant 0 : index
    %12 = vector.load %arg2[%c1_12, %c0_13, %c0_14] : memref<28x8x128xf32, #tpu.memory_space<vmem>>, vector<1x8x128xf32>
    %13 = vector.shape_cast %12 : vector<1x8x128xf32> to vector<8x128xf32>
    %14 = arith.addf %11, %13 : vector<8x128xf32>
    %c2 = arith.constant 2 : index
    %c0_15 = arith.constant 0 : index
    %c0_16 = arith.constant 0 : index
    %15 = vector.load %arg1[%c2, %c0_15, %c0_16] : memref<22x128x128xf32, #tpu.memory_space<vmem>>, vector<1x128x128xf32>
    %16 = vector.shape_cast %15 : vector<1x128x128xf32> to vector<128x128xf32>
    %cst_17 = arith.constant dense<0.000000e+00> : vector<8x128xf32>
    %17 = tpu.matmul %6, %16, %cst_17 {dimension_numbers = #tpu.dot_dimension_numbers<[1], [0], [0], [1], [0, 0, 1, 1], [], []>} : vector<8x128xf32>, vector<128x128xf32>, vector<8x128xf32> -> vector<8x128xf32>
    %c2_18 = arith.constant 2 : index
    %c0_19 = arith.constant 0 : index
    %c0_20 = arith.constant 0 : index
    %18 = vector.load %arg2[%c2_18, %c0_19, %c0_20] : memref<28x8x128xf32, #tpu.memory_space<vmem>>, vector<1x8x128xf32>
    %19 = vector.shape_cast %18 : vector<1x8x128xf32> to vector<8x128xf32>
    %20 = arith.addf %17, %19 : vector<8x128xf32>
    %c3 = arith.constant 3 : index
    %c0_21 = arith.constant 0 : index
    %c0_22 = arith.constant 0 : index
    %21 = vector.load %arg1[%c3, %c0_21, %c0_22] : memref<22x128x128xf32, #tpu.memory_space<vmem>>, vector<1x128x128xf32>
    %22 = vector.shape_cast %21 : vector<1x128x128xf32> to vector<128x128xf32>
    %cst_23 = arith.constant dense<0.000000e+00> : vector<8x128xf32>
    %23 = tpu.matmul %6, %22, %cst_23 {dimension_numbers = #tpu.dot_dimension_numbers<[1], [0], [0], [1], [0, 0, 1, 1], [], []>} : vector<8x128xf32>, vector<128x128xf32>, vector<8x128xf32> -> vector<8x128xf32>
    %c3_24 = arith.constant 3 : index
    %c0_25 = arith.constant 0 : index
    %c0_26 = arith.constant 0 : index
    %24 = vector.load %arg2[%c3_24, %c0_25, %c0_26] : memref<28x8x128xf32, #tpu.memory_space<vmem>>, vector<1x8x128xf32>
    %25 = vector.shape_cast %24 : vector<1x8x128xf32> to vector<8x128xf32>
    %26 = arith.addf %23, %25 : vector<8x128xf32>
    %cst_27 = arith.constant dense<0.000000e+00> : vector<8x8xf32>
    %27 = tpu.matmul %14, %20, %cst_27 {dimension_numbers = #tpu.dot_dimension_numbers<[1], [1], [0], [0], [0, 0, 1, 0], [], []>} : vector<8x128xf32>, vector<8x128xf32>, vector<8x8xf32> -> vector<8x8xf32>
    %cst_28 = arith.constant dense<0xFF800000> : vector<8xf32>
    %28 = vector.multi_reduction <maximumf>, %27, %cst_28 [1] : vector<8x8xf32> to vector<8xf32>
    %29 = vector.shape_cast %28 : vector<8xf32> to vector<8x1xf32>
    %30 = vector.broadcast %29 : vector<8x1xf32> to vector<8x8xf32>
    %31 = arith.subf %27, %30 : vector<8x8xf32>
    %32 = math.exp %31 : vector<8x8xf32>
    %cst_29 = arith.constant dense<0.000000e+00> : vector<8xf32>
    %33 = vector.multi_reduction <add>, %32, %cst_29 [1] : vector<8x8xf32> to vector<8xf32>
    %34 = vector.shape_cast %33 : vector<8xf32> to vector<8x1xf32>
    %35 = tpu.reciprocal %34 {approx = true} : vector<8x1xf32> -> vector<8x1xf32>
    %36 = vector.broadcast %35 : vector<8x1xf32> to vector<8x8xf32>
    %37 = arith.mulf %32, %36 : vector<8x8xf32>
    %cst_30 = arith.constant dense<0.000000e+00> : vector<8x128xf32>
    %38 = tpu.matmul %37, %26, %cst_30 {dimension_numbers = #tpu.dot_dimension_numbers<[1], [0], [0], [1], [0, 0, 1, 1], [], []>} : vector<8x8xf32>, vector<8x128xf32>, vector<8x128xf32> -> vector<8x128xf32>
    %c7_31 = arith.constant 7 : index
    %c0_32 = arith.constant 0 : index
    %c0_33 = arith.constant 0 : index
    %39 = vector.load %arg1[%c7_31, %c0_32, %c0_33] : memref<22x128x128xf32, #tpu.memory_space<vmem>>, vector<1x128x128xf32>
    %40 = vector.shape_cast %39 : vector<1x128x128xf32> to vector<128x128xf32>
    %cst_34 = arith.constant dense<0.000000e+00> : vector<8x128xf32>
    %41 = tpu.matmul %38, %40, %cst_34 {dimension_numbers = #tpu.dot_dimension_numbers<[1], [0], [0], [1], [0, 0, 1, 1], [], []>} : vector<8x128xf32>, vector<128x128xf32>, vector<8x128xf32> -> vector<8x128xf32>
    %42 = arith.addf %8, %41 : vector<8x128xf32>
    %c4 = arith.constant 4 : index
    %c0_35 = arith.constant 0 : index
    %c0_36 = arith.constant 0 : index
    %43 = vector.load %arg1[%c4, %c0_35, %c0_36] : memref<22x128x128xf32, #tpu.memory_space<vmem>>, vector<1x128x128xf32>
    %44 = vector.shape_cast %43 : vector<1x128x128xf32> to vector<128x128xf32>
    %cst_37 = arith.constant dense<0.000000e+00> : vector<8x128xf32>
    %45 = tpu.matmul %6, %44, %cst_37 {dimension_numbers = #tpu.dot_dimension_numbers<[1], [0], [0], [1], [0, 0, 1, 1], [], []>} : vector<8x128xf32>, vector<128x128xf32>, vector<8x128xf32> -> vector<8x128xf32>
    %c4_38 = arith.constant 4 : index
    %c0_39 = arith.constant 0 : index
    %c0_40 = arith.constant 0 : index
    %46 = vector.load %arg2[%c4_38, %c0_39, %c0_40] : memref<28x8x128xf32, #tpu.memory_space<vmem>>, vector<1x8x128xf32>
    %47 = vector.shape_cast %46 : vector<1x8x128xf32> to vector<8x128xf32>
    %48 = arith.addf %45, %47 : vector<8x128xf32>
    %c5 = arith.constant 5 : index
    %c0_41 = arith.constant 0 : index
    %c0_42 = arith.constant 0 : index
    %49 = vector.load %arg1[%c5, %c0_41, %c0_42] : memref<22x128x128xf32, #tpu.memory_space<vmem>>, vector<1x128x128xf32>
    %50 = vector.shape_cast %49 : vector<1x128x128xf32> to vector<128x128xf32>
    %cst_43 = arith.constant dense<0.000000e+00> : vector<8x128xf32>
    %51 = tpu.matmul %6, %50, %cst_43 {dimension_numbers = #tpu.dot_dimension_numbers<[1], [0], [0], [1], [0, 0, 1, 1], [], []>} : vector<8x128xf32>, vector<128x128xf32>, vector<8x128xf32> -> vector<8x128xf32>
    %c5_44 = arith.constant 5 : index
    %c0_45 = arith.constant 0 : index
    %c0_46 = arith.constant 0 : index
    %52 = vector.load %arg2[%c5_44, %c0_45, %c0_46] : memref<28x8x128xf32, #tpu.memory_space<vmem>>, vector<1x8x128xf32>
    %53 = vector.shape_cast %52 : vector<1x8x128xf32> to vector<8x128xf32>
    %54 = arith.addf %51, %53 : vector<8x128xf32>
    %c6 = arith.constant 6 : index
    %c0_47 = arith.constant 0 : index
    %c0_48 = arith.constant 0 : index
    %55 = vector.load %arg1[%c6, %c0_47, %c0_48] : memref<22x128x128xf32, #tpu.memory_space<vmem>>, vector<1x128x128xf32>
    %56 = vector.shape_cast %55 : vector<1x128x128xf32> to vector<128x128xf32>
    %cst_49 = arith.constant dense<0.000000e+00> : vector<8x128xf32>
    %57 = tpu.matmul %6, %56, %cst_49 {dimension_numbers = #tpu.dot_dimension_numbers<[1], [0], [0], [1], [0, 0, 1, 1], [], []>} : vector<8x128xf32>, vector<128x128xf32>, vector<8x128xf32> -> vector<8x128xf32>
    %c6_50 = arith.constant 6 : index
    %c0_51 = arith.constant 0 : index
    %c0_52 = arith.constant 0 : index
    %58 = vector.load %arg2[%c6_50, %c0_51, %c0_52] : memref<28x8x128xf32, #tpu.memory_space<vmem>>, vector<1x8x128xf32>
    %59 = vector.shape_cast %58 : vector<1x8x128xf32> to vector<8x128xf32>
    %60 = arith.addf %57, %59 : vector<8x128xf32>
    %cst_53 = arith.constant dense<0.000000e+00> : vector<8x8xf32>
    %61 = tpu.matmul %48, %54, %cst_53 {dimension_numbers = #tpu.dot_dimension_numbers<[1], [1], [0], [0], [0, 0, 1, 0], [], []>} : vector<8x128xf32>, vector<8x128xf32>, vector<8x8xf32> -> vector<8x8xf32>
    %cst_54 = arith.constant dense<0xFF800000> : vector<8xf32>
    %62 = vector.multi_reduction <maximumf>, %61, %cst_54 [1] : vector<8x8xf32> to vector<8xf32>
    %63 = vector.shape_cast %62 : vector<8xf32> to vector<8x1xf32>
    %64 = vector.broadcast %63 : vector<8x1xf32> to vector<8x8xf32>
    %65 = arith.subf %61, %64 : vector<8x8xf32>
    %66 = math.exp %65 : vector<8x8xf32>
    %cst_55 = arith.constant dense<0.000000e+00> : vector<8xf32>
    %67 = vector.multi_reduction <add>, %66, %cst_55 [1] : vector<8x8xf32> to vector<8xf32>
    %68 = vector.shape_cast %67 : vector<8xf32> to vector<8x1xf32>
    %69 = tpu.reciprocal %68 {approx = true} : vector<8x1xf32> -> vector<8x1xf32>
    %70 = vector.broadcast %69 : vector<8x1xf32> to vector<8x8xf32>
    %71 = arith.mulf %66, %70 : vector<8x8xf32>
    %cst_56 = arith.constant dense<0.000000e+00> : vector<8x128xf32>
    %72 = tpu.matmul %71, %60, %cst_56 {dimension_numbers = #tpu.dot_dimension_numbers<[1], [0], [0], [1], [0, 0, 1, 1], [], []>} : vector<8x8xf32>, vector<8x128xf32>, vector<8x128xf32> -> vector<8x128xf32>
    %c8 = arith.constant 8 : index
    %c0_57 = arith.constant 0 : index
    %c0_58 = arith.constant 0 : index
    %73 = vector.load %arg1[%c8, %c0_57, %c0_58] : memref<22x128x128xf32, #tpu.memory_space<vmem>>, vector<1x128x128xf32>
    %74 = vector.shape_cast %73 : vector<1x128x128xf32> to vector<128x128xf32>
    %cst_59 = arith.constant dense<0.000000e+00> : vector<8x128xf32>
    %75 = tpu.matmul %72, %74, %cst_59 {dimension_numbers = #tpu.dot_dimension_numbers<[1], [0], [0], [1], [0, 0, 1, 1], [], []>} : vector<8x128xf32>, vector<128x128xf32>, vector<8x128xf32> -> vector<8x128xf32>
    %76 = arith.addf %42, %75 : vector<8x128xf32>
    %77 = arith.addf %6, %76 : vector<8x128xf32>
    %c8_60 = arith.constant 8 : index
    %c0_61 = arith.constant 0 : index
    %c0_62 = arith.constant 0 : index
    %78 = vector.load %arg2[%c8_60, %c0_61, %c0_62] : memref<28x8x128xf32, #tpu.memory_space<vmem>>, vector<1x8x128xf32>
    %79 = vector.shape_cast %78 : vector<1x8x128xf32> to vector<8x128xf32>
    %c9 = arith.constant 9 : index
    %c0_63 = arith.constant 0 : index
    %c0_64 = arith.constant 0 : index
    %80 = vector.load %arg2[%c9, %c0_63, %c0_64] : memref<28x8x128xf32, #tpu.memory_space<vmem>>, vector<1x8x128xf32>
    %81 = vector.shape_cast %80 : vector<1x8x128xf32> to vector<8x128xf32>
    %cst_65 = arith.constant dense<0.000000e+00> : vector<8xf32>
    %82 = vector.multi_reduction <add>, %77, %cst_65 [1] : vector<8x128xf32> to vector<8xf32>
    %83 = vector.shape_cast %82 : vector<8xf32> to vector<8x1xf32>
    %cst_66 = arith.constant 1.250000e-01 : f32
    %84 = vector.broadcast %cst_66 : f32 to vector<8x1xf32>
    %85 = arith.mulf %83, %84 : vector<8x1xf32>
    %86 = arith.mulf %77, %77 : vector<8x128xf32>
    %cst_67 = arith.constant dense<0.000000e+00> : vector<8xf32>
    %87 = vector.multi_reduction <add>, %86, %cst_67 [1] : vector<8x128xf32> to vector<8xf32>
    %88 = vector.shape_cast %87 : vector<8xf32> to vector<8x1xf32>
    %cst_68 = arith.constant 1.250000e-01 : f32
    %89 = vector.broadcast %cst_68 : f32 to vector<8x1xf32>
    %90 = arith.mulf %88, %89 : vector<8x1xf32>
    %91 = arith.mulf %85, %85 : vector<8x1xf32>
    %92 = arith.subf %90, %91 : vector<8x1xf32>
    %93 = vector.broadcast %85 : vector<8x1xf32> to vector<8x128xf32>
    %94 = arith.subf %77, %93 : vector<8x128xf32>
    %cst_69 = arith.constant 9.99999974E-6 : f32
    %95 = vector.broadcast %cst_69 : f32 to vector<8x1xf32>
    %96 = arith.addf %92, %95 : vector<8x1xf32>
    %97 = math.rsqrt %96 : vector<8x1xf32>
    %98 = vector.broadcast %97 : vector<8x1xf32> to vector<8x128xf32>
    %99 = arith.mulf %94, %98 : vector<8x128xf32>
    %100 = arith.mulf %99, %79 : vector<8x128xf32>
    %101 = arith.addf %100, %81 : vector<8x128xf32>
    %c9_70 = arith.constant 9 : index
    %c0_71 = arith.constant 0 : index
    %c0_72 = arith.constant 0 : index
    %102 = vector.load %arg1[%c9_70, %c0_71, %c0_72] : memref<22x128x128xf32, #tpu.memory_space<vmem>>, vector<1x128x128xf32>
    %103 = vector.shape_cast %102 : vector<1x128x128xf32> to vector<128x128xf32>
    %cst_73 = arith.constant dense<0.000000e+00> : vector<8x128xf32>
    %104 = tpu.matmul %101, %103, %cst_73 {dimension_numbers = #tpu.dot_dimension_numbers<[1], [0], [0], [1], [0, 0, 1, 1], [], []>} : vector<8x128xf32>, vector<128x128xf32>, vector<8x128xf32> -> vector<8x128xf32>
    %c12 = arith.constant 12 : index
    %c0_74 = arith.constant 0 : index
    %c0_75 = arith.constant 0 : index
    %105 = vector.load %arg2[%c12, %c0_74, %c0_75] : memref<28x8x128xf32, #tpu.memory_space<vmem>>, vector<1x8x128xf32>
    %106 = vector.shape_cast %105 : vector<1x8x128xf32> to vector<8x128xf32>
    %107 = arith.addf %104, %106 : vector<8x128xf32>
    %cst_76 = arith.constant 0.000000e+00 : f32
    %108 = vector.broadcast %cst_76 : f32 to vector<8x128xf32>
    %109 = arith.maximumf %107, %108 : vector<8x128xf32>
    %c10 = arith.constant 10 : index
    %c0_77 = arith.constant 0 : index
    %c0_78 = arith.constant 0 : index
    %110 = vector.load %arg1[%c10, %c0_77, %c0_78] : memref<22x128x128xf32, #tpu.memory_space<vmem>>, vector<1x128x128xf32>
    %111 = vector.shape_cast %110 : vector<1x128x128xf32> to vector<128x128xf32>
    %cst_79 = arith.constant dense<0.000000e+00> : vector<8x128xf32>
    %112 = tpu.matmul %109, %111, %cst_79 {dimension_numbers = #tpu.dot_dimension_numbers<[1], [0], [0], [1], [0, 0, 1, 1], [], []>} : vector<8x128xf32>, vector<128x128xf32>, vector<8x128xf32> -> vector<8x128xf32>
    %c13 = arith.constant 13 : index
    %c0_80 = arith.constant 0 : index
    %c0_81 = arith.constant 0 : index
    %113 = vector.load %arg2[%c13, %c0_80, %c0_81] : memref<28x8x128xf32, #tpu.memory_space<vmem>>, vector<1x8x128xf32>
    %114 = vector.shape_cast %113 : vector<1x8x128xf32> to vector<8x128xf32>
    %115 = arith.addf %112, %114 : vector<8x128xf32>
    %116 = arith.addf %101, %115 : vector<8x128xf32>
    %c10_82 = arith.constant 10 : index
    %c0_83 = arith.constant 0 : index
    %c0_84 = arith.constant 0 : index
    %117 = vector.load %arg2[%c10_82, %c0_83, %c0_84] : memref<28x8x128xf32, #tpu.memory_space<vmem>>, vector<1x8x128xf32>
    %118 = vector.shape_cast %117 : vector<1x8x128xf32> to vector<8x128xf32>
    %c11 = arith.constant 11 : index
    %c0_85 = arith.constant 0 : index
    %c0_86 = arith.constant 0 : index
    %119 = vector.load %arg2[%c11, %c0_85, %c0_86] : memref<28x8x128xf32, #tpu.memory_space<vmem>>, vector<1x8x128xf32>
    %120 = vector.shape_cast %119 : vector<1x8x128xf32> to vector<8x128xf32>
    %cst_87 = arith.constant dense<0.000000e+00> : vector<8xf32>
    %121 = vector.multi_reduction <add>, %116, %cst_87 [1] : vector<8x128xf32> to vector<8xf32>
    %122 = vector.shape_cast %121 : vector<8xf32> to vector<8x1xf32>
    %cst_88 = arith.constant 1.250000e-01 : f32
    %123 = vector.broadcast %cst_88 : f32 to vector<8x1xf32>
    %124 = arith.mulf %122, %123 : vector<8x1xf32>
    %125 = arith.mulf %116, %116 : vector<8x128xf32>
    %cst_89 = arith.constant dense<0.000000e+00> : vector<8xf32>
    %126 = vector.multi_reduction <add>, %125, %cst_89 [1] : vector<8x128xf32> to vector<8xf32>
    %127 = vector.shape_cast %126 : vector<8xf32> to vector<8x1xf32>
    %cst_90 = arith.constant 1.250000e-01 : f32
    %128 = vector.broadcast %cst_90 : f32 to vector<8x1xf32>
    %129 = arith.mulf %127, %128 : vector<8x1xf32>
    %130 = arith.mulf %124, %124 : vector<8x1xf32>
    %131 = arith.subf %129, %130 : vector<8x1xf32>
    %132 = vector.broadcast %124 : vector<8x1xf32> to vector<8x128xf32>
    %133 = arith.subf %116, %132 : vector<8x128xf32>
    %cst_91 = arith.constant 9.99999974E-6 : f32
    %134 = vector.broadcast %cst_91 : f32 to vector<8x1xf32>
    %135 = arith.addf %131, %134 : vector<8x1xf32>
    %136 = math.rsqrt %135 : vector<8x1xf32>
    %137 = vector.broadcast %136 : vector<8x1xf32> to vector<8x128xf32>
    %138 = arith.mulf %133, %137 : vector<8x128xf32>
    %139 = arith.mulf %138, %118 : vector<8x128xf32>
    %140 = arith.addf %139, %120 : vector<8x128xf32>
    %c20 = arith.constant 20 : index
    %c0_92 = arith.constant 0 : index
    %c0_93 = arith.constant 0 : index
    %141 = vector.load %arg2[%c20, %c0_92, %c0_93] : memref<28x8x128xf32, #tpu.memory_space<vmem>>, vector<1x8x128xf32>
    %142 = vector.shape_cast %141 : vector<1x8x128xf32> to vector<8x128xf32>
    %c11_94 = arith.constant 11 : index
    %c0_95 = arith.constant 0 : index
    %c0_96 = arith.constant 0 : index
    %143 = vector.load %arg1[%c11_94, %c0_95, %c0_96] : memref<22x128x128xf32, #tpu.memory_space<vmem>>, vector<1x128x128xf32>
    %144 = vector.shape_cast %143 : vector<1x128x128xf32> to vector<128x128xf32>
    %cst_97 = arith.constant dense<0.000000e+00> : vector<8x128xf32>
    %145 = tpu.matmul %140, %144, %cst_97 {dimension_numbers = #tpu.dot_dimension_numbers<[1], [0], [0], [1], [0, 0, 1, 1], [], []>} : vector<8x128xf32>, vector<128x128xf32>, vector<8x128xf32> -> vector<8x128xf32>
    %c14 = arith.constant 14 : index
    %c0_98 = arith.constant 0 : index
    %c0_99 = arith.constant 0 : index
    %146 = vector.load %arg2[%c14, %c0_98, %c0_99] : memref<28x8x128xf32, #tpu.memory_space<vmem>>, vector<1x8x128xf32>
    %147 = vector.shape_cast %146 : vector<1x8x128xf32> to vector<8x128xf32>
    %148 = arith.addf %145, %147 : vector<8x128xf32>
    %c12_100 = arith.constant 12 : index
    %c0_101 = arith.constant 0 : index
    %c0_102 = arith.constant 0 : index
    %149 = vector.load %arg1[%c12_100, %c0_101, %c0_102] : memref<22x128x128xf32, #tpu.memory_space<vmem>>, vector<1x128x128xf32>
    %150 = vector.shape_cast %149 : vector<1x128x128xf32> to vector<128x128xf32>
    %cst_103 = arith.constant dense<0.000000e+00> : vector<8x128xf32>
    %151 = tpu.matmul %140, %150, %cst_103 {dimension_numbers = #tpu.dot_dimension_numbers<[1], [0], [0], [1], [0, 0, 1, 1], [], []>} : vector<8x128xf32>, vector<128x128xf32>, vector<8x128xf32> -> vector<8x128xf32>
    %c15 = arith.constant 15 : index
    %c0_104 = arith.constant 0 : index
    %c0_105 = arith.constant 0 : index
    %152 = vector.load %arg2[%c15, %c0_104, %c0_105] : memref<28x8x128xf32, #tpu.memory_space<vmem>>, vector<1x8x128xf32>
    %153 = vector.shape_cast %152 : vector<1x8x128xf32> to vector<8x128xf32>
    %154 = arith.addf %151, %153 : vector<8x128xf32>
    %c13_106 = arith.constant 13 : index
    %c0_107 = arith.constant 0 : index
    %c0_108 = arith.constant 0 : index
    %155 = vector.load %arg1[%c13_106, %c0_107, %c0_108] : memref<22x128x128xf32, #tpu.memory_space<vmem>>, vector<1x128x128xf32>
    %156 = vector.shape_cast %155 : vector<1x128x128xf32> to vector<128x128xf32>
    %cst_109 = arith.constant dense<0.000000e+00> : vector<8x128xf32>
    %157 = tpu.matmul %140, %156, %cst_109 {dimension_numbers = #tpu.dot_dimension_numbers<[1], [0], [0], [1], [0, 0, 1, 1], [], []>} : vector<8x128xf32>, vector<128x128xf32>, vector<8x128xf32> -> vector<8x128xf32>
    %c16 = arith.constant 16 : index
    %c0_110 = arith.constant 0 : index
    %c0_111 = arith.constant 0 : index
    %158 = vector.load %arg2[%c16, %c0_110, %c0_111] : memref<28x8x128xf32, #tpu.memory_space<vmem>>, vector<1x8x128xf32>
    %159 = vector.shape_cast %158 : vector<1x8x128xf32> to vector<8x128xf32>
    %160 = arith.addf %157, %159 : vector<8x128xf32>
    %cst_112 = arith.constant dense<0.000000e+00> : vector<8x8xf32>
    %161 = tpu.matmul %148, %154, %cst_112 {dimension_numbers = #tpu.dot_dimension_numbers<[1], [1], [0], [0], [0, 0, 1, 0], [], []>} : vector<8x128xf32>, vector<8x128xf32>, vector<8x8xf32> -> vector<8x8xf32>
    %cst_113 = arith.constant dense<0xFF800000> : vector<8xf32>
    %162 = vector.multi_reduction <maximumf>, %161, %cst_113 [1] : vector<8x8xf32> to vector<8xf32>
    %163 = vector.shape_cast %162 : vector<8xf32> to vector<8x1xf32>
    %164 = vector.broadcast %163 : vector<8x1xf32> to vector<8x8xf32>
    %165 = arith.subf %161, %164 : vector<8x8xf32>
    %166 = math.exp %165 : vector<8x8xf32>
    %cst_114 = arith.constant dense<0.000000e+00> : vector<8xf32>
    %167 = vector.multi_reduction <add>, %166, %cst_114 [1] : vector<8x8xf32> to vector<8xf32>
    %168 = vector.shape_cast %167 : vector<8xf32> to vector<8x1xf32>
    %169 = tpu.reciprocal %168 {approx = true} : vector<8x1xf32> -> vector<8x1xf32>
    %170 = vector.broadcast %169 : vector<8x1xf32> to vector<8x8xf32>
    %171 = arith.mulf %166, %170 : vector<8x8xf32>
    %cst_115 = arith.constant dense<0.000000e+00> : vector<8x128xf32>
    %172 = tpu.matmul %171, %160, %cst_115 {dimension_numbers = #tpu.dot_dimension_numbers<[1], [0], [0], [1], [0, 0, 1, 1], [], []>} : vector<8x8xf32>, vector<8x128xf32>, vector<8x128xf32> -> vector<8x128xf32>
    %c17 = arith.constant 17 : index
    %c0_116 = arith.constant 0 : index
    %c0_117 = arith.constant 0 : index
    %173 = vector.load %arg1[%c17, %c0_116, %c0_117] : memref<22x128x128xf32, #tpu.memory_space<vmem>>, vector<1x128x128xf32>
    %174 = vector.shape_cast %173 : vector<1x128x128xf32> to vector<128x128xf32>
    %cst_118 = arith.constant dense<0.000000e+00> : vector<8x128xf32>
    %175 = tpu.matmul %172, %174, %cst_118 {dimension_numbers = #tpu.dot_dimension_numbers<[1], [0], [0], [1], [0, 0, 1, 1], [], []>} : vector<8x128xf32>, vector<128x128xf32>, vector<8x128xf32> -> vector<8x128xf32>
    %176 = arith.addf %142, %175 : vector<8x128xf32>
    %c14_119 = arith.constant 14 : index
    %c0_120 = arith.constant 0 : index
    %c0_121 = arith.constant 0 : index
    %177 = vector.load %arg1[%c14_119, %c0_120, %c0_121] : memref<22x128x128xf32, #tpu.memory_space<vmem>>, vector<1x128x128xf32>
    %178 = vector.shape_cast %177 : vector<1x128x128xf32> to vector<128x128xf32>
    %cst_122 = arith.constant dense<0.000000e+00> : vector<8x128xf32>
    %179 = tpu.matmul %140, %178, %cst_122 {dimension_numbers = #tpu.dot_dimension_numbers<[1], [0], [0], [1], [0, 0, 1, 1], [], []>} : vector<8x128xf32>, vector<128x128xf32>, vector<8x128xf32> -> vector<8x128xf32>
    %c17_123 = arith.constant 17 : index
    %c0_124 = arith.constant 0 : index
    %c0_125 = arith.constant 0 : index
    %180 = vector.load %arg2[%c17_123, %c0_124, %c0_125] : memref<28x8x128xf32, #tpu.memory_space<vmem>>, vector<1x8x128xf32>
    %181 = vector.shape_cast %180 : vector<1x8x128xf32> to vector<8x128xf32>
    %182 = arith.addf %179, %181 : vector<8x128xf32>
    %c15_126 = arith.constant 15 : index
    %c0_127 = arith.constant 0 : index
    %c0_128 = arith.constant 0 : index
    %183 = vector.load %arg1[%c15_126, %c0_127, %c0_128] : memref<22x128x128xf32, #tpu.memory_space<vmem>>, vector<1x128x128xf32>
    %184 = vector.shape_cast %183 : vector<1x128x128xf32> to vector<128x128xf32>
    %cst_129 = arith.constant dense<0.000000e+00> : vector<8x128xf32>
    %185 = tpu.matmul %140, %184, %cst_129 {dimension_numbers = #tpu.dot_dimension_numbers<[1], [0], [0], [1], [0, 0, 1, 1], [], []>} : vector<8x128xf32>, vector<128x128xf32>, vector<8x128xf32> -> vector<8x128xf32>
    %c18 = arith.constant 18 : index
    %c0_130 = arith.constant 0 : index
    %c0_131 = arith.constant 0 : index
    %186 = vector.load %arg2[%c18, %c0_130, %c0_131] : memref<28x8x128xf32, #tpu.memory_space<vmem>>, vector<1x8x128xf32>
    %187 = vector.shape_cast %186 : vector<1x8x128xf32> to vector<8x128xf32>
    %188 = arith.addf %185, %187 : vector<8x128xf32>
    %c16_132 = arith.constant 16 : index
    %c0_133 = arith.constant 0 : index
    %c0_134 = arith.constant 0 : index
    %189 = vector.load %arg1[%c16_132, %c0_133, %c0_134] : memref<22x128x128xf32, #tpu.memory_space<vmem>>, vector<1x128x128xf32>
    %190 = vector.shape_cast %189 : vector<1x128x128xf32> to vector<128x128xf32>
    %cst_135 = arith.constant dense<0.000000e+00> : vector<8x128xf32>
    %191 = tpu.matmul %140, %190, %cst_135 {dimension_numbers = #tpu.dot_dimension_numbers<[1], [0], [0], [1], [0, 0, 1, 1], [], []>} : vector<8x128xf32>, vector<128x128xf32>, vector<8x128xf32> -> vector<8x128xf32>
    %c19 = arith.constant 19 : index
    %c0_136 = arith.constant 0 : index
    %c0_137 = arith.constant 0 : index
    %192 = vector.load %arg2[%c19, %c0_136, %c0_137] : memref<28x8x128xf32, #tpu.memory_space<vmem>>, vector<1x8x128xf32>
    %193 = vector.shape_cast %192 : vector<1x8x128xf32> to vector<8x128xf32>
    %194 = arith.addf %191, %193 : vector<8x128xf32>
    %cst_138 = arith.constant dense<0.000000e+00> : vector<8x8xf32>
    %195 = tpu.matmul %182, %188, %cst_138 {dimension_numbers = #tpu.dot_dimension_numbers<[1], [1], [0], [0], [0, 0, 1, 0], [], []>} : vector<8x128xf32>, vector<8x128xf32>, vector<8x8xf32> -> vector<8x8xf32>
    %cst_139 = arith.constant dense<0xFF800000> : vector<8xf32>
    %196 = vector.multi_reduction <maximumf>, %195, %cst_139 [1] : vector<8x8xf32> to vector<8xf32>
    %197 = vector.shape_cast %196 : vector<8xf32> to vector<8x1xf32>
    %198 = vector.broadcast %197 : vector<8x1xf32> to vector<8x8xf32>
    %199 = arith.subf %195, %198 : vector<8x8xf32>
    %200 = math.exp %199 : vector<8x8xf32>
    %cst_140 = arith.constant dense<0.000000e+00> : vector<8xf32>
    %201 = vector.multi_reduction <add>, %200, %cst_140 [1] : vector<8x8xf32> to vector<8xf32>
    %202 = vector.shape_cast %201 : vector<8xf32> to vector<8x1xf32>
    %203 = tpu.reciprocal %202 {approx = true} : vector<8x1xf32> -> vector<8x1xf32>
    %204 = vector.broadcast %203 : vector<8x1xf32> to vector<8x8xf32>
    %205 = arith.mulf %200, %204 : vector<8x8xf32>
    %cst_141 = arith.constant dense<0.000000e+00> : vector<8x128xf32>
    %206 = tpu.matmul %205, %194, %cst_141 {dimension_numbers = #tpu.dot_dimension_numbers<[1], [0], [0], [1], [0, 0, 1, 1], [], []>} : vector<8x8xf32>, vector<8x128xf32>, vector<8x128xf32> -> vector<8x128xf32>
    %c18_142 = arith.constant 18 : index
    %c0_143 = arith.constant 0 : index
    %c0_144 = arith.constant 0 : index
    %207 = vector.load %arg1[%c18_142, %c0_143, %c0_144] : memref<22x128x128xf32, #tpu.memory_space<vmem>>, vector<1x128x128xf32>
    %208 = vector.shape_cast %207 : vector<1x128x128xf32> to vector<128x128xf32>
    %cst_145 = arith.constant dense<0.000000e+00> : vector<8x128xf32>
    %209 = tpu.matmul %206, %208, %cst_145 {dimension_numbers = #tpu.dot_dimension_numbers<[1], [0], [0], [1], [0, 0, 1, 1], [], []>} : vector<8x128xf32>, vector<128x128xf32>, vector<8x128xf32> -> vector<8x128xf32>
    %210 = arith.addf %176, %209 : vector<8x128xf32>
    %211 = arith.addf %140, %210 : vector<8x128xf32>
    %c21 = arith.constant 21 : index
    %c0_146 = arith.constant 0 : index
    %c0_147 = arith.constant 0 : index
    %212 = vector.load %arg2[%c21, %c0_146, %c0_147] : memref<28x8x128xf32, #tpu.memory_space<vmem>>, vector<1x8x128xf32>
    %213 = vector.shape_cast %212 : vector<1x8x128xf32> to vector<8x128xf32>
    %c22 = arith.constant 22 : index
    %c0_148 = arith.constant 0 : index
    %c0_149 = arith.constant 0 : index
    %214 = vector.load %arg2[%c22, %c0_148, %c0_149] : memref<28x8x128xf32, #tpu.memory_space<vmem>>, vector<1x8x128xf32>
    %215 = vector.shape_cast %214 : vector<1x8x128xf32> to vector<8x128xf32>
    %cst_150 = arith.constant dense<0.000000e+00> : vector<8xf32>
    %216 = vector.multi_reduction <add>, %211, %cst_150 [1] : vector<8x128xf32> to vector<8xf32>
    %217 = vector.shape_cast %216 : vector<8xf32> to vector<8x1xf32>
    %cst_151 = arith.constant 1.250000e-01 : f32
    %218 = vector.broadcast %cst_151 : f32 to vector<8x1xf32>
    %219 = arith.mulf %217, %218 : vector<8x1xf32>
    %220 = arith.mulf %211, %211 : vector<8x128xf32>
    %cst_152 = arith.constant dense<0.000000e+00> : vector<8xf32>
    %221 = vector.multi_reduction <add>, %220, %cst_152 [1] : vector<8x128xf32> to vector<8xf32>
    %222 = vector.shape_cast %221 : vector<8xf32> to vector<8x1xf32>
    %cst_153 = arith.constant 1.250000e-01 : f32
    %223 = vector.broadcast %cst_153 : f32 to vector<8x1xf32>
    %224 = arith.mulf %222, %223 : vector<8x1xf32>
    %225 = arith.mulf %219, %219 : vector<8x1xf32>
    %226 = arith.subf %224, %225 : vector<8x1xf32>
    %227 = vector.broadcast %219 : vector<8x1xf32> to vector<8x128xf32>
    %228 = arith.subf %211, %227 : vector<8x128xf32>
    %cst_154 = arith.constant 9.99999974E-6 : f32
    %229 = vector.broadcast %cst_154 : f32 to vector<8x1xf32>
    %230 = arith.addf %226, %229 : vector<8x1xf32>
    %231 = math.rsqrt %230 : vector<8x1xf32>
    %232 = vector.broadcast %231 : vector<8x1xf32> to vector<8x128xf32>
    %233 = arith.mulf %228, %232 : vector<8x128xf32>
    %234 = arith.mulf %233, %213 : vector<8x128xf32>
    %235 = arith.addf %234, %215 : vector<8x128xf32>
    %c19_155 = arith.constant 19 : index
    %c0_156 = arith.constant 0 : index
    %c0_157 = arith.constant 0 : index
    %236 = vector.load %arg1[%c19_155, %c0_156, %c0_157] : memref<22x128x128xf32, #tpu.memory_space<vmem>>, vector<1x128x128xf32>
    %237 = vector.shape_cast %236 : vector<1x128x128xf32> to vector<128x128xf32>
    %cst_158 = arith.constant dense<0.000000e+00> : vector<8x128xf32>
    %238 = tpu.matmul %235, %237, %cst_158 {dimension_numbers = #tpu.dot_dimension_numbers<[1], [0], [0], [1], [0, 0, 1, 1], [], []>} : vector<8x128xf32>, vector<128x128xf32>, vector<8x128xf32> -> vector<8x128xf32>
    %c25 = arith.constant 25 : index
    %c0_159 = arith.constant 0 : index
    %c0_160 = arith.constant 0 : index
    %239 = vector.load %arg2[%c25, %c0_159, %c0_160] : memref<28x8x128xf32, #tpu.memory_space<vmem>>, vector<1x8x128xf32>
    %240 = vector.shape_cast %239 : vector<1x8x128xf32> to vector<8x128xf32>
    %241 = arith.addf %238, %240 : vector<8x128xf32>
    %cst_161 = arith.constant 0.000000e+00 : f32
    %242 = vector.broadcast %cst_161 : f32 to vector<8x128xf32>
    %243 = arith.maximumf %241, %242 : vector<8x128xf32>
    %c20_162 = arith.constant 20 : index
    %c0_163 = arith.constant 0 : index
    %c0_164 = arith.constant 0 : index
    %244 = vector.load %arg1[%c20_162, %c0_163, %c0_164] : memref<22x128x128xf32, #tpu.memory_space<vmem>>, vector<1x128x128xf32>
    %245 = vector.shape_cast %244 : vector<1x128x128xf32> to vector<128x128xf32>
    %cst_165 = arith.constant dense<0.000000e+00> : vector<8x128xf32>
    %246 = tpu.matmul %243, %245, %cst_165 {dimension_numbers = #tpu.dot_dimension_numbers<[1], [0], [0], [1], [0, 0, 1, 1], [], []>} : vector<8x128xf32>, vector<128x128xf32>, vector<8x128xf32> -> vector<8x128xf32>
    %c26 = arith.constant 26 : index
    %c0_166 = arith.constant 0 : index
    %c0_167 = arith.constant 0 : index
    %247 = vector.load %arg2[%c26, %c0_166, %c0_167] : memref<28x8x128xf32, #tpu.memory_space<vmem>>, vector<1x8x128xf32>
    %248 = vector.shape_cast %247 : vector<1x8x128xf32> to vector<8x128xf32>
    %249 = arith.addf %246, %248 : vector<8x128xf32>
    %250 = arith.addf %235, %249 : vector<8x128xf32>
    %c23 = arith.constant 23 : index
    %c0_168 = arith.constant 0 : index
    %c0_169 = arith.constant 0 : index
    %251 = vector.load %arg2[%c23, %c0_168, %c0_169] : memref<28x8x128xf32, #tpu.memory_space<vmem>>, vector<1x8x128xf32>
    %252 = vector.shape_cast %251 : vector<1x8x128xf32> to vector<8x128xf32>
    %c24 = arith.constant 24 : index
    %c0_170 = arith.constant 0 : index
    %c0_171 = arith.constant 0 : index
    %253 = vector.load %arg2[%c24, %c0_170, %c0_171] : memref<28x8x128xf32, #tpu.memory_space<vmem>>, vector<1x8x128xf32>
    %254 = vector.shape_cast %253 : vector<1x8x128xf32> to vector<8x128xf32>
    %cst_172 = arith.constant dense<0.000000e+00> : vector<8xf32>
    %255 = vector.multi_reduction <add>, %250, %cst_172 [1] : vector<8x128xf32> to vector<8xf32>
    %256 = vector.shape_cast %255 : vector<8xf32> to vector<8x1xf32>
    %cst_173 = arith.constant 1.250000e-01 : f32
    %257 = vector.broadcast %cst_173 : f32 to vector<8x1xf32>
    %258 = arith.mulf %256, %257 : vector<8x1xf32>
    %259 = arith.mulf %250, %250 : vector<8x128xf32>
    %cst_174 = arith.constant dense<0.000000e+00> : vector<8xf32>
    %260 = vector.multi_reduction <add>, %259, %cst_174 [1] : vector<8x128xf32> to vector<8xf32>
    %261 = vector.shape_cast %260 : vector<8xf32> to vector<8x1xf32>
    %cst_175 = arith.constant 1.250000e-01 : f32
    %262 = vector.broadcast %cst_175 : f32 to vector<8x1xf32>
    %263 = arith.mulf %261, %262 : vector<8x1xf32>
    %264 = arith.mulf %258, %258 : vector<8x1xf32>
    %265 = arith.subf %263, %264 : vector<8x1xf32>
    %266 = vector.broadcast %258 : vector<8x1xf32> to vector<8x128xf32>
    %267 = arith.subf %250, %266 : vector<8x128xf32>
    %cst_176 = arith.constant 9.99999974E-6 : f32
    %268 = vector.broadcast %cst_176 : f32 to vector<8x1xf32>
    %269 = arith.addf %265, %268 : vector<8x1xf32>
    %270 = math.rsqrt %269 : vector<8x1xf32>
    %271 = vector.broadcast %270 : vector<8x1xf32> to vector<8x128xf32>
    %272 = arith.mulf %267, %271 : vector<8x128xf32>
    %273 = arith.mulf %272, %252 : vector<8x128xf32>
    %274 = arith.addf %273, %254 : vector<8x128xf32>
    %c21_177 = arith.constant 21 : index
    %c0_178 = arith.constant 0 : index
    %c0_179 = arith.constant 0 : index
    %275 = vector.load %arg1[%c21_177, %c0_178, %c0_179] : memref<22x128x128xf32, #tpu.memory_space<vmem>>, vector<1x128x128xf32>
    %276 = vector.shape_cast %275 : vector<1x128x128xf32> to vector<128x128xf32>
    %cst_180 = arith.constant dense<0.000000e+00> : vector<8x128xf32>
    %277 = tpu.matmul %274, %276, %cst_180 {dimension_numbers = #tpu.dot_dimension_numbers<[1], [0], [0], [1], [0, 0, 1, 1], [], []>} : vector<8x128xf32>, vector<128x128xf32>, vector<8x128xf32> -> vector<8x128xf32>
    %c27 = arith.constant 27 : index
    %c0_181 = arith.constant 0 : index
    %c0_182 = arith.constant 0 : index
    %278 = vector.load %arg2[%c27, %c0_181, %c0_182] : memref<28x8x128xf32, #tpu.memory_space<vmem>>, vector<1x8x128xf32>
    %279 = vector.shape_cast %278 : vector<1x8x128xf32> to vector<8x128xf32>
    %280 = arith.addf %277, %279 : vector<8x128xf32>
    %c0_183 = arith.constant 0 : index
    %c0_184 = arith.constant 0 : index
    %281 = vector.load %arg3[%c0_183, %c0_184] : memref<8x128xf32, #tpu.memory_space<vmem>>, vector<8x128xf32>
    tpu.vector_store %arg3[%c0_183, %c0_184], %280 {strides = array<i32>} : memref<8x128xf32, #tpu.memory_space<vmem>>, vector<8x128xf32>,
    return
  }
}

</mosaic_0001>

<llo_original>
// kernel: classic_transformer_forward.1
$region0: #{classic_transformer_forward.1}
  #allocation0 [shape = 'u32[]', space=smem, size = 0x4, offset = 0x4, fixed_abs, tag = 'smem constant byte address 0x4 - core index']
  #allocation1 [shape = 'u32[144,128]{1,0:T(1,128)}', space=vmem, size = 0x12000, scoped, tag = 'internal scratch']
  %s0 = inlined_call_operand.vmem [shape: f32[8,128], index: 0, kind: input, shape index: {}]
  %s1 = inlined_call_operand.hbm [shape: f32[22,128,128], index: 1, kind: input, shape index: {}]
  %s2 = inlined_call_operand.hbm [shape: f32[28,8,128], index: 2, kind: input, shape index: {}]
  %s3 = inlined_call_operand.hbm [shape: f32[8,128], index: 3, kind: output, shape index: {}]
  %s4 = sld [smem:[#allocation0]]
  $region30: #{classic_transformer_forward.1} parent=0
    _
  %s6 = ssub.s32 1, %s4
  %s7 = scalar_select 0, %s6, %s4
  $region1: #{classic_transformer_forward.1} parent=0
    #allocation2 [shape = 'u8[1441792]{0}', space=vmem, size = 0x160000, scoped, tag = 'input window, operand 1, single buffered']
    #allocation3 [shape = 's32[1]{0}', space=sflag, size = 0x4, scoped, tag = 'scoped memory for classic_transformer_forward.1']
    #allocation4 [shape = 's32[1]{0}', space=sflag, size = 0x4, scoped, tag = 'scoped memory for classic_transformer_forward.1']
    #allocation5 [shape = 'u8[114688]{0}', space=vmem, size = 0x1c000, scoped, tag = 'input window, operand 2, single buffered']
    #allocation6 [shape = 's32[1]{0}', space=sflag, size = 0x4, scoped, tag = 'scoped memory for classic_transformer_forward.1']
    #allocation7 [shape = 'u8[4096]{0}', space=vmem, size = 0x1000, scoped, tag = 'output window, operand 0, single buffered']
    %8 = vsyncpa [#allocation3], 0
    %9 = vsyncpa [#allocation6], 0
    %10 = vsyncpa [#allocation4], 0
    // Predicated region
    $region2: #{classic_transformer_forward.1} parent=1 // pred_check
      _
    $region3: #{classic_transformer_forward.1} parent=1 // pred_check_branch
      %12 = sbr.rel (0) target = $region5
    $region4: #{classic_transformer_forward.1} parent=1 // pred_region
      _
    $region5: #{classic_transformer_forward.1} parent=1 // pred_fallthru
      _
    // Predicated region
    $region6: #{classic_transformer_forward.1} parent=1 // pred_check
      _
    $region7: #{classic_transformer_forward.1} parent=1 // pred_check_branch
      %14 = sbr.rel (0) target = $region9
    $region8: #{classic_transformer_forward.1} parent=1 // pred_region
      %s16 = ssub.s32 45056, 45056
      %17 = vsyncadd [#allocation3], %s16
      %s18 = sshll.u32 [#allocation2], 4
      %s19 = int_to_ptr.vmem [resolvable:$true] %s18
      %24 = dma.hbm_to_vmem [thread:$0]  %s1, 45056, %s19, [#allocation3], 128, 128, 8
    $region9: #{classic_transformer_forward.1} parent=1 // pred_fallthru
      _
    // Predicated region
    $region10: #{classic_transformer_forward.1} parent=1 // pred_check
      _
    $region11: #{classic_transformer_forward.1} parent=1 // pred_check_branch
      %26 = sbr.rel (0) target = $region13
    $region12: #{classic_transformer_forward.1} parent=1 // pred_region
      %s28 = ssub.s32 3584, 3584
      %29 = vsyncadd [#allocation6], %s28
      %s30 = sshll.u32 [#allocation5], 4
      %s31 = int_to_ptr.vmem [resolvable:$true] %s30
      %36 = dma.hbm_to_vmem [thread:$0]  %s2, 3584, %s31, [#allocation6], 128, 128, 8
    $region13: #{classic_transformer_forward.1} parent=1 // pred_fallthru
      _
    // Predicated region
    $region14: #{classic_transformer_forward.1} parent=1 // pred_check
      _
    $region15: #{classic_transformer_forward.1} parent=1 // pred_check_branch
      %38 = sbr.rel (0) target = $region17
    $region16: #{classic_transformer_forward.1} parent=1 // pred_region
      %39 = dma.done [#allocation3], 45056
    $region17: #{classic_transformer_forward.1} parent=1 // pred_fallthru
      _
    // Predicated region
    $region18: #{classic_transformer_forward.1} parent=1 // pred_check
      _
    $region19: #{classic_transformer_forward.1} parent=1 // pred_check_branch
      %41 = sbr.rel (0) target = $region21
    $region20: #{classic_transformer_forward.1} parent=1 // pred_region
      %42 = dma.done [#allocation6], 3584
    $region21: #{classic_transformer_forward.1} parent=1 // pred_fallthru
      _
    %v43 = vld [vmem:[%s0] sm:$0xff]
    %v44 = vld [vmem:[#allocation2] sm:$0xff]
    %v45 = vld [vmem:[#allocation2 + $0x8] sm:$0xff]
    %v46 = vld [vmem:[#allocation2 + $0x10] sm:$0xff]
    %v47 = vld [vmem:[#allocation2 + $0x18] sm:$0xff]
    %v48 = vld [vmem:[#allocation2 + $0x20] sm:$0xff]
    %v49 = vld [vmem:[#allocation2 + $0x28] sm:$0xff]
    %v50 = vld [vmem:[#allocation2 + $0x30] sm:$0xff]
    %v51 = vld [vmem:[#allocation2 + $0x38] sm:$0xff]
    %v52 = vld [vmem:[#allocation2 + $0x40] sm:$0xff]
    %v53 = vld [vmem:[#allocation2 + $0x48] sm:$0xff]
    %v54 = vld [vmem:[#allocation2 + $0x50] sm:$0xff]
    %v55 = vld [vmem:[#allocation2 + $0x58] sm:$0xff]
    %v56 = vld [vmem:[#allocation2 + $0x60] sm:$0xff]
    %v57 = vld [vmem:[#allocation2 + $0x68] sm:$0xff]
    %v58 = vld [vmem:[#allocation2 + $0x70] sm:$0xff]
    %v59 = vld [vmem:[#allocation2 + $0x78] sm:$0xff]
    %v60 = vld [vmem:[#allocation5] sm:$0xff]
    %61 = vmatprep.subr.mxu0 0.0
    %62 = vmatpush1.msra.mxu0 %v59
    %63 = vmatprep.subr.mxu0 0.0
    %64 = vmatpush1.msra.mxu0 %v58
    %65 = vmatprep.subr.mxu0 0.0
    %66 = vmatpush1.msra.mxu0 %v57
    %67 = vmatprep.subr.mxu0 0.0
    %68 = vmatpush1.msra.mxu0 %v56
    %69 = vmatprep.subr.mxu0 0.0
    %70 = vmatpush1.msra.mxu0 %v55
    %71 = vmatprep.subr.mxu0 0.0
    %72 = vmatpush1.msra.mxu0 %v54
    %73 = vmatprep.subr.mxu0 0.0
    %74 = vmatpush1.msra.mxu0 %v53
    %75 = vmatprep.subr.mxu0 0.0
    %76 = vmatpush1.msra.mxu0 %v52
    %77 = vmatprep.subr.mxu0 0.0
    %78 = vmatpush1.msra.mxu0 %v51
    %79 = vmatprep.subr.mxu0 0.0
    %80 = vmatpush1.msra.mxu0 %v50
    %81 = vmatprep.subr.mxu0 0.0
    %82 = vmatpush1.msra.mxu0 %v49
    %83 = vmatprep.subr.mxu0 0.0
    %84 = vmatpush1.msra.mxu0 %v48
    %85 = vmatprep.subr.mxu0 0.0
    %86 = vmatpush1.msra.mxu0 %v47
    %87 = vmatprep.subr.mxu0 0.0
    %88 = vmatpush1.msra.mxu0 %v46
    %89 = vmatprep.subr.mxu0 0.0
    %90 = vmatpush1.msra.mxu0 %v45
    %91 = vmatprep.subr.mxu0 0.0
    %92 = vmatpush1.msra.mxu0 %v44
    %93 = vmatprep.subr.mxu0 0.0
    %94 = vmatpush2.msra.mxu0 0.0
    %95 = vmatprep.subr.mxu0 0.0
    %96 = vmatpush2.msra.mxu0 0.0
    %97 = vmatprep.subr.mxu0 0.0
    %98 = vmatpush2.msra.mxu0 0.0
    %99 = vmatprep.subr.mxu0 0.0
    %100 = vmatpush2.msra.mxu0 0.0
    %101 = vmatprep.subr.mxu0 0.0
    %102 = vmatpush2.msra.mxu0 0.0
    %103 = vmatprep.subr.mxu0 0.0
    %104 = vmatpush2.msra.mxu0 0.0
    %105 = vmatprep.subr.mxu0 0.0
    %106 = vmatpush2.msra.mxu0 0.0
    %107 = vmatprep.subr.mxu0 0.0
    %108 = vmatpush2.msra.mxu0 0.0
    %109 = vmatprep.subr.mxu0 0.0
    %110 = vmatpush2.msra.mxu0 0.0
    %111 = vmatprep.subr.mxu0 0.0
    %112 = vmatpush2.msra.mxu0 0.0
    %113 = vmatprep.subr.mxu0 0.0
    %114 = vmatpush2.msra.mxu0 0.0
    %115 = vmatprep.subr.mxu0 0.0
    %116 = vmatpush2.msra.mxu0 0.0
    %117 = vmatprep.subr.mxu0 0.0
    %118 = vmatpush2.msra.mxu0 0.0
    %119 = vmatprep.subr.mxu0 0.0
    %120 = vmatpush2.msra.mxu0 0.0
    %121 = vmatprep.subr.mxu0 0.0
    %122 = vmatpush2.msra.mxu0 0.0
    %123 = vmatprep.subr.mxu0 0.0
    %124 = vmatpush2.msra.mxu0 0.0
    %125 = vmatprep.mubr.f32.mxu0 0.0
    %126 = vmatmul.mubr.f32.gmra.mxu0 %v43
    %v127 = vpop.f32.mrf.mxu0
    %v128 = vadd.f32 %v60, %v127
    %v129 = vpop.f32.mrf.mxu0
    %130 = vdwg.mxu0
    %s131 = scalar_lea.vmem [#allocation5], 56
    %v132 = vld [vmem:[%s131] sm:$0xff]
    %s133 = scalar_lea.vmem [#allocation2], 128
    %v134 = vld [vmem:[%s133] sm:$0xff]
    %v135 = vld [vmem:[%s133 + $0x8] sm:$0xff]
    %v136 = vld [vmem:[%s133 + $0x10] sm:$0xff]
    %v137 = vld [vmem:[%s133 + $0x18] sm:$0xff]
    %v138 = vld [vmem:[%s133 + $0x20] sm:$0xff]
    %v139 = vld [vmem:[%s133 + $0x28] sm:$0xff]
    %v140 = vld [vmem:[%s133 + $0x30] sm:$0xff]
    %v141 = vld [vmem:[%s133 + $0x38] sm:$0xff]
    %v142 = vld [vmem:[%s133 + $0x40] sm:$0xff]
    %v143 = vld [vmem:[%s133 + $0x48] sm:$0xff]
    %v144 = vld [vmem:[%s133 + $0x50] sm:$0xff]
    %v145 = vld [vmem:[%s133 + $0x58] sm:$0xff]
    %v146 = vld [vmem:[%s133 + $0x60] sm:$0xff]
    %v147 = vld [vmem:[%s133 + $0x68] sm:$0xff]
    %v148 = vld [vmem:[%s133 + $0x70] sm:$0xff]
    %v149 = vld [vmem:[%s133 + $0x78] sm:$0xff]
    %s150 = scalar_lea.vmem [#allocation5], 8
    %v151 = vld [vmem:[%s150] sm:$0xff]
    %152 = vmatprep.subr.mxu0 0.0
    %153 = vmatpush1.msra.mxu0 %v149
    %154 = vmatprep.subr.mxu0 0.0
    %155 = vmatpush1.msra.mxu0 %v148
    %156 = vmatprep.subr.mxu0 0.0
    %157 = vmatpush1.msra.mxu0 %v147
    %158 = vmatprep.subr.mxu0 0.0
    %159 = vmatpush1.msra.mxu0 %v146
    %160 = vmatprep.subr.mxu0 0.0
    %161 = vmatpush1.msra.mxu0 %v145
    %162 = vmatprep.subr.mxu0 0.0
    %163 = vmatpush1.msra.mxu0 %v144
    %164 = vmatprep.subr.mxu0 0.0
    %165 = vmatpush1.msra.mxu0 %v143
    %166 = vmatprep.subr.mxu0 0.0
    %167 = vmatpush1.msra.mxu0 %v142
    %168 = vmatprep.subr.mxu0 0.0
    %169 = vmatpush1.msra.mxu0 %v141
    %170 = vmatprep.subr.mxu0 0.0
    %171 = vmatpush1.msra.mxu0 %v140
    %172 = vmatprep.subr.mxu0 0.0
    %173 = vmatpush1.msra.mxu0 %v139
    %174 = vmatprep.subr.mxu0 0.0
    %175 = vmatpush1.msra.mxu0 %v138
    %176 = vmatprep.subr.mxu0 0.0
    %177 = vmatpush1.msra.mxu0 %v137
    %178 = vmatprep.subr.mxu0 0.0
    %179 = vmatpush1.msra.mxu0 %v136
    %180 = vmatprep.subr.mxu0 0.0
    %181 = vmatpush1.msra.mxu0 %v135
    %182 = vmatprep.subr.mxu0 0.0
    %183 = vmatpush1.msra.mxu0 %v134
    %184 = vmatprep.subr.mxu0 0.0
    %185 = vmatpush2.msra.mxu0 0.0
    %186 = vmatprep.subr.mxu0 0.0
    %187 = vmatpush2.msra.mxu0 0.0
    %188 = vmatprep.subr.mxu0 0.0
    %189 = vmatpush2.msra.mxu0 0.0
    %190 = vmatprep.subr.mxu0 0.0
    %191 = vmatpush2.msra.mxu0 0.0
    %192 = vmatprep.subr.mxu0 0.0
    %193 = vmatpush2.msra.mxu0 0.0
    %194 = vmatprep.subr.mxu0 0.0
    %195 = vmatpush2.msra.mxu0 0.0
    %196 = vmatprep.subr.mxu0 0.0
    %197 = vmatpush2.msra.mxu0 0.0
    %198 = vmatprep.subr.mxu0 0.0
    %199 = vmatpush2.msra.mxu0 0.0
    %200 = vmatprep.subr.mxu0 0.0
    %201 = vmatpush2.msra.mxu0 0.0
    %202 = vmatprep.subr.mxu0 0.0
    %203 = vmatpush2.msra.mxu0 0.0
    %204 = vmatprep.subr.mxu0 0.0
    %205 = vmatpush2.msra.mxu0 0.0
    %206 = vmatprep.subr.mxu0 0.0
    %207 = vmatpush2.msra.mxu0 0.0
    %208 = vmatprep.subr.mxu0 0.0
    %209 = vmatpush2.msra.mxu0 0.0
    %210 = vmatprep.subr.mxu0 0.0
    %211 = vmatpush2.msra.mxu0 0.0
    %212 = vmatprep.subr.mxu0 0.0
    %213 = vmatpush2.msra.mxu0 0.0
    %214 = vmatprep.subr.mxu0 0.0
    %215 = vmatpush2.msra.mxu0 0.0
    %216 = vmatprep.mubr.f32.mxu0 0.0
    %217 = vmatmul.mubr.f32.gmra.mxu0 %v128
    %v218 = vpop.f32.mrf.mxu0
    %v219 = vadd.f32 %v151, %v218
    %v220 = vpop.f32.mrf.mxu0
    %221 = vdwg.mxu0
    %s222 = scalar_lea.vmem [#allocation2], 256
    %v223 = vld [vmem:[%s222] sm:$0xff]
    %v224 = vld [vmem:[%s222 + $0x8] sm:$0xff]
    %v225 = vld [vmem:[%s222 + $0x10] sm:$0xff]
    %v226 = vld [vmem:[%s222 + $0x18] sm:$0xff]
    %v227 = vld [vmem:[%s222 + $0x20] sm:$0xff]
    %v228 = vld [vmem:[%s222 + $0x28] sm:$0xff]
    %v229 = vld [vmem:[%s222 + $0x30] sm:$0xff]
    %v230 = vld [vmem:[%s222 + $0x38] sm:$0xff]
    %v231 = vld [vmem:[%s222 + $0x40] sm:$0xff]
    %v232 = vld [vmem:[%s222 + $0x48] sm:$0xff]
    %v233 = vld [vmem:[%s222 + $0x50] sm:$0xff]
    %v234 = vld [vmem:[%s222 + $0x58] sm:$0xff]
    %v235 = vld [vmem:[%s222 + $0x60] sm:$0xff]
    %v236 = vld [vmem:[%s222 + $0x68] sm:$0xff]
    %v237 = vld [vmem:[%s222 + $0x70] sm:$0xff]
    %v238 = vld [vmem:[%s222 + $0x78] sm:$0xff]
    %s239 = scalar_lea.vmem [#allocation5], 16
    %v240 = vld [vmem:[%s239] sm:$0xff]
    %241 = vmatprep.subr.mxu0 0.0
    %242 = vmatpush1.msra.mxu0 %v238
    %243 = vmatprep.subr.mxu0 0.0
    %244 = vmatpush1.msra.mxu0 %v237
    %245 = vmatprep.subr.mxu0 0.0
    %246 = vmatpush1.msra.mxu0 %v236
    %247 = vmatprep.subr.mxu0 0.0
    %248 = vmatpush1.msra.mxu0 %v235
    %249 = vmatprep.subr.mxu0 0.0
    %250 = vmatpush1.msra.mxu0 %v234
    %251 = vmatprep.subr.mxu0 0.0
    %252 = vmatpush1.msra.mxu0 %v233
    %253 = vmatprep.subr.mxu0 0.0
    %254 = vmatpush1.msra.mxu0 %v232
    %255 = vmatprep.subr.mxu0 0.0
    %256 = vmatpush1.msra.mxu0 %v231
    %257 = vmatprep.subr.mxu0 0.0
    %258 = vmatpush1.msra.mxu0 %v230
    %259 = vmatprep.subr.mxu0 0.0
    %260 = vmatpush1.msra.mxu0 %v229
    %261 = vmatprep.subr.mxu0 0.0
    %262 = vmatpush1.msra.mxu0 %v228
    %263 = vmatprep.subr.mxu0 0.0
    %264 = vmatpush1.msra.mxu0 %v227
    %265 = vmatprep.subr.mxu0 0.0
    %266 = vmatpush1.msra.mxu0 %v226
    %267 = vmatprep.subr.mxu0 0.0
    %268 = vmatpush1.msra.mxu0 %v225
    %269 = vmatprep.subr.mxu0 0.0
    %270 = vmatpush1.msra.mxu0 %v224
    %271 = vmatprep.subr.mxu0 0.0
    %272 = vmatpush1.msra.mxu0 %v223
    %273 = vmatprep.subr.mxu0 0.0
    %274 = vmatpush2.msra.mxu0 0.0
    %275 = vmatprep.subr.mxu0 0.0
    %276 = vmatpush2.msra.mxu0 0.0
    %277 = vmatprep.subr.mxu0 0.0
    %278 = vmatpush2.msra.mxu0 0.0
    %279 = vmatprep.subr.mxu0 0.0
    %280 = vmatpush2.msra.mxu0 0.0
    %281 = vmatprep.subr.mxu0 0.0
    %282 = vmatpush2.msra.mxu0 0.0
    %283 = vmatprep.subr.mxu0 0.0
    %284 = vmatpush2.msra.mxu0 0.0
    %285 = vmatprep.subr.mxu0 0.0
    %286 = vmatpush2.msra.mxu0 0.0
    %287 = vmatprep.subr.mxu0 0.0
    %288 = vmatpush2.msra.mxu0 0.0
    %289 = vmatprep.subr.mxu0 0.0
    %290 = vmatpush2.msra.mxu0 0.0
    %291 = vmatprep.subr.mxu0 0.0
    %292 = vmatpush2.msra.mxu0 0.0
    %293 = vmatprep.subr.mxu0 0.0
    %294 = vmatpush2.msra.mxu0 0.0
    %295 = vmatprep.subr.mxu0 0.0
    %296 = vmatpush2.msra.mxu0 0.0
    %297 = vmatprep.subr.mxu0 0.0
    %298 = vmatpush2.msra.mxu0 0.0
    %299 = vmatprep.subr.mxu0 0.0
    %300 = vmatpush2.msra.mxu0 0.0
    %301 = vmatprep.subr.mxu0 0.0
    %302 = vmatpush2.msra.mxu0 0.0
    %303 = vmatprep.subr.mxu0 0.0
    %304 = vmatpush2.msra.mxu0 0.0
    %305 = vmatprep.mubr.f32.mxu0 0.0
    %306 = vmatmul.mubr.f32.gmra.mxu0 %v128
    %v307 = vpop.f32.mrf.mxu0
    %v308 = vadd.f32 %v240, %v307
    %v309 = vpop.f32.mrf.mxu0
    %310 = vdwg.mxu0
    %s311 = scalar_lea.vmem [#allocation2], 384
    %v312 = vld [vmem:[%s311] sm:$0xff]
    %v313 = vld [vmem:[%s311 + $0x8] sm:$0xff]
    %v314 = vld [vmem:[%s311 + $0x10] sm:$0xff]
    %v315 = vld [vmem:[%s311 + $0x18] sm:$0xff]
    %v316 = vld [vmem:[%s311 + $0x20] sm:$0xff]
    %v317 = vld [vmem:[%s311 + $0x28] sm:$0xff]
    %v318 = vld [vmem:[%s311 + $0x30] sm:$0xff]
    %v319 = vld [vmem:[%s311 + $0x38] sm:$0xff]
    %v320 = vld [vmem:[%s311 + $0x40] sm:$0xff]
    %v321 = vld [vmem:[%s311 + $0x48] sm:$0xff]
    %v322 = vld [vmem:[%s311 + $0x50] sm:$0xff]
    %v323 = vld [vmem:[%s311 + $0x58] sm:$0xff]
    %v324 = vld [vmem:[%s311 + $0x60] sm:$0xff]
    %v325 = vld [vmem:[%s311 + $0x68] sm:$0xff]
    %v326 = vld [vmem:[%s311 + $0x70] sm:$0xff]
    %v327 = vld [vmem:[%s311 + $0x78] sm:$0xff]
    %s328 = scalar_lea.vmem [#allocation5], 24
    %v329 = vld [vmem:[%s328] sm:$0xff]
    %330 = vmatprep.subr.mxu0 0.0
    %331 = vmatpush1.msra.mxu0 %v327
    %332 = vmatprep.subr.mxu0 0.0
    %333 = vmatpush1.msra.mxu0 %v326
    %334 = vmatprep.subr.mxu0 0.0
    %335 = vmatpush1.msra.mxu0 %v325
    %336 = vmatprep.subr.mxu0 0.0
    %337 = vmatpush1.msra.mxu0 %v324
    %338 = vmatprep.subr.mxu0 0.0
    %339 = vmatpush1.msra.mxu0 %v323
    %340 = vmatprep.subr.mxu0 0.0
    %341 = vmatpush1.msra.mxu0 %v322
    %342 = vmatprep.subr.mxu0 0.0
    %343 = vmatpush1.msra.mxu0 %v321
    %344 = vmatprep.subr.mxu0 0.0
    %345 = vmatpush1.msra.mxu0 %v320
    %346 = vmatprep.subr.mxu0 0.0
    %347 = vmatpush1.msra.mxu0 %v319
    %348 = vmatprep.subr.mxu0 0.0
    %349 = vmatpush1.msra.mxu0 %v318
    %350 = vmatprep.subr.mxu0 0.0
    %351 = vmatpush1.msra.mxu0 %v317
    %352 = vmatprep.subr.mxu0 0.0
    %353 = vmatpush1.msra.mxu0 %v316
    %354 = vmatprep.subr.mxu0 0.0
    %355 = vmatpush1.msra.mxu0 %v315
    %356 = vmatprep.subr.mxu0 0.0
    %357 = vmatpush1.msra.mxu0 %v314
    %358 = vmatprep.subr.mxu0 0.0
    %359 = vmatpush1.msra.mxu0 %v313
    %360 = vmatprep.subr.mxu0 0.0
    %361 = vmatpush1.msra.mxu0 %v312
    %362 = vmatprep.subr.mxu0 0.0
    %363 = vmatpush2.msra.mxu0 0.0
    %364 = vmatprep.subr.mxu0 0.0
    %365 = vmatpush2.msra.mxu0 0.0
    %366 = vmatprep.subr.mxu0 0.0
    %367 = vmatpush2.msra.mxu0 0.0
    %368 = vmatprep.subr.mxu0 0.0
    %369 = vmatpush2.msra.mxu0 0.0
    %370 = vmatprep.subr.mxu0 0.0
    %371 = vmatpush2.msra.mxu0 0.0
    %372 = vmatprep.subr.mxu0 0.0
    %373 = vmatpush2.msra.mxu0 0.0
    %374 = vmatprep.subr.mxu0 0.0
    %375 = vmatpush2.msra.mxu0 0.0
    %376 = vmatprep.subr.mxu0 0.0
    %377 = vmatpush2.msra.mxu0 0.0
    %378 = vmatprep.subr.mxu0 0.0
    %379 = vmatpush2.msra.mxu0 0.0
    %380 = vmatprep.subr.mxu0 0.0
    %381 = vmatpush2.msra.mxu0 0.0
    %382 = vmatprep.subr.mxu0 0.0
    %383 = vmatpush2.msra.mxu0 0.0
    %384 = vmatprep.subr.mxu0 0.0
    %385 = vmatpush2.msra.mxu0 0.0
    %386 = vmatprep.subr.mxu0 0.0
    %387 = vmatpush2.msra.mxu0 0.0
    %388 = vmatprep.subr.mxu0 0.0
    %389 = vmatpush2.msra.mxu0 0.0
    %390 = vmatprep.subr.mxu0 0.0
    %391 = vmatpush2.msra.mxu0 0.0
    %392 = vmatprep.subr.mxu0 0.0
    %393 = vmatpush2.msra.mxu0 0.0
    %394 = vmatprep.mubr.f32.mxu0 0.0
    %395 = vmatmul.mubr.f32.gmra.mxu0 %v128
    %v396 = vpop.f32.mrf.mxu0
    %v397 = vadd.f32 %v329, %v396
    %v398 = vpop.f32.mrf.mxu0
    %399 = vdwg.mxu0
    %400 = vmatprep.subr.mxu0 0.0
    %401 = vmatpush1.xpose.msra.mxu0 0.0
    %402 = vmatprep.subr.mxu0 0.0
    %403 = vmatpush1.xpose.msra.mxu0 0.0
    %404 = vmatprep.subr.mxu0 0.0
    %405 = vmatpush1.xpose.msra.mxu0 0.0
    %406 = vmatprep.subr.mxu0 0.0
    %407 = vmatpush1.xpose.msra.mxu0 0.0
    %408 = vmatprep.subr.mxu0 0.0
    %409 = vmatpush1.xpose.msra.mxu0 0.0
    %410 = vmatprep.subr.mxu0 0.0
    %411 = vmatpush1.xpose.msra.mxu0 0.0
    %412 = vmatprep.subr.mxu0 0.0
    %413 = vmatpush1.xpose.msra.mxu0 0.0
    %414 = vmatprep.subr.mxu0 0.0
    %415 = vmatpush1.xpose.msra.mxu0 0.0
    %416 = vmatprep.subr.mxu0 0.0
    %417 = vmatpush1.xpose.msra.mxu0 0.0
    %418 = vmatprep.subr.mxu0 0.0
    %419 = vmatpush1.xpose.msra.mxu0 0.0
    %420 = vmatprep.subr.mxu0 0.0
    %421 = vmatpush1.xpose.msra.mxu0 0.0
    %422 = vmatprep.subr.mxu0 0.0
    %423 = vmatpush1.xpose.msra.mxu0 0.0
    %424 = vmatprep.subr.mxu0 0.0
    %425 = vmatpush1.xpose.msra.mxu0 0.0
    %426 = vmatprep.subr.mxu0 0.0
    %427 = vmatpush1.xpose.msra.mxu0 0.0
    %428 = vmatprep.subr.mxu0 0.0
    %429 = vmatpush1.xpose.msra.mxu0 0.0
    %430 = vmatprep.subr.mxu0 0.0
    %431 = vmatpush1.xpose.msra.mxu0 %v308
    %432 = vmatprep.subr.mxu0 0.0
    %433 = vmatpush2.xpose.msra.mxu0 0.0
    %434 = vmatprep.subr.mxu0 0.0
    %435 = vmatpush2.xpose.msra.mxu0 0.0
    %436 = vmatprep.subr.mxu0 0.0
    %437 = vmatpush2.xpose.msra.mxu0 0.0
    %438 = vmatprep.subr.mxu0 0.0
    %439 = vmatpush2.xpose.msra.mxu0 0.0
    %440 = vmatprep.subr.mxu0 0.0
    %441 = vmatpush2.xpose.msra.mxu0 0.0
    %442 = vmatprep.subr.mxu0 0.0
    %443 = vmatpush2.xpose.msra.mxu0 0.0
    %444 = vmatprep.subr.mxu0 0.0
    %445 = vmatpush2.xpose.msra.mxu0 0.0
    %446 = vmatprep.subr.mxu0 0.0
    %447 = vmatpush2.xpose.msra.mxu0 0.0
    %448 = vmatprep.subr.mxu0 0.0
    %449 = vmatpush2.xpose.msra.mxu0 0.0
    %450 = vmatprep.subr.mxu0 0.0
    %451 = vmatpush2.xpose.msra.mxu0 0.0
    %452 = vmatprep.subr.mxu0 0.0
    %453 = vmatpush2.xpose.msra.mxu0 0.0
    %454 = vmatprep.subr.mxu0 0.0
    %455 = vmatpush2.xpose.msra.mxu0 0.0
    %456 = vmatprep.subr.mxu0 0.0
    %457 = vmatpush2.xpose.msra.mxu0 0.0
    %458 = vmatprep.subr.mxu0 0.0
    %459 = vmatpush2.xpose.msra.mxu0 0.0
    %460 = vmatprep.subr.mxu0 0.0
    %461 = vmatpush2.xpose.msra.mxu0 0.0
    %462 = vmatprep.subr.mxu0 0.0
    %463 = vmatpush2.xpose.msra.mxu0 0.0
    %464 = vmatprep.mubr.f32.mxu0 0.0
    %465 = vmatmul.mubr.f32.gmra.mxu0 %v219
    %v466 = vpop.f32.mrf.mxu0
    %v467 = vadd.f32 0.0, %v466
    %v468 = vpop.f32.mrf.mxu0
    %469 = vdwg.mxu0
    %vm470 = vcmask 64512
    %v471 = vsel %vm470, %v467, -inf
    %472 = vmax.xlane.f32.xlu0 %v471
    %v473 = vpop.xlane.xlu0 %472
    %v474 = vsub.f32 %v467, %v473
    %v475 = vmul.f32 %v474, 1.442695
    %v476 = vpow.pop %v475
    %v477 = vsel %vm470, %v476, 0.0
    %478 = vadd.xlane.f32.xlu0 %v477
    %v479 = vpop.xlane.xlu0 %478
    %v480 = vrcp.pop %v479
    %v481 = vmul.f32 %v476, %v480
    %v483 = vsel %vm470, %v481, 0
    %485 = vmatprep.subr.mxu0 0.0
    %486 = vmatpush1.msra.mxu0 0.0
    %487 = vmatprep.subr.mxu0 0.0
    %488 = vmatpush1.msra.mxu0 0.0
    %489 = vmatprep.subr.mxu0 0.0
    %490 = vmatpush1.msra.mxu0 0.0
    %491 = vmatprep.subr.mxu0 0.0
    %492 = vmatpush1.msra.mxu0 0.0
    %493 = vmatprep.subr.mxu0 0.0
    %494 = vmatpush1.msra.mxu0 0.0
    %495 = vmatprep.subr.mxu0 0.0
    %496 = vmatpush1.msra.mxu0 0.0
    %497 = vmatprep.subr.mxu0 0.0
    %498 = vmatpush1.msra.mxu0 0.0
    %499 = vmatprep.subr.mxu0 0.0
    %500 = vmatpush1.msra.mxu0 0.0
    %501 = vmatprep.subr.mxu0 0.0
    %502 = vmatpush1.msra.mxu0 0.0
    %503 = vmatprep.subr.mxu0 0.0
    %504 = vmatpush1.msra.mxu0 0.0
    %505 = vmatprep.subr.mxu0 0.0
    %506 = vmatpush1.msra.mxu0 0.0
    %507 = vmatprep.subr.mxu0 0.0
    %508 = vmatpush1.msra.mxu0 0.0
    %509 = vmatprep.subr.mxu0 0.0
    %510 = vmatpush1.msra.mxu0 0.0
    %511 = vmatprep.subr.mxu0 0.0
    %512 = vmatpush1.msra.mxu0 0.0
    %513 = vmatprep.subr.mxu0 0.0
    %514 = vmatpush1.msra.mxu0 0.0
    %515 = vmatprep.subr.mxu0 0.0
    %516 = vmatpush1.msra.mxu0 %v397
    %517 = vmatprep.subr.mxu0 0.0
    %518 = vmatpush2.msra.mxu0 0.0
    %519 = vmatprep.subr.mxu0 0.0
    %520 = vmatpush2.msra.mxu0 0.0
    %521 = vmatprep.subr.mxu0 0.0
    %522 = vmatpush2.msra.mxu0 0.0
    %523 = vmatprep.subr.mxu0 0.0
    %524 = vmatpush2.msra.mxu0 0.0
    %525 = vmatprep.subr.mxu0 0.0
    %526 = vmatpush2.msra.mxu0 0.0
    %527 = vmatprep.subr.mxu0 0.0
    %528 = vmatpush2.msra.mxu0 0.0
    %529 = vmatprep.subr.mxu0 0.0
    %530 = vmatpush2.msra.mxu0 0.0
    %531 = vmatprep.subr.mxu0 0.0
    %532 = vmatpush2.msra.mxu0 0.0
    %533 = vmatprep.subr.mxu0 0.0
    %534 = vmatpush2.msra.mxu0 0.0
    %535 = vmatprep.subr.mxu0 0.0
    %536 = vmatpush2.msra.mxu0 0.0
    %537 = vmatprep.subr.mxu0 0.0
    %538 = vmatpush2.msra.mxu0 0.0
    %539 = vmatprep.subr.mxu0 0.0
    %540 = vmatpush2.msra.mxu0 0.0
    %541 = vmatprep.subr.mxu0 0.0
    %542 = vmatpush2.msra.mxu0 0.0
    %543 = vmatprep.subr.mxu0 0.0
    %544 = vmatpush2.msra.mxu0 0.0
    %545 = vmatprep.subr.mxu0 0.0
    %546 = vmatpush2.msra.mxu0 0.0
    %547 = vmatprep.subr.mxu0 0.0
    %548 = vmatpush2.msra.mxu0 0.0
    %549 = vmatprep.mubr.f32.mxu0 0.0
    %550 = vmatmul.mubr.f32.gmra.mxu0 %v483
    %v551 = vpop.f32.mrf.mxu0
    %v552 = vadd.f32 0.0, %v551
    %v553 = vpop.f32.mrf.mxu0
    %554 = vdwg.mxu0
    %s555 = scalar_lea.vmem [#allocation2], 896
    %v556 = vld [vmem:[%s555] sm:$0xff]
    %v557 = vld [vmem:[%s555 + $0x8] sm:$0xff]
    %v558 = vld [vmem:[%s555 + $0x10] sm:$0xff]
    %v559 = vld [vmem:[%s555 + $0x18] sm:$0xff]
    %v560 = vld [vmem:[%s555 + $0x20] sm:$0xff]
    %v561 = vld [vmem:[%s555 + $0x28] sm:$0xff]
    %v562 = vld [vmem:[%s555 + $0x30] sm:$0xff]
    %v563 = vld [vmem:[%s555 + $0x38] sm:$0xff]
    %v564 = vld [vmem:[%s555 + $0x40] sm:$0xff]
    %v565 = vld [vmem:[%s555 + $0x48] sm:$0xff]
    %v566 = vld [vmem:[%s555 + $0x50] sm:$0xff]
    %v567 = vld [vmem:[%s555 + $0x58] sm:$0xff]
    %v568 = vld [vmem:[%s555 + $0x60] sm:$0xff]
    %v569 = vld [vmem:[%s555 + $0x68] sm:$0xff]
    %v570 = vld [vmem:[%s555 + $0x70] sm:$0xff]
    %v571 = vld [vmem:[%s555 + $0x78] sm:$0xff]
    %572 = vmatprep.subr.mxu0 0.0
    %573 = vmatpush1.msra.mxu0 %v571
    %574 = vmatprep.subr.mxu0 0.0
    %575 = vmatpush1.msra.mxu0 %v570
    %576 = vmatprep.subr.mxu0 0.0
    %577 = vmatpush1.msra.mxu0 %v569
    %578 = vmatprep.subr.mxu0 0.0
    %579 = vmatpush1.msra.mxu0 %v568
    %580 = vmatprep.subr.mxu0 0.0
    %581 = vmatpush1.msra.mxu0 %v567
    %582 = vmatprep.subr.mxu0 0.0
    %583 = vmatpush1.msra.mxu0 %v566
    %584 = vmatprep.subr.mxu0 0.0
    %585 = vmatpush1.msra.mxu0 %v565
    %586 = vmatprep.subr.mxu0 0.0
    %587 = vmatpush1.msra.mxu0 %v564
    %588 = vmatprep.subr.mxu0 0.0
    %589 = vmatpush1.msra.mxu0 %v563
    %590 = vmatprep.subr.mxu0 0.0
    %591 = vmatpush1.msra.mxu0 %v562
    %592 = vmatprep.subr.mxu0 0.0
    %593 = vmatpush1.msra.mxu0 %v561
    %594 = vmatprep.subr.mxu0 0.0
    %595 = vmatpush1.msra.mxu0 %v560
    %596 = vmatprep.subr.mxu0 0.0
    %597 = vmatpush1.msra.mxu0 %v559
    %598 = vmatprep.subr.mxu0 0.0
    %599 = vmatpush1.msra.mxu0 %v558
    %600 = vmatprep.subr.mxu0 0.0
    %601 = vmatpush1.msra.mxu0 %v557
    %602 = vmatprep.subr.mxu0 0.0
    %603 = vmatpush1.msra.mxu0 %v556
    %604 = vmatprep.subr.mxu0 0.0
    %605 = vmatpush2.msra.mxu0 0.0
    %606 = vmatprep.subr.mxu0 0.0
    %607 = vmatpush2.msra.mxu0 0.0
    %608 = vmatprep.subr.mxu0 0.0
    %609 = vmatpush2.msra.mxu0 0.0
    %610 = vmatprep.subr.mxu0 0.0
    %611 = vmatpush2.msra.mxu0 0.0
    %612 = vmatprep.subr.mxu0 0.0
    %613 = vmatpush2.msra.mxu0 0.0
    %614 = vmatprep.subr.mxu0 0.0
    %615 = vmatpush2.msra.mxu0 0.0
    %616 = vmatprep.subr.mxu0 0.0
    %617 = vmatpush2.msra.mxu0 0.0
    %618 = vmatprep.subr.mxu0 0.0
    %619 = vmatpush2.msra.mxu0 0.0
    %620 = vmatprep.subr.mxu0 0.0
    %621 = vmatpush2.msra.mxu0 0.0
    %622 = vmatprep.subr.mxu0 0.0
    %623 = vmatpush2.msra.mxu0 0.0
    %624 = vmatprep.subr.mxu0 0.0
    %625 = vmatpush2.msra.mxu0 0.0
    %626 = vmatprep.subr.mxu0 0.0
    %627 = vmatpush2.msra.mxu0 0.0
    %628 = vmatprep.subr.mxu0 0.0
    %629 = vmatpush2.msra.mxu0 0.0
    %630 = vmatprep.subr.mxu0 0.0
    %631 = vmatpush2.msra.mxu0 0.0
    %632 = vmatprep.subr.mxu0 0.0
    %633 = vmatpush2.msra.mxu0 0.0
    %634 = vmatprep.subr.mxu0 0.0
    %635 = vmatpush2.msra.mxu0 0.0
    %636 = vmatprep.mubr.f32.mxu0 0.0
    %637 = vmatmul.mubr.f32.gmra.mxu0 %v552
    %v638 = vpop.f32.mrf.mxu0
    %v639 = vadd.f32 0.0, %v638
    %v640 = vpop.f32.mrf.mxu0
    %641 = vdwg.mxu0
    %v642 = vadd.f32 %v132, %v639
    %s643 = scalar_lea.vmem [#allocation2], 512
    %v644 = vld [vmem:[%s643] sm:$0xff]
    %v645 = vld [vmem:[%s643 + $0x8] sm:$0xff]
    %v646 = vld [vmem:[%s643 + $0x10] sm:$0xff]
    %v647 = vld [vmem:[%s643 + $0x18] sm:$0xff]
    %v648 = vld [vmem:[%s643 + $0x20] sm:$0xff]
    %v649 = vld [vmem:[%s643 + $0x28] sm:$0xff]
    %v650 = vld [vmem:[%s643 + $0x30] sm:$0xff]
    %v651 = vld [vmem:[%s643 + $0x38] sm:$0xff]
    %v652 = vld [vmem:[%s643 + $0x40] sm:$0xff]
    %v653 = vld [vmem:[%s643 + $0x48] sm:$0xff]
    %v654 = vld [vmem:[%s643 + $0x50] sm:$0xff]
    %v655 = vld [vmem:[%s643 + $0x58] sm:$0xff]
    %v656 = vld [vmem:[%s643 + $0x60] sm:$0xff]
    %v657 = vld [vmem:[%s643 + $0x68] sm:$0xff]
    %v658 = vld [vmem:[%s643 + $0x70] sm:$0xff]
    %v659 = vld [vmem:[%s643 + $0x78] sm:$0xff]
    %s660 = scalar_lea.vmem [#allocation5], 32
    %v661 = vld [vmem:[%s660] sm:$0xff]
    %662 = vmatprep.subr.mxu0 0.0
    %663 = vmatpush1.msra.mxu0 %v659
    %664 = vmatprep.subr.mxu0 0.0
    %665 = vmatpush1.msra.mxu0 %v658
    %666 = vmatprep.subr.mxu0 0.0
    %667 = vmatpush1.msra.mxu0 %v657
    %668 = vmatprep.subr.mxu0 0.0
    %669 = vmatpush1.msra.mxu0 %v656
    %670 = vmatprep.subr.mxu0 0.0
    %671 = vmatpush1.msra.mxu0 %v655
    %672 = vmatprep.subr.mxu0 0.0
    %673 = vmatpush1.msra.mxu0 %v654
    %674 = vmatprep.subr.mxu0 0.0
    %675 = vmatpush1.msra.mxu0 %v653
    %676 = vmatprep.subr.mxu0 0.0
    %677 = vmatpush1.msra.mxu0 %v652
    %678 = vmatprep.subr.mxu0 0.0
    %679 = vmatpush1.msra.mxu0 %v651
    %680 = vmatprep.subr.mxu0 0.0
    %681 = vmatpush1.msra.mxu0 %v650
    %682 = vmatprep.subr.mxu0 0.0
    %683 = vmatpush1.msra.mxu0 %v649
    %684 = vmatprep.subr.mxu0 0.0
    %685 = vmatpush1.msra.mxu0 %v648
    %686 = vmatprep.subr.mxu0 0.0
    %687 = vmatpush1.msra.mxu0 %v647
    %688 = vmatprep.subr.mxu0 0.0
    %689 = vmatpush1.msra.mxu0 %v646
    %690 = vmatprep.subr.mxu0 0.0
    %691 = vmatpush1.msra.mxu0 %v645
    %692 = vmatprep.subr.mxu0 0.0
    %693 = vmatpush1.msra.mxu0 %v644
    %694 = vmatprep.subr.mxu0 0.0
    %695 = vmatpush2.msra.mxu0 0.0
    %696 = vmatprep.subr.mxu0 0.0
    %697 = vmatpush2.msra.mxu0 0.0
    %698 = vmatprep.subr.mxu0 0.0
    %699 = vmatpush2.msra.mxu0 0.0
    %700 = vmatprep.subr.mxu0 0.0
    %701 = vmatpush2.msra.mxu0 0.0
    %702 = vmatprep.subr.mxu0 0.0
    %703 = vmatpush2.msra.mxu0 0.0
    %704 = vmatprep.subr.mxu0 0.0
    %705 = vmatpush2.msra.mxu0 0.0
    %706 = vmatprep.subr.mxu0 0.0
    %707 = vmatpush2.msra.mxu0 0.0
    %708 = vmatprep.subr.mxu0 0.0
    %709 = vmatpush2.msra.mxu0 0.0
    %710 = vmatprep.subr.mxu0 0.0
    %711 = vmatpush2.msra.mxu0 0.0
    %712 = vmatprep.subr.mxu0 0.0
    %713 = vmatpush2.msra.mxu0 0.0
    %714 = vmatprep.subr.mxu0 0.0
    %715 = vmatpush2.msra.mxu0 0.0
    %716 = vmatprep.subr.mxu0 0.0
    %717 = vmatpush2.msra.mxu0 0.0
    %718 = vmatprep.subr.mxu0 0.0
    %719 = vmatpush2.msra.mxu0 0.0
    %720 = vmatprep.subr.mxu0 0.0
    %721 = vmatpush2.msra.mxu0 0.0
    %722 = vmatprep.subr.mxu0 0.0
    %723 = vmatpush2.msra.mxu0 0.0
    %724 = vmatprep.subr.mxu0 0.0
    %725 = vmatpush2.msra.mxu0 0.0
    %726 = vmatprep.mubr.f32.mxu0 0.0
    %727 = vmatmul.mubr.f32.gmra.mxu0 %v128
    %v728 = vpop.f32.mrf.mxu0
    %v729 = vadd.f32 %v661, %v728
    %v730 = vpop.f32.mrf.mxu0
    %731 = vdwg.mxu0
    %s732 = scalar_lea.vmem [#allocation2], 640
    %v733 = vld [vmem:[%s732] sm:$0xff]
    %v734 = vld [vmem:[%s732 + $0x8] sm:$0xff]
    %v735 = vld [vmem:[%s732 + $0x10] sm:$0xff]
    %v736 = vld [vmem:[%s732 + $0x18] sm:$0xff]
    %v737 = vld [vmem:[%s732 + $0x20] sm:$0xff]
    %v738 = vld [vmem:[%s732 + $0x28] sm:$0xff]
    %v739 = vld [vmem:[%s732 + $0x30] sm:$0xff]
    %v740 = vld [vmem:[%s732 + $0x38] sm:$0xff]
    %v741 = vld [vmem:[%s732 + $0x40] sm:$0xff]
    %v742 = vld [vmem:[%s732 + $0x48] sm:$0xff]
    %v743 = vld [vmem:[%s732 + $0x50] sm:$0xff]
    %v744 = vld [vmem:[%s732 + $0x58] sm:$0xff]
    %v745 = vld [vmem:[%s732 + $0x60] sm:$0xff]
    %v746 = vld [vmem:[%s732 + $0x68] sm:$0xff]
    %v747 = vld [vmem:[%s732 + $0x70] sm:$0xff]
    %v748 = vld [vmem:[%s732 + $0x78] sm:$0xff]
    %s749 = scalar_lea.vmem [#allocation5], 40
    %v750 = vld [vmem:[%s749] sm:$0xff]
    %751 = vmatprep.subr.mxu0 0.0
    %752 = vmatpush1.msra.mxu0 %v748
    %753 = vmatprep.subr.mxu0 0.0
    %754 = vmatpush1.msra.mxu0 %v747
    %755 = vmatprep.subr.mxu0 0.0
    %756 = vmatpush1.msra.mxu0 %v746
    %757 = vmatprep.subr.mxu0 0.0
    %758 = vmatpush1.msra.mxu0 %v745
    %759 = vmatprep.subr.mxu0 0.0
    %760 = vmatpush1.msra.mxu0 %v744
    %761 = vmatprep.subr.mxu0 0.0
    %762 = vmatpush1.msra.mxu0 %v743
    %763 = vmatprep.subr.mxu0 0.0
    %764 = vmatpush1.msra.mxu0 %v742
    %765 = vmatprep.subr.mxu0 0.0
    %766 = vmatpush1.msra.mxu0 %v741
    %767 = vmatprep.subr.mxu0 0.0
    %768 = vmatpush1.msra.mxu0 %v740
    %769 = vmatprep.subr.mxu0 0.0
    %770 = vmatpush1.msra.mxu0 %v739
    %771 = vmatprep.subr.mxu0 0.0
    %772 = vmatpush1.msra.mxu0 %v738
    %773 = vmatprep.subr.mxu0 0.0
    %774 = vmatpush1.msra.mxu0 %v737
    %775 = vmatprep.subr.mxu0 0.0
    %776 = vmatpush1.msra.mxu0 %v736
    %777 = vmatprep.subr.mxu0 0.0
    %778 = vmatpush1.msra.mxu0 %v735
    %779 = vmatprep.subr.mxu0 0.0
    %780 = vmatpush1.msra.mxu0 %v734
    %781 = vmatprep.subr.mxu0 0.0
    %782 = vmatpush1.msra.mxu0 %v733
    %783 = vmatprep.subr.mxu0 0.0
    %784 = vmatpush2.msra.mxu0 0.0
    %785 = vmatprep.subr.mxu0 0.0
    %786 = vmatpush2.msra.mxu0 0.0
    %787 = vmatprep.subr.mxu0 0.0
    %788 = vmatpush2.msra.mxu0 0.0
    %789 = vmatprep.subr.mxu0 0.0
    %790 = vmatpush2.msra.mxu0 0.0
    %791 = vmatprep.subr.mxu0 0.0
    %792 = vmatpush2.msra.mxu0 0.0
    %793 = vmatprep.subr.mxu0 0.0
    %794 = vmatpush2.msra.mxu0 0.0
    %795 = vmatprep.subr.mxu0 0.0
    %796 = vmatpush2.msra.mxu0 0.0
    %797 = vmatprep.subr.mxu0 0.0
    %798 = vmatpush2.msra.mxu0 0.0
    %799 = vmatprep.subr.mxu0 0.0
    %800 = vmatpush2.msra.mxu0 0.0
    %801 = vmatprep.subr.mxu0 0.0
    %802 = vmatpush2.msra.mxu0 0.0
    %803 = vmatprep.subr.mxu0 0.0
    %804 = vmatpush2.msra.mxu0 0.0
    %805 = vmatprep.subr.mxu0 0.0
    %806 = vmatpush2.msra.mxu0 0.0
    %807 = vmatprep.subr.mxu0 0.0
    %808 = vmatpush2.msra.mxu0 0.0
    %809 = vmatprep.subr.mxu0 0.0
    %810 = vmatpush2.msra.mxu0 0.0
    %811 = vmatprep.subr.mxu0 0.0
    %812 = vmatpush2.msra.mxu0 0.0
    %813 = vmatprep.subr.mxu0 0.0
    %814 = vmatpush2.msra.mxu0 0.0
    %815 = vmatprep.mubr.f32.mxu0 0.0
    %816 = vmatmul.mubr.f32.gmra.mxu0 %v128
    %v817 = vpop.f32.mrf.mxu0
    %v818 = vadd.f32 %v750, %v817
    %v819 = vpop.f32.mrf.mxu0
    %820 = vdwg.mxu0
    %s821 = scalar_lea.vmem [#allocation2], 768
    %v822 = vld [vmem:[%s821] sm:$0xff]
    %v823 = vld [vmem:[%s821 + $0x8] sm:$0xff]
    %v824 = vld [vmem:[%s821 + $0x10] sm:$0xff]
    %v825 = vld [vmem:[%s821 + $0x18] sm:$0xff]
    %v826 = vld [vmem:[%s821 + $0x20] sm:$0xff]
    %v827 = vld [vmem:[%s821 + $0x28] sm:$0xff]
    %v828 = vld [vmem:[%s821 + $0x30] sm:$0xff]
    %v829 = vld [vmem:[%s821 + $0x38] sm:$0xff]
    %v830 = vld [vmem:[%s821 + $0x40] sm:$0xff]
    %v831 = vld [vmem:[%s821 + $0x48] sm:$0xff]
    %v832 = vld [vmem:[%s821 + $0x50] sm:$0xff]
    %v833 = vld [vmem:[%s821 + $0x58] sm:$0xff]
    %v834 = vld [vmem:[%s821 + $0x60] sm:$0xff]
    %v835 = vld [vmem:[%s821 + $0x68] sm:$0xff]
    %v836 = vld [vmem:[%s821 + $0x70] sm:$0xff]
    %v837 = vld [vmem:[%s821 + $0x78] sm:$0xff]
    %s838 = scalar_lea.vmem [#allocation5], 48
    %v839 = vld [vmem:[%s838] sm:$0xff]
    %840 = vmatprep.subr.mxu0 0.0
    %841 = vmatpush1.msra.mxu0 %v837
    %842 = vmatprep.subr.mxu0 0.0
    %843 = vmatpush1.msra.mxu0 %v836
    %844 = vmatprep.subr.mxu0 0.0
    %845 = vmatpush1.msra.mxu0 %v835
    %846 = vmatprep.subr.mxu0 0.0
    %847 = vmatpush1.msra.mxu0 %v834
    %848 = vmatprep.subr.mxu0 0.0
    %849 = vmatpush1.msra.mxu0 %v833
    %850 = vmatprep.subr.mxu0 0.0
    %851 = vmatpush1.msra.mxu0 %v832
    %852 = vmatprep.subr.mxu0 0.0
    %853 = vmatpush1.msra.mxu0 %v831
    %854 = vmatprep.subr.mxu0 0.0
    %855 = vmatpush1.msra.mxu0 %v830
    %856 = vmatprep.subr.mxu0 0.0
    %857 = vmatpush1.msra.mxu0 %v829
    %858 = vmatprep.subr.mxu0 0.0
    %859 = vmatpush1.msra.mxu0 %v828
    %860 = vmatprep.subr.mxu0 0.0
    %861 = vmatpush1.msra.mxu0 %v827
    %862 = vmatprep.subr.mxu0 0.0
    %863 = vmatpush1.msra.mxu0 %v826
    %864 = vmatprep.subr.mxu0 0.0
    %865 = vmatpush1.msra.mxu0 %v825
    %866 = vmatprep.subr.mxu0 0.0
    %867 = vmatpush1.msra.mxu0 %v824
    %868 = vmatprep.subr.mxu0 0.0
    %869 = vmatpush1.msra.mxu0 %v823
    %870 = vmatprep.subr.mxu0 0.0
    %871 = vmatpush1.msra.mxu0 %v822
    %872 = vmatprep.subr.mxu0 0.0
    %873 = vmatpush2.msra.mxu0 0.0
    %874 = vmatprep.subr.mxu0 0.0
    %875 = vmatpush2.msra.mxu0 0.0
    %876 = vmatprep.subr.mxu0 0.0
    %877 = vmatpush2.msra.mxu0 0.0
    %878 = vmatprep.subr.mxu0 0.0
    %879 = vmatpush2.msra.mxu0 0.0
    %880 = vmatprep.subr.mxu0 0.0
    %881 = vmatpush2.msra.mxu0 0.0
    %882 = vmatprep.subr.mxu0 0.0
    %883 = vmatpush2.msra.mxu0 0.0
    %884 = vmatprep.subr.mxu0 0.0
    %885 = vmatpush2.msra.mxu0 0.0
    %886 = vmatprep.subr.mxu0 0.0
    %887 = vmatpush2.msra.mxu0 0.0
    %888 = vmatprep.subr.mxu0 0.0
    %889 = vmatpush2.msra.mxu0 0.0
    %890 = vmatprep.subr.mxu0 0.0
    %891 = vmatpush2.msra.mxu0 0.0
    %892 = vmatprep.subr.mxu0 0.0
    %893 = vmatpush2.msra.mxu0 0.0
    %894 = vmatprep.subr.mxu0 0.0
    %895 = vmatpush2.msra.mxu0 0.0
    %896 = vmatprep.subr.mxu0 0.0
    %897 = vmatpush2.msra.mxu0 0.0
    %898 = vmatprep.subr.mxu0 0.0
    %899 = vmatpush2.msra.mxu0 0.0
    %900 = vmatprep.subr.mxu0 0.0
    %901 = vmatpush2.msra.mxu0 0.0
    %902 = vmatprep.subr.mxu0 0.0
    %903 = vmatpush2.msra.mxu0 0.0
    %904 = vmatprep.mubr.f32.mxu0 0.0
    %905 = vmatmul.mubr.f32.gmra.mxu0 %v128
    %v906 = vpop.f32.mrf.mxu0
    %v907 = vadd.f32 %v839, %v906
    %v908 = vpop.f32.mrf.mxu0
    %909 = vdwg.mxu0
    %910 = vmatprep.subr.mxu0 0.0
    %911 = vmatpush1.xpose.msra.mxu0 0.0
    %912 = vmatprep.subr.mxu0 0.0
    %913 = vmatpush1.xpose.msra.mxu0 0.0
    %914 = vmatprep.subr.mxu0 0.0
    %915 = vmatpush1.xpose.msra.mxu0 0.0
    %916 = vmatprep.subr.mxu0 0.0
    %917 = vmatpush1.xpose.msra.mxu0 0.0
    %918 = vmatprep.subr.mxu0 0.0
    %919 = vmatpush1.xpose.msra.mxu0 0.0
    %920 = vmatprep.subr.mxu0 0.0
    %921 = vmatpush1.xpose.msra.mxu0 0.0
    %922 = vmatprep.subr.mxu0 0.0
    %923 = vmatpush1.xpose.msra.mxu0 0.0
    %924 = vmatprep.subr.mxu0 0.0
    %925 = vmatpush1.xpose.msra.mxu0 0.0
    %926 = vmatprep.subr.mxu0 0.0
    %927 = vmatpush1.xpose.msra.mxu0 0.0
    %928 = vmatprep.subr.mxu0 0.0
    %929 = vmatpush1.xpose.msra.mxu0 0.0
    %930 = vmatprep.subr.mxu0 0.0
    %931 = vmatpush1.xpose.msra.mxu0 0.0
    %932 = vmatprep.subr.mxu0 0.0
    %933 = vmatpush1.xpose.msra.mxu0 0.0
    %934 = vmatprep.subr.mxu0 0.0
    %935 = vmatpush1.xpose.msra.mxu0 0.0
    %936 = vmatprep.subr.mxu0 0.0
    %937 = vmatpush1.xpose.msra.mxu0 0.0
    %938 = vmatprep.subr.mxu0 0.0
    %939 = vmatpush1.xpose.msra.mxu0 0.0
    %940 = vmatprep.subr.mxu0 0.0
    %941 = vmatpush1.xpose.msra.mxu0 %v818
    %942 = vmatprep.subr.mxu0 0.0
    %943 = vmatpush2.xpose.msra.mxu0 0.0
    %944 = vmatprep.subr.mxu0 0.0
    %945 = vmatpush2.xpose.msra.mxu0 0.0
    %946 = vmatprep.subr.mxu0 0.0
    %947 = vmatpush2.xpose.msra.mxu0 0.0
    %948 = vmatprep.subr.mxu0 0.0
    %949 = vmatpush2.xpose.msra.mxu0 0.0
    %950 = vmatprep.subr.mxu0 0.0
    %951 = vmatpush2.xpose.msra.mxu0 0.0
    %952 = vmatprep.subr.mxu0 0.0
    %953 = vmatpush2.xpose.msra.mxu0 0.0
    %954 = vmatprep.subr.mxu0 0.0
    %955 = vmatpush2.xpose.msra.mxu0 0.0
    %956 = vmatprep.subr.mxu0 0.0
    %957 = vmatpush2.xpose.msra.mxu0 0.0
    %958 = vmatprep.subr.mxu0 0.0
    %959 = vmatpush2.xpose.msra.mxu0 0.0
    %960 = vmatprep.subr.mxu0 0.0
    %961 = vmatpush2.xpose.msra.mxu0 0.0
    %962 = vmatprep.subr.mxu0 0.0
    %963 = vmatpush2.xpose.msra.mxu0 0.0
    %964 = vmatprep.subr.mxu0 0.0
    %965 = vmatpush2.xpose.msra.mxu0 0.0
    %966 = vmatprep.subr.mxu0 0.0
    %967 = vmatpush2.xpose.msra.mxu0 0.0
    %968 = vmatprep.subr.mxu0 0.0
    %969 = vmatpush2.xpose.msra.mxu0 0.0
    %970 = vmatprep.subr.mxu0 0.0
    %971 = vmatpush2.xpose.msra.mxu0 0.0
    %972 = vmatprep.subr.mxu0 0.0
    %973 = vmatpush2.xpose.msra.mxu0 0.0
    %974 = vmatprep.mubr.f32.mxu0 0.0
    %975 = vmatmul.mubr.f32.gmra.mxu0 %v729
    %v976 = vpop.f32.mrf.mxu0
    %v977 = vadd.f32 0.0, %v976
    %v978 = vpop.f32.mrf.mxu0
    %979 = vdwg.mxu0
    %v980 = vsel %vm470, %v977, -inf
    %981 = vmax.xlane.f32.xlu0 %v980
    %v982 = vpop.xlane.xlu0 %981
    %v983 = vsub.f32 %v977, %v982
    %v984 = vmul.f32 %v983, 1.442695
    %v985 = vpow.pop %v984
    %v986 = vsel %vm470, %v985, 0.0
    %987 = vadd.xlane.f32.xlu0 %v986
    %v988 = vpop.xlane.xlu0 %987
    %v989 = vrcp.pop %v988
    %v990 = vmul.f32 %v985, %v989
    %v992 = vsel %vm470, %v990, 0
    %994 = vmatprep.subr.mxu0 0.0
    %995 = vmatpush1.msra.mxu0 0.0
    %996 = vmatprep.subr.mxu0 0.0
    %997 = vmatpush1.msra.mxu0 0.0
    %998 = vmatprep.subr.mxu0 0.0
    %999 = vmatpush1.msra.mxu0 0.0
    %1000 = vmatprep.subr.mxu0 0.0
    %1001 = vmatpush1.msra.mxu0 0.0
    %1002 = vmatprep.subr.mxu0 0.0
    %1003 = vmatpush1.msra.mxu0 0.0
    %1004 = vmatprep.subr.mxu0 0.0
    %1005 = vmatpush1.msra.mxu0 0.0
    %1006 = vmatprep.subr.mxu0 0.0
    %1007 = vmatpush1.msra.mxu0 0.0
    %1008 = vmatprep.subr.mxu0 0.0
    %1009 = vmatpush1.msra.mxu0 0.0
    %1010 = vmatprep.subr.mxu0 0.0
    %1011 = vmatpush1.msra.mxu0 0.0
    %1012 = vmatprep.subr.mxu0 0.0
    %1013 = vmatpush1.msra.mxu0 0.0
    %1014 = vmatprep.subr.mxu0 0.0
    %1015 = vmatpush1.msra.mxu0 0.0
    %1016 = vmatprep.subr.mxu0 0.0
    %1017 = vmatpush1.msra.mxu0 0.0
    %1018 = vmatprep.subr.mxu0 0.0
    %1019 = vmatpush1.msra.mxu0 0.0
    %1020 = vmatprep.subr.mxu0 0.0
    %1021 = vmatpush1.msra.mxu0 0.0
    %1022 = vmatprep.subr.mxu0 0.0
    %1023 = vmatpush1.msra.mxu0 0.0
    %1024 = vmatprep.subr.mxu0 0.0
    %1025 = vmatpush1.msra.mxu0 %v907
    %1026 = vmatprep.subr.mxu0 0.0
    %1027 = vmatpush2.msra.mxu0 0.0
    %1028 = vmatprep.subr.mxu0 0.0
    %1029 = vmatpush2.msra.mxu0 0.0
    %1030 = vmatprep.subr.mxu0 0.0
    %1031 = vmatpush2.msra.mxu0 0.0
    %1032 = vmatprep.subr.mxu0 0.0
    %1033 = vmatpush2.msra.mxu0 0.0
    %1034 = vmatprep.subr.mxu0 0.0
    %1035 = vmatpush2.msra.mxu0 0.0
    %1036 = vmatprep.subr.mxu0 0.0
    %1037 = vmatpush2.msra.mxu0 0.0
    %1038 = vmatprep.subr.mxu0 0.0
    %1039 = vmatpush2.msra.mxu0 0.0
    %1040 = vmatprep.subr.mxu0 0.0
    %1041 = vmatpush2.msra.mxu0 0.0
    %1042 = vmatprep.subr.mxu0 0.0
    %1043 = vmatpush2.msra.mxu0 0.0
    %1044 = vmatprep.subr.mxu0 0.0
    %1045 = vmatpush2.msra.mxu0 0.0
    %1046 = vmatprep.subr.mxu0 0.0
    %1047 = vmatpush2.msra.mxu0 0.0
    %1048 = vmatprep.subr.mxu0 0.0
    %1049 = vmatpush2.msra.mxu0 0.0
    %1050 = vmatprep.subr.mxu0 0.0
    %1051 = vmatpush2.msra.mxu0 0.0
    %1052 = vmatprep.subr.mxu0 0.0
    %1053 = vmatpush2.msra.mxu0 0.0
    %1054 = vmatprep.subr.mxu0 0.0
    %1055 = vmatpush2.msra.mxu0 0.0
    %1056 = vmatprep.subr.mxu0 0.0
    %1057 = vmatpush2.msra.mxu0 0.0
    %1058 = vmatprep.mubr.f32.mxu0 0.0
    %1059 = vmatmul.mubr.f32.gmra.mxu0 %v992
    %v1060 = vpop.f32.mrf.mxu0
    %v1061 = vadd.f32 0.0, %v1060
    %v1062 = vpop.f32.mrf.mxu0
    %1063 = vdwg.mxu0
    %s1064 = scalar_lea.vmem [#allocation2], 1024
    %v1065 = vld [vmem:[%s1064] sm:$0xff]
    %v1066 = vld [vmem:[%s1064 + $0x8] sm:$0xff]
    %v1067 = vld [vmem:[%s1064 + $0x10] sm:$0xff]
    %v1068 = vld [vmem:[%s1064 + $0x18] sm:$0xff]
    %v1069 = vld [vmem:[%s1064 + $0x20] sm:$0xff]
    %v1070 = vld [vmem:[%s1064 + $0x28] sm:$0xff]
    %v1071 = vld [vmem:[%s1064 + $0x30] sm:$0xff]
    %v1072 = vld [vmem:[%s1064 + $0x38] sm:$0xff]
    %v1073 = vld [vmem:[%s1064 + $0x40] sm:$0xff]
    %v1074 = vld [vmem:[%s1064 + $0x48] sm:$0xff]
    %v1075 = vld [vmem:[%s1064 + $0x50] sm:$0xff]
    %v1076 = vld [vmem:[%s1064 + $0x58] sm:$0xff]
    %v1077 = vld [vmem:[%s1064 + $0x60] sm:$0xff]
    %v1078 = vld [vmem:[%s1064 + $0x68] sm:$0xff]
    %v1079 = vld [vmem:[%s1064 + $0x70] sm:$0xff]
    %v1080 = vld [vmem:[%s1064 + $0x78] sm:$0xff]
    %1081 = vmatprep.subr.mxu0 0.0
    %1082 = vmatpush1.msra.mxu0 %v1080
    %1083 = vmatprep.subr.mxu0 0.0
    %1084 = vmatpush1.msra.mxu0 %v1079
    %1085 = vmatprep.subr.mxu0 0.0
    %1086 = vmatpush1.msra.mxu0 %v1078
    %1087 = vmatprep.subr.mxu0 0.0
    %1088 = vmatpush1.msra.mxu0 %v1077
    %1089 = vmatprep.subr.mxu0 0.0
    %1090 = vmatpush1.msra.mxu0 %v1076
    %1091 = vmatprep.subr.mxu0 0.0
    %1092 = vmatpush1.msra.mxu0 %v1075
    %1093 = vmatprep.subr.mxu0 0.0
    %1094 = vmatpush1.msra.mxu0 %v1074
    %1095 = vmatprep.subr.mxu0 0.0
    %1096 = vmatpush1.msra.mxu0 %v1073
    %1097 = vmatprep.subr.mxu0 0.0
    %1098 = vmatpush1.msra.mxu0 %v1072
    %1099 = vmatprep.subr.mxu0 0.0
    %1100 = vmatpush1.msra.mxu0 %v1071
    %1101 = vmatprep.subr.mxu0 0.0
    %1102 = vmatpush1.msra.mxu0 %v1070
    %1103 = vmatprep.subr.mxu0 0.0
    %1104 = vmatpush1.msra.mxu0 %v1069
    %1105 = vmatprep.subr.mxu0 0.0
    %1106 = vmatpush1.msra.mxu0 %v1068
    %1107 = vmatprep.subr.mxu0 0.0
    %1108 = vmatpush1.msra.mxu0 %v1067
    %1109 = vmatprep.subr.mxu0 0.0
    %1110 = vmatpush1.msra.mxu0 %v1066
    %1111 = vmatprep.subr.mxu0 0.0
    %1112 = vmatpush1.msra.mxu0 %v1065
    %1113 = vmatprep.subr.mxu0 0.0
    %1114 = vmatpush2.msra.mxu0 0.0
    %1115 = vmatprep.subr.mxu0 0.0
    %1116 = vmatpush2.msra.mxu0 0.0
    %1117 = vmatprep.subr.mxu0 0.0
    %1118 = vmatpush2.msra.mxu0 0.0
    %1119 = vmatprep.subr.mxu0 0.0
    %1120 = vmatpush2.msra.mxu0 0.0
    %1121 = vmatprep.subr.mxu0 0.0
    %1122 = vmatpush2.msra.mxu0 0.0
    %1123 = vmatprep.subr.mxu0 0.0
    %1124 = vmatpush2.msra.mxu0 0.0
    %1125 = vmatprep.subr.mxu0 0.0
    %1126 = vmatpush2.msra.mxu0 0.0
    %1127 = vmatprep.subr.mxu0 0.0
    %1128 = vmatpush2.msra.mxu0 0.0
    %1129 = vmatprep.subr.mxu0 0.0
    %1130 = vmatpush2.msra.mxu0 0.0
    %1131 = vmatprep.subr.mxu0 0.0
    %1132 = vmatpush2.msra.mxu0 0.0
    %1133 = vmatprep.subr.mxu0 0.0
    %1134 = vmatpush2.msra.mxu0 0.0
    %1135 = vmatprep.subr.mxu0 0.0
    %1136 = vmatpush2.msra.mxu0 0.0
    %1137 = vmatprep.subr.mxu0 0.0
    %1138 = vmatpush2.msra.mxu0 0.0
    %1139 = vmatprep.subr.mxu0 0.0
    %1140 = vmatpush2.msra.mxu0 0.0
    %1141 = vmatprep.subr.mxu0 0.0
    %1142 = vmatpush2.msra.mxu0 0.0
    %1143 = vmatprep.subr.mxu0 0.0
    %1144 = vmatpush2.msra.mxu0 0.0
    %1145 = vmatprep.mubr.f32.mxu0 0.0
    %1146 = vmatmul.mubr.f32.gmra.mxu0 %v1061
    %v1147 = vpop.f32.mrf.mxu0
    %v1148 = vadd.f32 0.0, %v1147
    %v1149 = vpop.f32.mrf.mxu0
    %1150 = vdwg.mxu0
    %v1151 = vadd.f32 %v642, %v1148
    %v1152 = vadd.f32 %v128, %v1151
    %s1153 = scalar_lea.vmem [#allocation5], 64
    %v1154 = vld [vmem:[%s1153] sm:$0xff]
    %s1155 = scalar_lea.vmem [#allocation5], 72
    %v1156 = vld [vmem:[%s1155] sm:$0xff]
    %1157 = vadd.xlane.f32.xlu0 %v1152
    %v1158 = vpop.xlane.xlu0 %1157
    %v1159 = vmul.f32 %v1158, 0.125
    %v1160 = vmul.f32 %v1152, %v1152
    %1161 = vadd.xlane.f32.xlu0 %v1160
    %v1162 = vpop.xlane.xlu0 %1161
    %v1163 = vmul.f32 %v1162, 0.125
    %v1164 = vmul.f32 %v1159, %v1159
    %v1165 = vsub.f32 %v1163, %v1164
    %v1166 = vsub.f32 %v1152, %v1159
    %v1167 = vadd.f32 %v1165, 1e-05
    %v1168 = vrsqrt.pop %v1167
    %v1169 = vmul.f32 %v1166, %v1168
    %v1170 = vmul.f32 %v1169, %v1154
    %v1171 = vadd.f32 %v1170, %v1156
    %s1172 = scalar_lea.vmem [#allocation2], 1152
    %v1173 = vld [vmem:[%s1172] sm:$0xff]
    %v1174 = vld [vmem:[%s1172 + $0x8] sm:$0xff]
    %v1175 = vld [vmem:[%s1172 + $0x10] sm:$0xff]
    %v1176 = vld [vmem:[%s1172 + $0x18] sm:$0xff]
    %v1177 = vld [vmem:[%s1172 + $0x20] sm:$0xff]
    %v1178 = vld [vmem:[%s1172 + $0x28] sm:$0xff]
    %v1179 = vld [vmem:[%s1172 + $0x30] sm:$0xff]
    %v1180 = vld [vmem:[%s1172 + $0x38] sm:$0xff]
    %v1181 = vld [vmem:[%s1172 + $0x40] sm:$0xff]
    %v1182 = vld [vmem:[%s1172 + $0x48] sm:$0xff]
    %v1183 = vld [vmem:[%s1172 + $0x50] sm:$0xff]
    %v1184 = vld [vmem:[%s1172 + $0x58] sm:$0xff]
    %v1185 = vld [vmem:[%s1172 + $0x60] sm:$0xff]
    %v1186 = vld [vmem:[%s1172 + $0x68] sm:$0xff]
    %v1187 = vld [vmem:[%s1172 + $0x70] sm:$0xff]
    %v1188 = vld [vmem:[%s1172 + $0x78] sm:$0xff]
    %s1189 = scalar_lea.vmem [#allocation5], 96
    %v1190 = vld [vmem:[%s1189] sm:$0xff]
    %1191 = vmatprep.subr.mxu0 0.0
    %1192 = vmatpush1.msra.mxu0 %v1188
    %1193 = vmatprep.subr.mxu0 0.0
    %1194 = vmatpush1.msra.mxu0 %v1187
    %1195 = vmatprep.subr.mxu0 0.0
    %1196 = vmatpush1.msra.mxu0 %v1186
    %1197 = vmatprep.subr.mxu0 0.0
    %1198 = vmatpush1.msra.mxu0 %v1185
    %1199 = vmatprep.subr.mxu0 0.0
    %1200 = vmatpush1.msra.mxu0 %v1184
    %1201 = vmatprep.subr.mxu0 0.0
    %1202 = vmatpush1.msra.mxu0 %v1183
    %1203 = vmatprep.subr.mxu0 0.0
    %1204 = vmatpush1.msra.mxu0 %v1182
    %1205 = vmatprep.subr.mxu0 0.0
    %1206 = vmatpush1.msra.mxu0 %v1181
    %1207 = vmatprep.subr.mxu0 0.0
    %1208 = vmatpush1.msra.mxu0 %v1180
    %1209 = vmatprep.subr.mxu0 0.0
    %1210 = vmatpush1.msra.mxu0 %v1179
    %1211 = vmatprep.subr.mxu0 0.0
    %1212 = vmatpush1.msra.mxu0 %v1178
    %1213 = vmatprep.subr.mxu0 0.0
    %1214 = vmatpush1.msra.mxu0 %v1177
    %1215 = vmatprep.subr.mxu0 0.0
    %1216 = vmatpush1.msra.mxu0 %v1176
    %1217 = vmatprep.subr.mxu0 0.0
    %1218 = vmatpush1.msra.mxu0 %v1175
    %1219 = vmatprep.subr.mxu0 0.0
    %1220 = vmatpush1.msra.mxu0 %v1174
    %1221 = vmatprep.subr.mxu0 0.0
    %1222 = vmatpush1.msra.mxu0 %v1173
    %1223 = vmatprep.subr.mxu0 0.0
    %1224 = vmatpush2.msra.mxu0 0.0
    %1225 = vmatprep.subr.mxu0 0.0
    %1226 = vmatpush2.msra.mxu0 0.0
    %1227 = vmatprep.subr.mxu0 0.0
    %1228 = vmatpush2.msra.mxu0 0.0
    %1229 = vmatprep.subr.mxu0 0.0
    %1230 = vmatpush2.msra.mxu0 0.0
    %1231 = vmatprep.subr.mxu0 0.0
    %1232 = vmatpush2.msra.mxu0 0.0
    %1233 = vmatprep.subr.mxu0 0.0
    %1234 = vmatpush2.msra.mxu0 0.0
    %1235 = vmatprep.subr.mxu0 0.0
    %1236 = vmatpush2.msra.mxu0 0.0
    %1237 = vmatprep.subr.mxu0 0.0
    %1238 = vmatpush2.msra.mxu0 0.0
    %1239 = vmatprep.subr.mxu0 0.0
    %1240 = vmatpush2.msra.mxu0 0.0
    %1241 = vmatprep.subr.mxu0 0.0
    %1242 = vmatpush2.msra.mxu0 0.0
    %1243 = vmatprep.subr.mxu0 0.0
    %1244 = vmatpush2.msra.mxu0 0.0
    %1245 = vmatprep.subr.mxu0 0.0
    %1246 = vmatpush2.msra.mxu0 0.0
    %1247 = vmatprep.subr.mxu0 0.0
    %1248 = vmatpush2.msra.mxu0 0.0
    %1249 = vmatprep.subr.mxu0 0.0
    %1250 = vmatpush2.msra.mxu0 0.0
    %1251 = vmatprep.subr.mxu0 0.0
    %1252 = vmatpush2.msra.mxu0 0.0
    %1253 = vmatprep.subr.mxu0 0.0
    %1254 = vmatpush2.msra.mxu0 0.0
    %1255 = vmatprep.mubr.f32.mxu0 0.0
    %1256 = vmatmul.mubr.f32.gmra.mxu0 %v1171
    %v1257 = vpop.f32.mrf.mxu0
    %v1258 = vadd.f32 %v1190, %v1257
    %v1259 = vpop.f32.mrf.mxu0
    %1260 = vdwg.mxu0
    %v1261 = vmax.f32 %v1258, 0.0
    %s1262 = scalar_lea.vmem [#allocation2], 1280
    %v1263 = vld [vmem:[%s1262] sm:$0xff]
    %v1264 = vld [vmem:[%s1262 + $0x8] sm:$0xff]
    %v1265 = vld [vmem:[%s1262 + $0x10] sm:$0xff]
    %v1266 = vld [vmem:[%s1262 + $0x18] sm:$0xff]
    %v1267 = vld [vmem:[%s1262 + $0x20] sm:$0xff]
    %v1268 = vld [vmem:[%s1262 + $0x28] sm:$0xff]
    %v1269 = vld [vmem:[%s1262 + $0x30] sm:$0xff]
    %v1270 = vld [vmem:[%s1262 + $0x38] sm:$0xff]
    %v1271 = vld [vmem:[%s1262 + $0x40] sm:$0xff]
    %v1272 = vld [vmem:[%s1262 + $0x48] sm:$0xff]
    %v1273 = vld [vmem:[%s1262 + $0x50] sm:$0xff]
    %v1274 = vld [vmem:[%s1262 + $0x58] sm:$0xff]
    %v1275 = vld [vmem:[%s1262 + $0x60] sm:$0xff]
    %v1276 = vld [vmem:[%s1262 + $0x68] sm:$0xff]
    %v1277 = vld [vmem:[%s1262 + $0x70] sm:$0xff]
    %v1278 = vld [vmem:[%s1262 + $0x78] sm:$0xff]
    %s1279 = scalar_lea.vmem [#allocation5], 104
    %v1280 = vld [vmem:[%s1279] sm:$0xff]
    %1281 = vmatprep.subr.mxu0 0.0
    %1282 = vmatpush1.msra.mxu0 %v1278
    %1283 = vmatprep.subr.mxu0 0.0
    %1284 = vmatpush1.msra.mxu0 %v1277
    %1285 = vmatprep.subr.mxu0 0.0
    %1286 = vmatpush1.msra.mxu0 %v1276
    %1287 = vmatprep.subr.mxu0 0.0
    %1288 = vmatpush1.msra.mxu0 %v1275
    %1289 = vmatprep.subr.mxu0 0.0
    %1290 = vmatpush1.msra.mxu0 %v1274
    %1291 = vmatprep.subr.mxu0 0.0
    %1292 = vmatpush1.msra.mxu0 %v1273
    %1293 = vmatprep.subr.mxu0 0.0
    %1294 = vmatpush1.msra.mxu0 %v1272
    %1295 = vmatprep.subr.mxu0 0.0
    %1296 = vmatpush1.msra.mxu0 %v1271
    %1297 = vmatprep.subr.mxu0 0.0
    %1298 = vmatpush1.msra.mxu0 %v1270
    %1299 = vmatprep.subr.mxu0 0.0
    %1300 = vmatpush1.msra.mxu0 %v1269
    %1301 = vmatprep.subr.mxu0 0.0
    %1302 = vmatpush1.msra.mxu0 %v1268
    %1303 = vmatprep.subr.mxu0 0.0
    %1304 = vmatpush1.msra.mxu0 %v1267
    %1305 = vmatprep.subr.mxu0 0.0
    %1306 = vmatpush1.msra.mxu0 %v1266
    %1307 = vmatprep.subr.mxu0 0.0
    %1308 = vmatpush1.msra.mxu0 %v1265
    %1309 = vmatprep.subr.mxu0 0.0
    %1310 = vmatpush1.msra.mxu0 %v1264
    %1311 = vmatprep.subr.mxu0 0.0
    %1312 = vmatpush1.msra.mxu0 %v1263
    %1313 = vmatprep.subr.mxu0 0.0
    %1314 = vmatpush2.msra.mxu0 0.0
    %1315 = vmatprep.subr.mxu0 0.0
    %1316 = vmatpush2.msra.mxu0 0.0
    %1317 = vmatprep.subr.mxu0 0.0
    %1318 = vmatpush2.msra.mxu0 0.0
    %1319 = vmatprep.subr.mxu0 0.0
    %1320 = vmatpush2.msra.mxu0 0.0
    %1321 = vmatprep.subr.mxu0 0.0
    %1322 = vmatpush2.msra.mxu0 0.0
    %1323 = vmatprep.subr.mxu0 0.0
    %1324 = vmatpush2.msra.mxu0 0.0
    %1325 = vmatprep.subr.mxu0 0.0
    %1326 = vmatpush2.msra.mxu0 0.0
    %1327 = vmatprep.subr.mxu0 0.0
    %1328 = vmatpush2.msra.mxu0 0.0
    %1329 = vmatprep.subr.mxu0 0.0
    %1330 = vmatpush2.msra.mxu0 0.0
    %1331 = vmatprep.subr.mxu0 0.0
    %1332 = vmatpush2.msra.mxu0 0.0
    %1333 = vmatprep.subr.mxu0 0.0
    %1334 = vmatpush2.msra.mxu0 0.0
    %1335 = vmatprep.subr.mxu0 0.0
    %1336 = vmatpush2.msra.mxu0 0.0
    %1337 = vmatprep.subr.mxu0 0.0
    %1338 = vmatpush2.msra.mxu0 0.0
    %1339 = vmatprep.subr.mxu0 0.0
    %1340 = vmatpush2.msra.mxu0 0.0
    %1341 = vmatprep.subr.mxu0 0.0
    %1342 = vmatpush2.msra.mxu0 0.0
    %1343 = vmatprep.subr.mxu0 0.0
    %1344 = vmatpush2.msra.mxu0 0.0
    %1345 = vmatprep.mubr.f32.mxu0 0.0
    %1346 = vmatmul.mubr.f32.gmra.mxu0 %v1261
    %v1347 = vpop.f32.mrf.mxu0
    %v1348 = vadd.f32 %v1280, %v1347
    %v1349 = vpop.f32.mrf.mxu0
    %1350 = vdwg.mxu0
    %v1351 = vadd.f32 %v1171, %v1348
    %s1352 = scalar_lea.vmem [#allocation5], 80
    %v1353 = vld [vmem:[%s1352] sm:$0xff]
    %s1354 = scalar_lea.vmem [#allocation5], 88
    %v1355 = vld [vmem:[%s1354] sm:$0xff]
    %1356 = vadd.xlane.f32.xlu0 %v1351
    %v1357 = vpop.xlane.xlu0 %1356
    %v1358 = vmul.f32 %v1357, 0.125
    %v1359 = vmul.f32 %v1351, %v1351
    %1360 = vadd.xlane.f32.xlu0 %v1359
    %v1361 = vpop.xlane.xlu0 %1360
    %v1362 = vmul.f32 %v1361, 0.125
    %v1363 = vmul.f32 %v1358, %v1358
    %v1364 = vsub.f32 %v1362, %v1363
    %v1365 = vsub.f32 %v1351, %v1358
    %v1366 = vadd.f32 %v1364, 1e-05
    %v1367 = vrsqrt.pop %v1366
    %v1368 = vmul.f32 %v1365, %v1367
    %v1369 = vmul.f32 %v1368, %v1353
    %v1370 = vadd.f32 %v1369, %v1355
    %s1371 = scalar_lea.vmem [#allocation5], 160
    %v1372 = vld [vmem:[%s1371] sm:$0xff]
    %s1373 = scalar_lea.vmem [#allocation2], 1408
    %v1374 = vld [vmem:[%s1373] sm:$0xff]
    %v1375 = vld [vmem:[%s1373 + $0x8] sm:$0xff]
    %v1376 = vld [vmem:[%s1373 + $0x10] sm:$0xff]
    %v1377 = vld [vmem:[%s1373 + $0x18] sm:$0xff]
    %v1378 = vld [vmem:[%s1373 + $0x20] sm:$0xff]
    %v1379 = vld [vmem:[%s1373 + $0x28] sm:$0xff]
    %v1380 = vld [vmem:[%s1373 + $0x30] sm:$0xff]
    %v1381 = vld [vmem:[%s1373 + $0x38] sm:$0xff]
    %v1382 = vld [vmem:[%s1373 + $0x40] sm:$0xff]
    %v1383 = vld [vmem:[%s1373 + $0x48] sm:$0xff]
    %v1384 = vld [vmem:[%s1373 + $0x50] sm:$0xff]
    %v1385 = vld [vmem:[%s1373 + $0x58] sm:$0xff]
    %v1386 = vld [vmem:[%s1373 + $0x60] sm:$0xff]
    %v1387 = vld [vmem:[%s1373 + $0x68] sm:$0xff]
    %v1388 = vld [vmem:[%s1373 + $0x70] sm:$0xff]
    %v1389 = vld [vmem:[%s1373 + $0x78] sm:$0xff]
    %s1390 = scalar_lea.vmem [#allocation5], 112
    %v1391 = vld [vmem:[%s1390] sm:$0xff]
    %1392 = vmatprep.subr.mxu0 0.0
    %1393 = vmatpush1.msra.mxu0 %v1389
    %1394 = vmatprep.subr.mxu0 0.0
    %1395 = vmatpush1.msra.mxu0 %v1388
    %1396 = vmatprep.subr.mxu0 0.0
    %1397 = vmatpush1.msra.mxu0 %v1387
    %1398 = vmatprep.subr.mxu0 0.0
    %1399 = vmatpush1.msra.mxu0 %v1386
    %1400 = vmatprep.subr.mxu0 0.0
    %1401 = vmatpush1.msra.mxu0 %v1385
    %1402 = vmatprep.subr.mxu0 0.0
    %1403 = vmatpush1.msra.mxu0 %v1384
    %1404 = vmatprep.subr.mxu0 0.0
    %1405 = vmatpush1.msra.mxu0 %v1383
    %1406 = vmatprep.subr.mxu0 0.0
    %1407 = vmatpush1.msra.mxu0 %v1382
    %1408 = vmatprep.subr.mxu0 0.0
    %1409 = vmatpush1.msra.mxu0 %v1381
    %1410 = vmatprep.subr.mxu0 0.0
    %1411 = vmatpush1.msra.mxu0 %v1380
    %1412 = vmatprep.subr.mxu0 0.0
    %1413 = vmatpush1.msra.mxu0 %v1379
    %1414 = vmatprep.subr.mxu0 0.0
    %1415 = vmatpush1.msra.mxu0 %v1378
    %1416 = vmatprep.subr.mxu0 0.0
    %1417 = vmatpush1.msra.mxu0 %v1377
    %1418 = vmatprep.subr.mxu0 0.0
    %1419 = vmatpush1.msra.mxu0 %v1376
    %1420 = vmatprep.subr.mxu0 0.0
    %1421 = vmatpush1.msra.mxu0 %v1375
    %1422 = vmatprep.subr.mxu0 0.0
    %1423 = vmatpush1.msra.mxu0 %v1374
    %1424 = vmatprep.subr.mxu0 0.0
    %1425 = vmatpush2.msra.mxu0 0.0
    %1426 = vmatprep.subr.mxu0 0.0
    %1427 = vmatpush2.msra.mxu0 0.0
    %1428 = vmatprep.subr.mxu0 0.0
    %1429 = vmatpush2.msra.mxu0 0.0
    %1430 = vmatprep.subr.mxu0 0.0
    %1431 = vmatpush2.msra.mxu0 0.0
    %1432 = vmatprep.subr.mxu0 0.0
    %1433 = vmatpush2.msra.mxu0 0.0
    %1434 = vmatprep.subr.mxu0 0.0
    %1435 = vmatpush2.msra.mxu0 0.0
    %1436 = vmatprep.subr.mxu0 0.0
    %1437 = vmatpush2.msra.mxu0 0.0
    %1438 = vmatprep.subr.mxu0 0.0
    %1439 = vmatpush2.msra.mxu0 0.0
    %1440 = vmatprep.subr.mxu0 0.0
    %1441 = vmatpush2.msra.mxu0 0.0
    %1442 = vmatprep.subr.mxu0 0.0
    %1443 = vmatpush2.msra.mxu0 0.0
    %1444 = vmatprep.subr.mxu0 0.0
    %1445 = vmatpush2.msra.mxu0 0.0
    %1446 = vmatprep.subr.mxu0 0.0
    %1447 = vmatpush2.msra.mxu0 0.0
    %1448 = vmatprep.subr.mxu0 0.0
    %1449 = vmatpush2.msra.mxu0 0.0
    %1450 = vmatprep.subr.mxu0 0.0
    %1451 = vmatpush2.msra.mxu0 0.0
    %1452 = vmatprep.subr.mxu0 0.0
    %1453 = vmatpush2.msra.mxu0 0.0
    %1454 = vmatprep.subr.mxu0 0.0
    %1455 = vmatpush2.msra.mxu0 0.0
    %1456 = vmatprep.mubr.f32.mxu0 0.0
    %1457 = vmatmul.mubr.f32.gmra.mxu0 %v1370
    %v1458 = vpop.f32.mrf.mxu0
    %v1459 = vadd.f32 %v1391, %v1458
    %v1460 = vpop.f32.mrf.mxu0
    %1461 = vdwg.mxu0
    %s1462 = scalar_lea.vmem [#allocation2], 1536
    %v1463 = vld [vmem:[%s1462] sm:$0xff]
    %v1464 = vld [vmem:[%s1462 + $0x8] sm:$0xff]
    %v1465 = vld [vmem:[%s1462 + $0x10] sm:$0xff]
    %v1466 = vld [vmem:[%s1462 + $0x18] sm:$0xff]
    %v1467 = vld [vmem:[%s1462 + $0x20] sm:$0xff]
    %v1468 = vld [vmem:[%s1462 + $0x28] sm:$0xff]
    %v1469 = vld [vmem:[%s1462 + $0x30] sm:$0xff]
    %v1470 = vld [vmem:[%s1462 + $0x38] sm:$0xff]
    %v1471 = vld [vmem:[%s1462 + $0x40] sm:$0xff]
    %v1472 = vld [vmem:[%s1462 + $0x48] sm:$0xff]
    %v1473 = vld [vmem:[%s1462 + $0x50] sm:$0xff]
    %v1474 = vld [vmem:[%s1462 + $0x58] sm:$0xff]
    %v1475 = vld [vmem:[%s1462 + $0x60] sm:$0xff]
    %v1476 = vld [vmem:[%s1462 + $0x68] sm:$0xff]
    %v1477 = vld [vmem:[%s1462 + $0x70] sm:$0xff]
    %v1478 = vld [vmem:[%s1462 + $0x78] sm:$0xff]
    %s1479 = scalar_lea.vmem [#allocation5], 120
    %v1480 = vld [vmem:[%s1479] sm:$0xff]
    %1481 = vmatprep.subr.mxu0 0.0
    %1482 = vmatpush1.msra.mxu0 %v1478
    %1483 = vmatprep.subr.mxu0 0.0
    %1484 = vmatpush1.msra.mxu0 %v1477
    %1485 = vmatprep.subr.mxu0 0.0
    %1486 = vmatpush1.msra.mxu0 %v1476
    %1487 = vmatprep.subr.mxu0 0.0
    %1488 = vmatpush1.msra.mxu0 %v1475
    %1489 = vmatprep.subr.mxu0 0.0
    %1490 = vmatpush1.msra.mxu0 %v1474
    %1491 = vmatprep.subr.mxu0 0.0
    %1492 = vmatpush1.msra.mxu0 %v1473
    %1493 = vmatprep.subr.mxu0 0.0
    %1494 = vmatpush1.msra.mxu0 %v1472
    %1495 = vmatprep.subr.mxu0 0.0
    %1496 = vmatpush1.msra.mxu0 %v1471
    %1497 = vmatprep.subr.mxu0 0.0
    %1498 = vmatpush1.msra.mxu0 %v1470
    %1499 = vmatprep.subr.mxu0 0.0
    %1500 = vmatpush1.msra.mxu0 %v1469
    %1501 = vmatprep.subr.mxu0 0.0
    %1502 = vmatpush1.msra.mxu0 %v1468
    %1503 = vmatprep.subr.mxu0 0.0
    %1504 = vmatpush1.msra.mxu0 %v1467
    %1505 = vmatprep.subr.mxu0 0.0
    %1506 = vmatpush1.msra.mxu0 %v1466
    %1507 = vmatprep.subr.mxu0 0.0
    %1508 = vmatpush1.msra.mxu0 %v1465
    %1509 = vmatprep.subr.mxu0 0.0
    %1510 = vmatpush1.msra.mxu0 %v1464
    %1511 = vmatprep.subr.mxu0 0.0
    %1512 = vmatpush1.msra.mxu0 %v1463
    %1513 = vmatprep.subr.mxu0 0.0
    %1514 = vmatpush2.msra.mxu0 0.0
    %1515 = vmatprep.subr.mxu0 0.0
    %1516 = vmatpush2.msra.mxu0 0.0
    %1517 = vmatprep.subr.mxu0 0.0
    %1518 = vmatpush2.msra.mxu0 0.0
    %1519 = vmatprep.subr.mxu0 0.0
    %1520 = vmatpush2.msra.mxu0 0.0
    %1521 = vmatprep.subr.mxu0 0.0
    %1522 = vmatpush2.msra.mxu0 0.0
    %1523 = vmatprep.subr.mxu0 0.0
    %1524 = vmatpush2.msra.mxu0 0.0
    %1525 = vmatprep.subr.mxu0 0.0
    %1526 = vmatpush2.msra.mxu0 0.0
    %1527 = vmatprep.subr.mxu0 0.0
    %1528 = vmatpush2.msra.mxu0 0.0
    %1529 = vmatprep.subr.mxu0 0.0
    %1530 = vmatpush2.msra.mxu0 0.0
    %1531 = vmatprep.subr.mxu0 0.0
    %1532 = vmatpush2.msra.mxu0 0.0
    %1533 = vmatprep.subr.mxu0 0.0
    %1534 = vmatpush2.msra.mxu0 0.0
    %1535 = vmatprep.subr.mxu0 0.0
    %1536 = vmatpush2.msra.mxu0 0.0
    %1537 = vmatprep.subr.mxu0 0.0
    %1538 = vmatpush2.msra.mxu0 0.0
    %1539 = vmatprep.subr.mxu0 0.0
    %1540 = vmatpush2.msra.mxu0 0.0
    %1541 = vmatprep.subr.mxu0 0.0
    %1542 = vmatpush2.msra.mxu0 0.0
    %1543 = vmatprep.subr.mxu0 0.0
    %1544 = vmatpush2.msra.mxu0 0.0
    %1545 = vmatprep.mubr.f32.mxu0 0.0
    %1546 = vmatmul.mubr.f32.gmra.mxu0 %v1370
    %v1547 = vpop.f32.mrf.mxu0
    %v1548 = vadd.f32 %v1480, %v1547
    %v1549 = vpop.f32.mrf.mxu0
    %1550 = vdwg.mxu0
    %s1551 = scalar_lea.vmem [#allocation2], 1664
    %v1552 = vld [vmem:[%s1551] sm:$0xff]
    %v1553 = vld [vmem:[%s1551 + $0x8] sm:$0xff]
    %v1554 = vld [vmem:[%s1551 + $0x10] sm:$0xff]
    %v1555 = vld [vmem:[%s1551 + $0x18] sm:$0xff]
    %v1556 = vld [vmem:[%s1551 + $0x20] sm:$0xff]
    %v1557 = vld [vmem:[%s1551 + $0x28] sm:$0xff]
    %v1558 = vld [vmem:[%s1551 + $0x30] sm:$0xff]
    %v1559 = vld [vmem:[%s1551 + $0x38] sm:$0xff]
    %v1560 = vld [vmem:[%s1551 + $0x40] sm:$0xff]
    %v1561 = vld [vmem:[%s1551 + $0x48] sm:$0xff]
    %v1562 = vld [vmem:[%s1551 + $0x50] sm:$0xff]
    %v1563 = vld [vmem:[%s1551 + $0x58] sm:$0xff]
    %v1564 = vld [vmem:[%s1551 + $0x60] sm:$0xff]
    %v1565 = vld [vmem:[%s1551 + $0x68] sm:$0xff]
    %v1566 = vld [vmem:[%s1551 + $0x70] sm:$0xff]
    %v1567 = vld [vmem:[%s1551 + $0x78] sm:$0xff]
    %s1568 = scalar_lea.vmem [#allocation5], 128
    %v1569 = vld [vmem:[%s1568] sm:$0xff]
    %1570 = vmatprep.subr.mxu0 0.0
    %1571 = vmatpush1.msra.mxu0 %v1567
    %1572 = vmatprep.subr.mxu0 0.0
    %1573 = vmatpush1.msra.mxu0 %v1566
    %1574 = vmatprep.subr.mxu0 0.0
    %1575 = vmatpush1.msra.mxu0 %v1565
    %1576 = vmatprep.subr.mxu0 0.0
    %1577 = vmatpush1.msra.mxu0 %v1564
    %1578 = vmatprep.subr.mxu0 0.0
    %1579 = vmatpush1.msra.mxu0 %v1563
    %1580 = vmatprep.subr.mxu0 0.0
    %1581 = vmatpush1.msra.mxu0 %v1562
    %1582 = vmatprep.subr.mxu0 0.0
    %1583 = vmatpush1.msra.mxu0 %v1561
    %1584 = vmatprep.subr.mxu0 0.0
    %1585 = vmatpush1.msra.mxu0 %v1560
    %1586 = vmatprep.subr.mxu0 0.0
    %1587 = vmatpush1.msra.mxu0 %v1559
    %1588 = vmatprep.subr.mxu0 0.0
    %1589 = vmatpush1.msra.mxu0 %v1558
    %1590 = vmatprep.subr.mxu0 0.0
    %1591 = vmatpush1.msra.mxu0 %v1557
    %1592 = vmatprep.subr.mxu0 0.0
    %1593 = vmatpush1.msra.mxu0 %v1556
    %1594 = vmatprep.subr.mxu0 0.0
    %1595 = vmatpush1.msra.mxu0 %v1555
    %1596 = vmatprep.subr.mxu0 0.0
    %1597 = vmatpush1.msra.mxu0 %v1554
    %1598 = vmatprep.subr.mxu0 0.0
    %1599 = vmatpush1.msra.mxu0 %v1553
    %1600 = vmatprep.subr.mxu0 0.0
    %1601 = vmatpush1.msra.mxu0 %v1552
    %1602 = vmatprep.subr.mxu0 0.0
    %1603 = vmatpush2.msra.mxu0 0.0
    %1604 = vmatprep.subr.mxu0 0.0
    %1605 = vmatpush2.msra.mxu0 0.0
    %1606 = vmatprep.subr.mxu0 0.0
    %1607 = vmatpush2.msra.mxu0 0.0
    %1608 = vmatprep.subr.mxu0 0.0
    %1609 = vmatpush2.msra.mxu0 0.0
    %1610 = vmatprep.subr.mxu0 0.0
    %1611 = vmatpush2.msra.mxu0 0.0
    %1612 = vmatprep.subr.mxu0 0.0
    %1613 = vmatpush2.msra.mxu0 0.0
    %1614 = vmatprep.subr.mxu0 0.0
    %1615 = vmatpush2.msra.mxu0 0.0
    %1616 = vmatprep.subr.mxu0 0.0
    %1617 = vmatpush2.msra.mxu0 0.0
    %1618 = vmatprep.subr.mxu0 0.0
    %1619 = vmatpush2.msra.mxu0 0.0
    %1620 = vmatprep.subr.mxu0 0.0
    %1621 = vmatpush2.msra.mxu0 0.0
    %1622 = vmatprep.subr.mxu0 0.0
    %1623 = vmatpush2.msra.mxu0 0.0
    %1624 = vmatprep.subr.mxu0 0.0
    %1625 = vmatpush2.msra.mxu0 0.0
    %1626 = vmatprep.subr.mxu0 0.0
    %1627 = vmatpush2.msra.mxu0 0.0
    %1628 = vmatprep.subr.mxu0 0.0
    %1629 = vmatpush2.msra.mxu0 0.0
    %1630 = vmatprep.subr.mxu0 0.0
    %1631 = vmatpush2.msra.mxu0 0.0
    %1632 = vmatprep.subr.mxu0 0.0
    %1633 = vmatpush2.msra.mxu0 0.0
    %1634 = vmatprep.mubr.f32.mxu0 0.0
    %1635 = vmatmul.mubr.f32.gmra.mxu0 %v1370
    %v1636 = vpop.f32.mrf.mxu0
    %v1637 = vadd.f32 %v1569, %v1636
    %v1638 = vpop.f32.mrf.mxu0
    %1639 = vdwg.mxu0
    %1640 = vmatprep.subr.mxu0 0.0
    %1641 = vmatpush1.xpose.msra.mxu0 0.0
    %1642 = vmatprep.subr.mxu0 0.0
    %1643 = vmatpush1.xpose.msra.mxu0 0.0
    %1644 = vmatprep.subr.mxu0 0.0
    %1645 = vmatpush1.xpose.msra.mxu0 0.0
    %1646 = vmatprep.subr.mxu0 0.0
    %1647 = vmatpush1.xpose.msra.mxu0 0.0
    %1648 = vmatprep.subr.mxu0 0.0
    %1649 = vmatpush1.xpose.msra.mxu0 0.0
    %1650 = vmatprep.subr.mxu0 0.0
    %1651 = vmatpush1.xpose.msra.mxu0 0.0
    %1652 = vmatprep.subr.mxu0 0.0
    %1653 = vmatpush1.xpose.msra.mxu0 0.0
    %1654 = vmatprep.subr.mxu0 0.0
    %1655 = vmatpush1.xpose.msra.mxu0 0.0
    %1656 = vmatprep.subr.mxu0 0.0
    %1657 = vmatpush1.xpose.msra.mxu0 0.0
    %1658 = vmatprep.subr.mxu0 0.0
    %1659 = vmatpush1.xpose.msra.mxu0 0.0
    %1660 = vmatprep.subr.mxu0 0.0
    %1661 = vmatpush1.xpose.msra.mxu0 0.0
    %1662 = vmatprep.subr.mxu0 0.0
    %1663 = vmatpush1.xpose.msra.mxu0 0.0
    %1664 = vmatprep.subr.mxu0 0.0
    %1665 = vmatpush1.xpose.msra.mxu0 0.0
    %1666 = vmatprep.subr.mxu0 0.0
    %1667 = vmatpush1.xpose.msra.mxu0 0.0
    %1668 = vmatprep.subr.mxu0 0.0
    %1669 = vmatpush1.xpose.msra.mxu0 0.0
    %1670 = vmatprep.subr.mxu0 0.0
    %1671 = vmatpush1.xpose.msra.mxu0 %v1548
    %1672 = vmatprep.subr.mxu0 0.0
    %1673 = vmatpush2.xpose.msra.mxu0 0.0
    %1674 = vmatprep.subr.mxu0 0.0
    %1675 = vmatpush2.xpose.msra.mxu0 0.0
    %1676 = vmatprep.subr.mxu0 0.0
    %1677 = vmatpush2.xpose.msra.mxu0 0.0
    %1678 = vmatprep.subr.mxu0 0.0
    %1679 = vmatpush2.xpose.msra.mxu0 0.0
    %1680 = vmatprep.subr.mxu0 0.0
    %1681 = vmatpush2.xpose.msra.mxu0 0.0
    %1682 = vmatprep.subr.mxu0 0.0
    %1683 = vmatpush2.xpose.msra.mxu0 0.0
    %1684 = vmatprep.subr.mxu0 0.0
    %1685 = vmatpush2.xpose.msra.mxu0 0.0
    %1686 = vmatprep.subr.mxu0 0.0
    %1687 = vmatpush2.xpose.msra.mxu0 0.0
    %1688 = vmatprep.subr.mxu0 0.0
    %1689 = vmatpush2.xpose.msra.mxu0 0.0
    %1690 = vmatprep.subr.mxu0 0.0
    %1691 = vmatpush2.xpose.msra.mxu0 0.0
    %1692 = vmatprep.subr.mxu0 0.0
    %1693 = vmatpush2.xpose.msra.mxu0 0.0
    %1694 = vmatprep.subr.mxu0 0.0
    %1695 = vmatpush2.xpose.msra.mxu0 0.0
    %1696 = vmatprep.subr.mxu0 0.0
    %1697 = vmatpush2.xpose.msra.mxu0 0.0
    %1698 = vmatprep.subr.mxu0 0.0
    %1699 = vmatpush2.xpose.msra.mxu0 0.0
    %1700 = vmatprep.subr.mxu0 0.0
    %1701 = vmatpush2.xpose.msra.mxu0 0.0
    %1702 = vmatprep.subr.mxu0 0.0
    %1703 = vmatpush2.xpose.msra.mxu0 0.0
    %1704 = vmatprep.mubr.f32.mxu0 0.0
    %1705 = vmatmul.mubr.f32.gmra.mxu0 %v1459
    %v1706 = vpop.f32.mrf.mxu0
    %v1707 = vadd.f32 0.0, %v1706
    %v1708 = vpop.f32.mrf.mxu0
    %1709 = vdwg.mxu0
    %v1710 = vsel %vm470, %v1707, -inf
    %1711 = vmax.xlane.f32.xlu0 %v1710
    %v1712 = vpop.xlane.xlu0 %1711
    %v1713 = vsub.f32 %v1707, %v1712
    %v1714 = vmul.f32 %v1713, 1.442695
    %v1715 = vpow.pop %v1714
    %v1716 = vsel %vm470, %v1715, 0.0
    %1717 = vadd.xlane.f32.xlu0 %v1716
    %v1718 = vpop.xlane.xlu0 %1717
    %v1719 = vrcp.pop %v1718
    %v1720 = vmul.f32 %v1715, %v1719
    %v1722 = vsel %vm470, %v1720, 0
    %1724 = vmatprep.subr.mxu0 0.0
    %1725 = vmatpush1.msra.mxu0 0.0
    %1726 = vmatprep.subr.mxu0 0.0
    %1727 = vmatpush1.msra.mxu0 0.0
    %1728 = vmatprep.subr.mxu0 0.0
    %1729 = vmatpush1.msra.mxu0 0.0
    %1730 = vmatprep.subr.mxu0 0.0
    %1731 = vmatpush1.msra.mxu0 0.0
    %1732 = vmatprep.subr.mxu0 0.0
    %1733 = vmatpush1.msra.mxu0 0.0
    %1734 = vmatprep.subr.mxu0 0.0
    %1735 = vmatpush1.msra.mxu0 0.0
    %1736 = vmatprep.subr.mxu0 0.0
    %1737 = vmatpush1.msra.mxu0 0.0
    %1738 = vmatprep.subr.mxu0 0.0
    %1739 = vmatpush1.msra.mxu0 0.0
    %1740 = vmatprep.subr.mxu0 0.0
    %1741 = vmatpush1.msra.mxu0 0.0
    %1742 = vmatprep.subr.mxu0 0.0
    %1743 = vmatpush1.msra.mxu0 0.0
    %1744 = vmatprep.subr.mxu0 0.0
    %1745 = vmatpush1.msra.mxu0 0.0
    %1746 = vmatprep.subr.mxu0 0.0
    %1747 = vmatpush1.msra.mxu0 0.0
    %1748 = vmatprep.subr.mxu0 0.0
    %1749 = vmatpush1.msra.mxu0 0.0
    %1750 = vmatprep.subr.mxu0 0.0
    %1751 = vmatpush1.msra.mxu0 0.0
    %1752 = vmatprep.subr.mxu0 0.0
    %1753 = vmatpush1.msra.mxu0 0.0
    %1754 = vmatprep.subr.mxu0 0.0
    %1755 = vmatpush1.msra.mxu0 %v1637
    %1756 = vmatprep.subr.mxu0 0.0
    %1757 = vmatpush2.msra.mxu0 0.0
    %1758 = vmatprep.subr.mxu0 0.0
    %1759 = vmatpush2.msra.mxu0 0.0
    %1760 = vmatprep.subr.mxu0 0.0
    %1761 = vmatpush2.msra.mxu0 0.0
    %1762 = vmatprep.subr.mxu0 0.0
    %1763 = vmatpush2.msra.mxu0 0.0
    %1764 = vmatprep.subr.mxu0 0.0
    %1765 = vmatpush2.msra.mxu0 0.0
    %1766 = vmatprep.subr.mxu0 0.0
    %1767 = vmatpush2.msra.mxu0 0.0
    %1768 = vmatprep.subr.mxu0 0.0
    %1769 = vmatpush2.msra.mxu0 0.0
    %1770 = vmatprep.subr.mxu0 0.0
    %1771 = vmatpush2.msra.mxu0 0.0
    %1772 = vmatprep.subr.mxu0 0.0
    %1773 = vmatpush2.msra.mxu0 0.0
    %1774 = vmatprep.subr.mxu0 0.0
    %1775 = vmatpush2.msra.mxu0 0.0
    %1776 = vmatprep.subr.mxu0 0.0
    %1777 = vmatpush2.msra.mxu0 0.0
    %1778 = vmatprep.subr.mxu0 0.0
    %1779 = vmatpush2.msra.mxu0 0.0
    %1780 = vmatprep.subr.mxu0 0.0
    %1781 = vmatpush2.msra.mxu0 0.0
    %1782 = vmatprep.subr.mxu0 0.0
    %1783 = vmatpush2.msra.mxu0 0.0
    %1784 = vmatprep.subr.mxu0 0.0
    %1785 = vmatpush2.msra.mxu0 0.0
    %1786 = vmatprep.subr.mxu0 0.0
    %1787 = vmatpush2.msra.mxu0 0.0
    %1788 = vmatprep.mubr.f32.mxu0 0.0
    %1789 = vmatmul.mubr.f32.gmra.mxu0 %v1722
    %v1790 = vpop.f32.mrf.mxu0
    %v1791 = vadd.f32 0.0, %v1790
    %v1792 = vpop.f32.mrf.mxu0
    %1793 = vdwg.mxu0
    %s1794 = scalar_lea.vmem [#allocation2], 2176
    %v1795 = vld [vmem:[%s1794] sm:$0xff]
    %v1796 = vld [vmem:[%s1794 + $0x8] sm:$0xff]
    %v1797 = vld [vmem:[%s1794 + $0x10] sm:$0xff]
    %v1798 = vld [vmem:[%s1794 + $0x18] sm:$0xff]
    %v1799 = vld [vmem:[%s1794 + $0x20] sm:$0xff]
    %v1800 = vld [vmem:[%s1794 + $0x28] sm:$0xff]
    %v1801 = vld [vmem:[%s1794 + $0x30] sm:$0xff]
    %v1802 = vld [vmem:[%s1794 + $0x38] sm:$0xff]
    %v1803 = vld [vmem:[%s1794 + $0x40] sm:$0xff]
    %v1804 = vld [vmem:[%s1794 + $0x48] sm:$0xff]
    %v1805 = vld [vmem:[%s1794 + $0x50] sm:$0xff]
    %v1806 = vld [vmem:[%s1794 + $0x58] sm:$0xff]
    %v1807 = vld [vmem:[%s1794 + $0x60] sm:$0xff]
    %v1808 = vld [vmem:[%s1794 + $0x68] sm:$0xff]
    %v1809 = vld [vmem:[%s1794 + $0x70] sm:$0xff]
    %v1810 = vld [vmem:[%s1794 + $0x78] sm:$0xff]
    %1811 = vmatprep.subr.mxu0 0.0
    %1812 = vmatpush1.msra.mxu0 %v1810
    %1813 = vmatprep.subr.mxu0 0.0
    %1814 = vmatpush1.msra.mxu0 %v1809
    %1815 = vmatprep.subr.mxu0 0.0
    %1816 = vmatpush1.msra.mxu0 %v1808
    %1817 = vmatprep.subr.mxu0 0.0
    %1818 = vmatpush1.msra.mxu0 %v1807
    %1819 = vmatprep.subr.mxu0 0.0
    %1820 = vmatpush1.msra.mxu0 %v1806
    %1821 = vmatprep.subr.mxu0 0.0
    %1822 = vmatpush1.msra.mxu0 %v1805
    %1823 = vmatprep.subr.mxu0 0.0
    %1824 = vmatpush1.msra.mxu0 %v1804
    %1825 = vmatprep.subr.mxu0 0.0
    %1826 = vmatpush1.msra.mxu0 %v1803
    %1827 = vmatprep.subr.mxu0 0.0
    %1828 = vmatpush1.msra.mxu0 %v1802
    %1829 = vmatprep.subr.mxu0 0.0
    %1830 = vmatpush1.msra.mxu0 %v1801
    %1831 = vmatprep.subr.mxu0 0.0
    %1832 = vmatpush1.msra.mxu0 %v1800
    %1833 = vmatprep.subr.mxu0 0.0
    %1834 = vmatpush1.msra.mxu0 %v1799
    %1835 = vmatprep.subr.mxu0 0.0
    %1836 = vmatpush1.msra.mxu0 %v1798
    %1837 = vmatprep.subr.mxu0 0.0
    %1838 = vmatpush1.msra.mxu0 %v1797
    %1839 = vmatprep.subr.mxu0 0.0
    %1840 = vmatpush1.msra.mxu0 %v1796
    %1841 = vmatprep.subr.mxu0 0.0
    %1842 = vmatpush1.msra.mxu0 %v1795
    %1843 = vmatprep.subr.mxu0 0.0
    %1844 = vmatpush2.msra.mxu0 0.0
    %1845 = vmatprep.subr.mxu0 0.0
    %1846 = vmatpush2.msra.mxu0 0.0
    %1847 = vmatprep.subr.mxu0 0.0
    %1848 = vmatpush2.msra.mxu0 0.0
    %1849 = vmatprep.subr.mxu0 0.0
    %1850 = vmatpush2.msra.mxu0 0.0
    %1851 = vmatprep.subr.mxu0 0.0
    %1852 = vmatpush2.msra.mxu0 0.0
    %1853 = vmatprep.subr.mxu0 0.0
    %1854 = vmatpush2.msra.mxu0 0.0
    %1855 = vmatprep.subr.mxu0 0.0
    %1856 = vmatpush2.msra.mxu0 0.0
    %1857 = vmatprep.subr.mxu0 0.0
    %1858 = vmatpush2.msra.mxu0 0.0
    %1859 = vmatprep.subr.mxu0 0.0
    %1860 = vmatpush2.msra.mxu0 0.0
    %1861 = vmatprep.subr.mxu0 0.0
    %1862 = vmatpush2.msra.mxu0 0.0
    %1863 = vmatprep.subr.mxu0 0.0
    %1864 = vmatpush2.msra.mxu0 0.0
    %1865 = vmatprep.subr.mxu0 0.0
    %1866 = vmatpush2.msra.mxu0 0.0
    %1867 = vmatprep.subr.mxu0 0.0
    %1868 = vmatpush2.msra.mxu0 0.0
    %1869 = vmatprep.subr.mxu0 0.0
    %1870 = vmatpush2.msra.mxu0 0.0
    %1871 = vmatprep.subr.mxu0 0.0
    %1872 = vmatpush2.msra.mxu0 0.0
    %1873 = vmatprep.subr.mxu0 0.0
    %1874 = vmatpush2.msra.mxu0 0.0
    %1875 = vmatprep.mubr.f32.mxu0 0.0
    %1876 = vmatmul.mubr.f32.gmra.mxu0 %v1791
    %v1877 = vpop.f32.mrf.mxu0
    %v1878 = vadd.f32 0.0, %v1877
    %v1879 = vpop.f32.mrf.mxu0
    %1880 = vdwg.mxu0
    %v1881 = vadd.f32 %v1372, %v1878
    %s1882 = scalar_lea.vmem [#allocation2], 1792
    %v1883 = vld [vmem:[%s1882] sm:$0xff]
    %v1884 = vld [vmem:[%s1882 + $0x8] sm:$0xff]
    %v1885 = vld [vmem:[%s1882 + $0x10] sm:$0xff]
    %v1886 = vld [vmem:[%s1882 + $0x18] sm:$0xff]
    %v1887 = vld [vmem:[%s1882 + $0x20] sm:$0xff]
    %v1888 = vld [vmem:[%s1882 + $0x28] sm:$0xff]
    %v1889 = vld [vmem:[%s1882 + $0x30] sm:$0xff]
    %v1890 = vld [vmem:[%s1882 + $0x38] sm:$0xff]
    %v1891 = vld [vmem:[%s1882 + $0x40] sm:$0xff]
    %v1892 = vld [vmem:[%s1882 + $0x48] sm:$0xff]
    %v1893 = vld [vmem:[%s1882 + $0x50] sm:$0xff]
    %v1894 = vld [vmem:[%s1882 + $0x58] sm:$0xff]
    %v1895 = vld [vmem:[%s1882 + $0x60] sm:$0xff]
    %v1896 = vld [vmem:[%s1882 + $0x68] sm:$0xff]
    %v1897 = vld [vmem:[%s1882 + $0x70] sm:$0xff]
    %v1898 = vld [vmem:[%s1882 + $0x78] sm:$0xff]
    %s1899 = scalar_lea.vmem [#allocation5], 136
    %v1900 = vld [vmem:[%s1899] sm:$0xff]
    %1901 = vmatprep.subr.mxu0 0.0
    %1902 = vmatpush1.msra.mxu0 %v1898
    %1903 = vmatprep.subr.mxu0 0.0
    %1904 = vmatpush1.msra.mxu0 %v1897
    %1905 = vmatprep.subr.mxu0 0.0
    %1906 = vmatpush1.msra.mxu0 %v1896
    %1907 = vmatprep.subr.mxu0 0.0
    %1908 = vmatpush1.msra.mxu0 %v1895
    %1909 = vmatprep.subr.mxu0 0.0
    %1910 = vmatpush1.msra.mxu0 %v1894
    %1911 = vmatprep.subr.mxu0 0.0
    %1912 = vmatpush1.msra.mxu0 %v1893
    %1913 = vmatprep.subr.mxu0 0.0
    %1914 = vmatpush1.msra.mxu0 %v1892
    %1915 = vmatprep.subr.mxu0 0.0
    %1916 = vmatpush1.msra.mxu0 %v1891
    %1917 = vmatprep.subr.mxu0 0.0
    %1918 = vmatpush1.msra.mxu0 %v1890
    %1919 = vmatprep.subr.mxu0 0.0
    %1920 = vmatpush1.msra.mxu0 %v1889
    %1921 = vmatprep.subr.mxu0 0.0
    %1922 = vmatpush1.msra.mxu0 %v1888
    %1923 = vmatprep.subr.mxu0 0.0
    %1924 = vmatpush1.msra.mxu0 %v1887
    %1925 = vmatprep.subr.mxu0 0.0
    %1926 = vmatpush1.msra.mxu0 %v1886
    %1927 = vmatprep.subr.mxu0 0.0
    %1928 = vmatpush1.msra.mxu0 %v1885
    %1929 = vmatprep.subr.mxu0 0.0
    %1930 = vmatpush1.msra.mxu0 %v1884
    %1931 = vmatprep.subr.mxu0 0.0
    %1932 = vmatpush1.msra.mxu0 %v1883
    %1933 = vmatprep.subr.mxu0 0.0
    %1934 = vmatpush2.msra.mxu0 0.0
    %1935 = vmatprep.subr.mxu0 0.0
    %1936 = vmatpush2.msra.mxu0 0.0
    %1937 = vmatprep.subr.mxu0 0.0
    %1938 = vmatpush2.msra.mxu0 0.0
    %1939 = vmatprep.subr.mxu0 0.0
    %1940 = vmatpush2.msra.mxu0 0.0
    %1941 = vmatprep.subr.mxu0 0.0
    %1942 = vmatpush2.msra.mxu0 0.0
    %1943 = vmatprep.subr.mxu0 0.0
    %1944 = vmatpush2.msra.mxu0 0.0
    %1945 = vmatprep.subr.mxu0 0.0
    %1946 = vmatpush2.msra.mxu0 0.0
    %1947 = vmatprep.subr.mxu0 0.0
    %1948 = vmatpush2.msra.mxu0 0.0
    %1949 = vmatprep.subr.mxu0 0.0
    %1950 = vmatpush2.msra.mxu0 0.0
    %1951 = vmatprep.subr.mxu0 0.0
    %1952 = vmatpush2.msra.mxu0 0.0
    %1953 = vmatprep.subr.mxu0 0.0
    %1954 = vmatpush2.msra.mxu0 0.0
    %1955 = vmatprep.subr.mxu0 0.0
    %1956 = vmatpush2.msra.mxu0 0.0
    %1957 = vmatprep.subr.mxu0 0.0
    %1958 = vmatpush2.msra.mxu0 0.0
    %1959 = vmatprep.subr.mxu0 0.0
    %1960 = vmatpush2.msra.mxu0 0.0
    %1961 = vmatprep.subr.mxu0 0.0
    %1962 = vmatpush2.msra.mxu0 0.0
    %1963 = vmatprep.subr.mxu0 0.0
    %1964 = vmatpush2.msra.mxu0 0.0
    %1965 = vmatprep.mubr.f32.mxu0 0.0
    %1966 = vmatmul.mubr.f32.gmra.mxu0 %v1370
    %v1967 = vpop.f32.mrf.mxu0
    %v1968 = vadd.f32 %v1900, %v1967
    %v1969 = vpop.f32.mrf.mxu0
    %1970 = vdwg.mxu0
    %s1971 = scalar_lea.vmem [#allocation2], 1920
    %v1972 = vld [vmem:[%s1971] sm:$0xff]
    %v1973 = vld [vmem:[%s1971 + $0x8] sm:$0xff]
    %v1974 = vld [vmem:[%s1971 + $0x10] sm:$0xff]
    %v1975 = vld [vmem:[%s1971 + $0x18] sm:$0xff]
    %v1976 = vld [vmem:[%s1971 + $0x20] sm:$0xff]
    %v1977 = vld [vmem:[%s1971 + $0x28] sm:$0xff]
    %v1978 = vld [vmem:[%s1971 + $0x30] sm:$0xff]
    %v1979 = vld [vmem:[%s1971 + $0x38] sm:$0xff]
    %v1980 = vld [vmem:[%s1971 + $0x40] sm:$0xff]
    %v1981 = vld [vmem:[%s1971 + $0x48] sm:$0xff]
    %v1982 = vld [vmem:[%s1971 + $0x50] sm:$0xff]
    %v1983 = vld [vmem:[%s1971 + $0x58] sm:$0xff]
    %v1984 = vld [vmem:[%s1971 + $0x60] sm:$0xff]
    %v1985 = vld [vmem:[%s1971 + $0x68] sm:$0xff]
    %v1986 = vld [vmem:[%s1971 + $0x70] sm:$0xff]
    %v1987 = vld [vmem:[%s1971 + $0x78] sm:$0xff]
    %s1988 = scalar_lea.vmem [#allocation5], 144
    %v1989 = vld [vmem:[%s1988] sm:$0xff]
    %1990 = vmatprep.subr.mxu0 0.0
    %1991 = vmatpush1.msra.mxu0 %v1987
    %1992 = vmatprep.subr.mxu0 0.0
    %1993 = vmatpush1.msra.mxu0 %v1986
    %1994 = vmatprep.subr.mxu0 0.0
    %1995 = vmatpush1.msra.mxu0 %v1985
    %1996 = vmatprep.subr.mxu0 0.0
    %1997 = vmatpush1.msra.mxu0 %v1984
    %1998 = vmatprep.subr.mxu0 0.0
    %1999 = vmatpush1.msra.mxu0 %v1983
    %2000 = vmatprep.subr.mxu0 0.0
    %2001 = vmatpush1.msra.mxu0 %v1982
    %2002 = vmatprep.subr.mxu0 0.0
    %2003 = vmatpush1.msra.mxu0 %v1981
    %2004 = vmatprep.subr.mxu0 0.0
    %2005 = vmatpush1.msra.mxu0 %v1980
    %2006 = vmatprep.subr.mxu0 0.0
    %2007 = vmatpush1.msra.mxu0 %v1979
    %2008 = vmatprep.subr.mxu0 0.0
    %2009 = vmatpush1.msra.mxu0 %v1978
    %2010 = vmatprep.subr.mxu0 0.0
    %2011 = vmatpush1.msra.mxu0 %v1977
    %2012 = vmatprep.subr.mxu0 0.0
    %2013 = vmatpush1.msra.mxu0 %v1976
    %2014 = vmatprep.subr.mxu0 0.0
    %2015 = vmatpush1.msra.mxu0 %v1975
    %2016 = vmatprep.subr.mxu0 0.0
    %2017 = vmatpush1.msra.mxu0 %v1974
    %2018 = vmatprep.subr.mxu0 0.0
    %2019 = vmatpush1.msra.mxu0 %v1973
    %2020 = vmatprep.subr.mxu0 0.0
    %2021 = vmatpush1.msra.mxu0 %v1972
    %2022 = vmatprep.subr.mxu0 0.0
    %2023 = vmatpush2.msra.mxu0 0.0
    %2024 = vmatprep.subr.mxu0 0.0
    %2025 = vmatpush2.msra.mxu0 0.0
    %2026 = vmatprep.subr.mxu0 0.0
    %2027 = vmatpush2.msra.mxu0 0.0
    %2028 = vmatprep.subr.mxu0 0.0
    %2029 = vmatpush2.msra.mxu0 0.0
    %2030 = vmatprep.subr.mxu0 0.0
    %2031 = vmatpush2.msra.mxu0 0.0
    %2032 = vmatprep.subr.mxu0 0.0
    %2033 = vmatpush2.msra.mxu0 0.0
    %2034 = vmatprep.subr.mxu0 0.0
    %2035 = vmatpush2.msra.mxu0 0.0
    %2036 = vmatprep.subr.mxu0 0.0
    %2037 = vmatpush2.msra.mxu0 0.0
    %2038 = vmatprep.subr.mxu0 0.0
    %2039 = vmatpush2.msra.mxu0 0.0
    %2040 = vmatprep.subr.mxu0 0.0
    %2041 = vmatpush2.msra.mxu0 0.0
    %2042 = vmatprep.subr.mxu0 0.0
    %2043 = vmatpush2.msra.mxu0 0.0
    %2044 = vmatprep.subr.mxu0 0.0
    %2045 = vmatpush2.msra.mxu0 0.0
    %2046 = vmatprep.subr.mxu0 0.0
    %2047 = vmatpush2.msra.mxu0 0.0
    %2048 = vmatprep.subr.mxu0 0.0
    %2049 = vmatpush2.msra.mxu0 0.0
    %2050 = vmatprep.subr.mxu0 0.0
    %2051 = vmatpush2.msra.mxu0 0.0
    %2052 = vmatprep.subr.mxu0 0.0
    %2053 = vmatpush2.msra.mxu0 0.0
    %2054 = vmatprep.mubr.f32.mxu0 0.0
    %2055 = vmatmul.mubr.f32.gmra.mxu0 %v1370
    %v2056 = vpop.f32.mrf.mxu0
    %v2057 = vadd.f32 %v1989, %v2056
    %v2058 = vpop.f32.mrf.mxu0
    %2059 = vdwg.mxu0
    %s2060 = scalar_lea.vmem [#allocation2], 2048
    %v2061 = vld [vmem:[%s2060] sm:$0xff]
    %v2062 = vld [vmem:[%s2060 + $0x8] sm:$0xff]
    %v2063 = vld [vmem:[%s2060 + $0x10] sm:$0xff]
    %v2064 = vld [vmem:[%s2060 + $0x18] sm:$0xff]
    %v2065 = vld [vmem:[%s2060 + $0x20] sm:$0xff]
    %v2066 = vld [vmem:[%s2060 + $0x28] sm:$0xff]
    %v2067 = vld [vmem:[%s2060 + $0x30] sm:$0xff]
    %v2068 = vld [vmem:[%s2060 + $0x38] sm:$0xff]
    %v2069 = vld [vmem:[%s2060 + $0x40] sm:$0xff]
    %v2070 = vld [vmem:[%s2060 + $0x48] sm:$0xff]
    %v2071 = vld [vmem:[%s2060 + $0x50] sm:$0xff]
    %v2072 = vld [vmem:[%s2060 + $0x58] sm:$0xff]
    %v2073 = vld [vmem:[%s2060 + $0x60] sm:$0xff]
    %v2074 = vld [vmem:[%s2060 + $0x68] sm:$0xff]
    %v2075 = vld [vmem:[%s2060 + $0x70] sm:$0xff]
    %v2076 = vld [vmem:[%s2060 + $0x78] sm:$0xff]
    %s2077 = scalar_lea.vmem [#allocation5], 152
    %v2078 = vld [vmem:[%s2077] sm:$0xff]
    %2079 = vmatprep.subr.mxu0 0.0
    %2080 = vmatpush1.msra.mxu0 %v2076
    %2081 = vmatprep.subr.mxu0 0.0
    %2082 = vmatpush1.msra.mxu0 %v2075
    %2083 = vmatprep.subr.mxu0 0.0
    %2084 = vmatpush1.msra.mxu0 %v2074
    %2085 = vmatprep.subr.mxu0 0.0
    %2086 = vmatpush1.msra.mxu0 %v2073
    %2087 = vmatprep.subr.mxu0 0.0
    %2088 = vmatpush1.msra.mxu0 %v2072
    %2089 = vmatprep.subr.mxu0 0.0
    %2090 = vmatpush1.msra.mxu0 %v2071
    %2091 = vmatprep.subr.mxu0 0.0
    %2092 = vmatpush1.msra.mxu0 %v2070
    %2093 = vmatprep.subr.mxu0 0.0
    %2094 = vmatpush1.msra.mxu0 %v2069
    %2095 = vmatprep.subr.mxu0 0.0
    %2096 = vmatpush1.msra.mxu0 %v2068
    %2097 = vmatprep.subr.mxu0 0.0
    %2098 = vmatpush1.msra.mxu0 %v2067
    %2099 = vmatprep.subr.mxu0 0.0
    %2100 = vmatpush1.msra.mxu0 %v2066
    %2101 = vmatprep.subr.mxu0 0.0
    %2102 = vmatpush1.msra.mxu0 %v2065
    %2103 = vmatprep.subr.mxu0 0.0
    %2104 = vmatpush1.msra.mxu0 %v2064
    %2105 = vmatprep.subr.mxu0 0.0
    %2106 = vmatpush1.msra.mxu0 %v2063
    %2107 = vmatprep.subr.mxu0 0.0
    %2108 = vmatpush1.msra.mxu0 %v2062
    %2109 = vmatprep.subr.mxu0 0.0
    %2110 = vmatpush1.msra.mxu0 %v2061
    %2111 = vmatprep.subr.mxu0 0.0
    %2112 = vmatpush2.msra.mxu0 0.0
    %2113 = vmatprep.subr.mxu0 0.0
    %2114 = vmatpush2.msra.mxu0 0.0
    %2115 = vmatprep.subr.mxu0 0.0
    %2116 = vmatpush2.msra.mxu0 0.0
    %2117 = vmatprep.subr.mxu0 0.0
    %2118 = vmatpush2.msra.mxu0 0.0
    %2119 = vmatprep.subr.mxu0 0.0
    %2120 = vmatpush2.msra.mxu0 0.0
    %2121 = vmatprep.subr.mxu0 0.0
    %2122 = vmatpush2.msra.mxu0 0.0
    %2123 = vmatprep.subr.mxu0 0.0
    %2124 = vmatpush2.msra.mxu0 0.0
    %2125 = vmatprep.subr.mxu0 0.0
    %2126 = vmatpush2.msra.mxu0 0.0
    %2127 = vmatprep.subr.mxu0 0.0
    %2128 = vmatpush2.msra.mxu0 0.0
    %2129 = vmatprep.subr.mxu0 0.0
    %2130 = vmatpush2.msra.mxu0 0.0
    %2131 = vmatprep.subr.mxu0 0.0
    %2132 = vmatpush2.msra.mxu0 0.0
    %2133 = vmatprep.subr.mxu0 0.0
    %2134 = vmatpush2.msra.mxu0 0.0
    %2135 = vmatprep.subr.mxu0 0.0
    %2136 = vmatpush2.msra.mxu0 0.0
    %2137 = vmatprep.subr.mxu0 0.0
    %2138 = vmatpush2.msra.mxu0 0.0
    %2139 = vmatprep.subr.mxu0 0.0
    %2140 = vmatpush2.msra.mxu0 0.0
    %2141 = vmatprep.subr.mxu0 0.0
    %2142 = vmatpush2.msra.mxu0 0.0
    %2143 = vmatprep.mubr.f32.mxu0 0.0
    %2144 = vmatmul.mubr.f32.gmra.mxu0 %v1370
    %v2145 = vpop.f32.mrf.mxu0
    %v2146 = vadd.f32 %v2078, %v2145
    %v2147 = vpop.f32.mrf.mxu0
    %2148 = vdwg.mxu0
    %2149 = vmatprep.subr.mxu0 0.0
    %2150 = vmatpush1.xpose.msra.mxu0 0.0
    %2151 = vmatprep.subr.mxu0 0.0
    %2152 = vmatpush1.xpose.msra.mxu0 0.0
    %2153 = vmatprep.subr.mxu0 0.0
    %2154 = vmatpush1.xpose.msra.mxu0 0.0
    %2155 = vmatprep.subr.mxu0 0.0
    %2156 = vmatpush1.xpose.msra.mxu0 0.0
    %2157 = vmatprep.subr.mxu0 0.0
    %2158 = vmatpush1.xpose.msra.mxu0 0.0
    %2159 = vmatprep.subr.mxu0 0.0
    %2160 = vmatpush1.xpose.msra.mxu0 0.0
    %2161 = vmatprep.subr.mxu0 0.0
    %2162 = vmatpush1.xpose.msra.mxu0 0.0
    %2163 = vmatprep.subr.mxu0 0.0
    %2164 = vmatpush1.xpose.msra.mxu0 0.0
    %2165 = vmatprep.subr.mxu0 0.0
    %2166 = vmatpush1.xpose.msra.mxu0 0.0
    %2167 = vmatprep.subr.mxu0 0.0
    %2168 = vmatpush1.xpose.msra.mxu0 0.0
    %2169 = vmatprep.subr.mxu0 0.0
    %2170 = vmatpush1.xpose.msra.mxu0 0.0
    %2171 = vmatprep.subr.mxu0 0.0
    %2172 = vmatpush1.xpose.msra.mxu0 0.0
    %2173 = vmatprep.subr.mxu0 0.0
    %2174 = vmatpush1.xpose.msra.mxu0 0.0
    %2175 = vmatprep.subr.mxu0 0.0
    %2176 = vmatpush1.xpose.msra.mxu0 0.0
    %2177 = vmatprep.subr.mxu0 0.0
    %2178 = vmatpush1.xpose.msra.mxu0 0.0
    %2179 = vmatprep.subr.mxu0 0.0
    %2180 = vmatpush1.xpose.msra.mxu0 %v2057
    %2181 = vmatprep.subr.mxu0 0.0
    %2182 = vmatpush2.xpose.msra.mxu0 0.0
    %2183 = vmatprep.subr.mxu0 0.0
    %2184 = vmatpush2.xpose.msra.mxu0 0.0
    %2185 = vmatprep.subr.mxu0 0.0
    %2186 = vmatpush2.xpose.msra.mxu0 0.0
    %2187 = vmatprep.subr.mxu0 0.0
    %2188 = vmatpush2.xpose.msra.mxu0 0.0
    %2189 = vmatprep.subr.mxu0 0.0
    %2190 = vmatpush2.xpose.msra.mxu0 0.0
    %2191 = vmatprep.subr.mxu0 0.0
    %2192 = vmatpush2.xpose.msra.mxu0 0.0
    %2193 = vmatprep.subr.mxu0 0.0
    %2194 = vmatpush2.xpose.msra.mxu0 0.0
    %2195 = vmatprep.subr.mxu0 0.0
    %2196 = vmatpush2.xpose.msra.mxu0 0.0
    %2197 = vmatprep.subr.mxu0 0.0
    %2198 = vmatpush2.xpose.msra.mxu0 0.0
    %2199 = vmatprep.subr.mxu0 0.0
    %2200 = vmatpush2.xpose.msra.mxu0 0.0
    %2201 = vmatprep.subr.mxu0 0.0
    %2202 = vmatpush2.xpose.msra.mxu0 0.0
    %2203 = vmatprep.subr.mxu0 0.0
    %2204 = vmatpush2.xpose.msra.mxu0 0.0
    %2205 = vmatprep.subr.mxu0 0.0
    %2206 = vmatpush2.xpose.msra.mxu0 0.0
    %2207 = vmatprep.subr.mxu0 0.0
    %2208 = vmatpush2.xpose.msra.mxu0 0.0
    %2209 = vmatprep.subr.mxu0 0.0
    %2210 = vmatpush2.xpose.msra.mxu0 0.0
    %2211 = vmatprep.subr.mxu0 0.0
    %2212 = vmatpush2.xpose.msra.mxu0 0.0
    %2213 = vmatprep.mubr.f32.mxu0 0.0
    %2214 = vmatmul.mubr.f32.gmra.mxu0 %v1968
    %v2215 = vpop.f32.mrf.mxu0
    %v2216 = vadd.f32 0.0, %v2215
    %v2217 = vpop.f32.mrf.mxu0
    %2218 = vdwg.mxu0
    %v2219 = vsel %vm470, %v2216, -inf
    %2220 = vmax.xlane.f32.xlu0 %v2219
    %v2221 = vpop.xlane.xlu0 %2220
    %v2222 = vsub.f32 %v2216, %v2221
    %v2223 = vmul.f32 %v2222, 1.442695
    %v2224 = vpow.pop %v2223
    %v2225 = vsel %vm470, %v2224, 0.0
    %2226 = vadd.xlane.f32.xlu0 %v2225
    %v2227 = vpop.xlane.xlu0 %2226
    %v2228 = vrcp.pop %v2227
    %v2229 = vmul.f32 %v2224, %v2228
    %v2231 = vsel %vm470, %v2229, 0
    %2233 = vmatprep.subr.mxu0 0.0
    %2234 = vmatpush1.msra.mxu0 0.0
    %2235 = vmatprep.subr.mxu0 0.0
    %2236 = vmatpush1.msra.mxu0 0.0
    %2237 = vmatprep.subr.mxu0 0.0
    %2238 = vmatpush1.msra.mxu0 0.0
    %2239 = vmatprep.subr.mxu0 0.0
    %2240 = vmatpush1.msra.mxu0 0.0
    %2241 = vmatprep.subr.mxu0 0.0
    %2242 = vmatpush1.msra.mxu0 0.0
    %2243 = vmatprep.subr.mxu0 0.0
    %2244 = vmatpush1.msra.mxu0 0.0
    %2245 = vmatprep.subr.mxu0 0.0
    %2246 = vmatpush1.msra.mxu0 0.0
    %2247 = vmatprep.subr.mxu0 0.0
    %2248 = vmatpush1.msra.mxu0 0.0
    %2249 = vmatprep.subr.mxu0 0.0
    %2250 = vmatpush1.msra.mxu0 0.0
    %2251 = vmatprep.subr.mxu0 0.0
    %2252 = vmatpush1.msra.mxu0 0.0
    %2253 = vmatprep.subr.mxu0 0.0
    %2254 = vmatpush1.msra.mxu0 0.0
    %2255 = vmatprep.subr.mxu0 0.0
    %2256 = vmatpush1.msra.mxu0 0.0
    %2257 = vmatprep.subr.mxu0 0.0
    %2258 = vmatpush1.msra.mxu0 0.0
    %2259 = vmatprep.subr.mxu0 0.0
    %2260 = vmatpush1.msra.mxu0 0.0
    %2261 = vmatprep.subr.mxu0 0.0
    %2262 = vmatpush1.msra.mxu0 0.0
    %2263 = vmatprep.subr.mxu0 0.0
    %2264 = vmatpush1.msra.mxu0 %v2146
    %2265 = vmatprep.subr.mxu0 0.0
    %2266 = vmatpush2.msra.mxu0 0.0
    %2267 = vmatprep.subr.mxu0 0.0
    %2268 = vmatpush2.msra.mxu0 0.0
    %2269 = vmatprep.subr.mxu0 0.0
    %2270 = vmatpush2.msra.mxu0 0.0
    %2271 = vmatprep.subr.mxu0 0.0
    %2272 = vmatpush2.msra.mxu0 0.0
    %2273 = vmatprep.subr.mxu0 0.0
    %2274 = vmatpush2.msra.mxu0 0.0
    %2275 = vmatprep.subr.mxu0 0.0
    %2276 = vmatpush2.msra.mxu0 0.0
    %2277 = vmatprep.subr.mxu0 0.0
    %2278 = vmatpush2.msra.mxu0 0.0
    %2279 = vmatprep.subr.mxu0 0.0
    %2280 = vmatpush2.msra.mxu0 0.0
    %2281 = vmatprep.subr.mxu0 0.0
    %2282 = vmatpush2.msra.mxu0 0.0
    %2283 = vmatprep.subr.mxu0 0.0
    %2284 = vmatpush2.msra.mxu0 0.0
    %2285 = vmatprep.subr.mxu0 0.0
    %2286 = vmatpush2.msra.mxu0 0.0
    %2287 = vmatprep.subr.mxu0 0.0
    %2288 = vmatpush2.msra.mxu0 0.0
    %2289 = vmatprep.subr.mxu0 0.0
    %2290 = vmatpush2.msra.mxu0 0.0
    %2291 = vmatprep.subr.mxu0 0.0
    %2292 = vmatpush2.msra.mxu0 0.0
    %2293 = vmatprep.subr.mxu0 0.0
    %2294 = vmatpush2.msra.mxu0 0.0
    %2295 = vmatprep.subr.mxu0 0.0
    %2296 = vmatpush2.msra.mxu0 0.0
    %2297 = vmatprep.mubr.f32.mxu0 0.0
    %2298 = vmatmul.mubr.f32.gmra.mxu0 %v2231
    %v2299 = vpop.f32.mrf.mxu0
    %v2300 = vadd.f32 0.0, %v2299
    %v2301 = vpop.f32.mrf.mxu0
    %2302 = vdwg.mxu0
    %s2303 = scalar_lea.vmem [#allocation2], 2304
    %v2304 = vld [vmem:[%s2303] sm:$0xff]
    %v2305 = vld [vmem:[%s2303 + $0x8] sm:$0xff]
    %v2306 = vld [vmem:[%s2303 + $0x10] sm:$0xff]
    %v2307 = vld [vmem:[%s2303 + $0x18] sm:$0xff]
    %v2308 = vld [vmem:[%s2303 + $0x20] sm:$0xff]
    %v2309 = vld [vmem:[%s2303 + $0x28] sm:$0xff]
    %v2310 = vld [vmem:[%s2303 + $0x30] sm:$0xff]
    %v2311 = vld [vmem:[%s2303 + $0x38] sm:$0xff]
    %v2312 = vld [vmem:[%s2303 + $0x40] sm:$0xff]
    %v2313 = vld [vmem:[%s2303 + $0x48] sm:$0xff]
    %v2314 = vld [vmem:[%s2303 + $0x50] sm:$0xff]
    %v2315 = vld [vmem:[%s2303 + $0x58] sm:$0xff]
    %v2316 = vld [vmem:[%s2303 + $0x60] sm:$0xff]
    %v2317 = vld [vmem:[%s2303 + $0x68] sm:$0xff]
    %v2318 = vld [vmem:[%s2303 + $0x70] sm:$0xff]
    %v2319 = vld [vmem:[%s2303 + $0x78] sm:$0xff]
    %2320 = vmatprep.subr.mxu0 0.0
    %2321 = vmatpush1.msra.mxu0 %v2319
    %2322 = vmatprep.subr.mxu0 0.0
    %2323 = vmatpush1.msra.mxu0 %v2318
    %2324 = vmatprep.subr.mxu0 0.0
    %2325 = vmatpush1.msra.mxu0 %v2317
    %2326 = vmatprep.subr.mxu0 0.0
    %2327 = vmatpush1.msra.mxu0 %v2316
    %2328 = vmatprep.subr.mxu0 0.0
    %2329 = vmatpush1.msra.mxu0 %v2315
    %2330 = vmatprep.subr.mxu0 0.0
    %2331 = vmatpush1.msra.mxu0 %v2314
    %2332 = vmatprep.subr.mxu0 0.0
    %2333 = vmatpush1.msra.mxu0 %v2313
    %2334 = vmatprep.subr.mxu0 0.0
    %2335 = vmatpush1.msra.mxu0 %v2312
    %2336 = vmatprep.subr.mxu0 0.0
    %2337 = vmatpush1.msra.mxu0 %v2311
    %2338 = vmatprep.subr.mxu0 0.0
    %2339 = vmatpush1.msra.mxu0 %v2310
    %2340 = vmatprep.subr.mxu0 0.0
    %2341 = vmatpush1.msra.mxu0 %v2309
    %2342 = vmatprep.subr.mxu0 0.0
    %2343 = vmatpush1.msra.mxu0 %v2308
    %2344 = vmatprep.subr.mxu0 0.0
    %2345 = vmatpush1.msra.mxu0 %v2307
    %2346 = vmatprep.subr.mxu0 0.0
    %2347 = vmatpush1.msra.mxu0 %v2306
    %2348 = vmatprep.subr.mxu0 0.0
    %2349 = vmatpush1.msra.mxu0 %v2305
    %2350 = vmatprep.subr.mxu0 0.0
    %2351 = vmatpush1.msra.mxu0 %v2304
    %2352 = vmatprep.subr.mxu0 0.0
    %2353 = vmatpush2.msra.mxu0 0.0
    %2354 = vmatprep.subr.mxu0 0.0
    %2355 = vmatpush2.msra.mxu0 0.0
    %2356 = vmatprep.subr.mxu0 0.0
    %2357 = vmatpush2.msra.mxu0 0.0
    %2358 = vmatprep.subr.mxu0 0.0
    %2359 = vmatpush2.msra.mxu0 0.0
    %2360 = vmatprep.subr.mxu0 0.0
    %2361 = vmatpush2.msra.mxu0 0.0
    %2362 = vmatprep.subr.mxu0 0.0
    %2363 = vmatpush2.msra.mxu0 0.0
    %2364 = vmatprep.subr.mxu0 0.0
    %2365 = vmatpush2.msra.mxu0 0.0
    %2366 = vmatprep.subr.mxu0 0.0
    %2367 = vmatpush2.msra.mxu0 0.0
    %2368 = vmatprep.subr.mxu0 0.0
    %2369 = vmatpush2.msra.mxu0 0.0
    %2370 = vmatprep.subr.mxu0 0.0
    %2371 = vmatpush2.msra.mxu0 0.0
    %2372 = vmatprep.subr.mxu0 0.0
    %2373 = vmatpush2.msra.mxu0 0.0
    %2374 = vmatprep.subr.mxu0 0.0
    %2375 = vmatpush2.msra.mxu0 0.0
    %2376 = vmatprep.subr.mxu0 0.0
    %2377 = vmatpush2.msra.mxu0 0.0
    %2378 = vmatprep.subr.mxu0 0.0
    %2379 = vmatpush2.msra.mxu0 0.0
    %2380 = vmatprep.subr.mxu0 0.0
    %2381 = vmatpush2.msra.mxu0 0.0
    %2382 = vmatprep.subr.mxu0 0.0
    %2383 = vmatpush2.msra.mxu0 0.0
    %2384 = vmatprep.mubr.f32.mxu0 0.0
    %2385 = vmatmul.mubr.f32.gmra.mxu0 %v2300
    %v2386 = vpop.f32.mrf.mxu0
    %v2387 = vadd.f32 0.0, %v2386
    %v2388 = vpop.f32.mrf.mxu0
    %2389 = vdwg.mxu0
    %v2390 = vadd.f32 %v1881, %v2387
    %v2391 = vadd.f32 %v1370, %v2390
    %s2392 = scalar_lea.vmem [#allocation5], 168
    %v2393 = vld [vmem:[%s2392] sm:$0xff]
    %s2394 = scalar_lea.vmem [#allocation5], 176
    %v2395 = vld [vmem:[%s2394] sm:$0xff]
    %2396 = vadd.xlane.f32.xlu0 %v2391
    %v2397 = vpop.xlane.xlu0 %2396
    %v2398 = vmul.f32 %v2397, 0.125
    %v2399 = vmul.f32 %v2391, %v2391
    %2400 = vadd.xlane.f32.xlu0 %v2399
    %v2401 = vpop.xlane.xlu0 %2400
    %v2402 = vmul.f32 %v2401, 0.125
    %v2403 = vmul.f32 %v2398, %v2398
    %v2404 = vsub.f32 %v2402, %v2403
    %v2405 = vsub.f32 %v2391, %v2398
    %v2406 = vadd.f32 %v2404, 1e-05
    %v2407 = vrsqrt.pop %v2406
    %v2408 = vmul.f32 %v2405, %v2407
    %v2409 = vmul.f32 %v2408, %v2393
    %v2410 = vadd.f32 %v2409, %v2395
    %s2411 = scalar_lea.vmem [#allocation2], 2432
    %v2412 = vld [vmem:[%s2411] sm:$0xff]
    %v2413 = vld [vmem:[%s2411 + $0x8] sm:$0xff]
    %v2414 = vld [vmem:[%s2411 + $0x10] sm:$0xff]
    %v2415 = vld [vmem:[%s2411 + $0x18] sm:$0xff]
    %v2416 = vld [vmem:[%s2411 + $0x20] sm:$0xff]
    %v2417 = vld [vmem:[%s2411 + $0x28] sm:$0xff]
    %v2418 = vld [vmem:[%s2411 + $0x30] sm:$0xff]
    %v2419 = vld [vmem:[%s2411 + $0x38] sm:$0xff]
    %v2420 = vld [vmem:[%s2411 + $0x40] sm:$0xff]
    %v2421 = vld [vmem:[%s2411 + $0x48] sm:$0xff]
    %v2422 = vld [vmem:[%s2411 + $0x50] sm:$0xff]
    %v2423 = vld [vmem:[%s2411 + $0x58] sm:$0xff]
    %v2424 = vld [vmem:[%s2411 + $0x60] sm:$0xff]
    %v2425 = vld [vmem:[%s2411 + $0x68] sm:$0xff]
    %v2426 = vld [vmem:[%s2411 + $0x70] sm:$0xff]
    %v2427 = vld [vmem:[%s2411 + $0x78] sm:$0xff]
    %s2428 = scalar_lea.vmem [#allocation5], 200
    %v2429 = vld [vmem:[%s2428] sm:$0xff]
    %2430 = vmatprep.subr.mxu0 0.0
    %2431 = vmatpush1.msra.mxu0 %v2427
    %2432 = vmatprep.subr.mxu0 0.0
    %2433 = vmatpush1.msra.mxu0 %v2426
    %2434 = vmatprep.subr.mxu0 0.0
    %2435 = vmatpush1.msra.mxu0 %v2425
    %2436 = vmatprep.subr.mxu0 0.0
    %2437 = vmatpush1.msra.mxu0 %v2424
    %2438 = vmatprep.subr.mxu0 0.0
    %2439 = vmatpush1.msra.mxu0 %v2423
    %2440 = vmatprep.subr.mxu0 0.0
    %2441 = vmatpush1.msra.mxu0 %v2422
    %2442 = vmatprep.subr.mxu0 0.0
    %2443 = vmatpush1.msra.mxu0 %v2421
    %2444 = vmatprep.subr.mxu0 0.0
    %2445 = vmatpush1.msra.mxu0 %v2420
    %2446 = vmatprep.subr.mxu0 0.0
    %2447 = vmatpush1.msra.mxu0 %v2419
    %2448 = vmatprep.subr.mxu0 0.0
    %2449 = vmatpush1.msra.mxu0 %v2418
    %2450 = vmatprep.subr.mxu0 0.0
    %2451 = vmatpush1.msra.mxu0 %v2417
    %2452 = vmatprep.subr.mxu0 0.0
    %2453 = vmatpush1.msra.mxu0 %v2416
    %2454 = vmatprep.subr.mxu0 0.0
    %2455 = vmatpush1.msra.mxu0 %v2415
    %2456 = vmatprep.subr.mxu0 0.0
    %2457 = vmatpush1.msra.mxu0 %v2414
    %2458 = vmatprep.subr.mxu0 0.0
    %2459 = vmatpush1.msra.mxu0 %v2413
    %2460 = vmatprep.subr.mxu0 0.0
    %2461 = vmatpush1.msra.mxu0 %v2412
    %2462 = vmatprep.subr.mxu0 0.0
    %2463 = vmatpush2.msra.mxu0 0.0
    %2464 = vmatprep.subr.mxu0 0.0
    %2465 = vmatpush2.msra.mxu0 0.0
    %2466 = vmatprep.subr.mxu0 0.0
    %2467 = vmatpush2.msra.mxu0 0.0
    %2468 = vmatprep.subr.mxu0 0.0
    %2469 = vmatpush2.msra.mxu0 0.0
    %2470 = vmatprep.subr.mxu0 0.0
    %2471 = vmatpush2.msra.mxu0 0.0
    %2472 = vmatprep.subr.mxu0 0.0
    %2473 = vmatpush2.msra.mxu0 0.0
    %2474 = vmatprep.subr.mxu0 0.0
    %2475 = vmatpush2.msra.mxu0 0.0
    %2476 = vmatprep.subr.mxu0 0.0
    %2477 = vmatpush2.msra.mxu0 0.0
    %2478 = vmatprep.subr.mxu0 0.0
    %2479 = vmatpush2.msra.mxu0 0.0
    %2480 = vmatprep.subr.mxu0 0.0
    %2481 = vmatpush2.msra.mxu0 0.0
    %2482 = vmatprep.subr.mxu0 0.0
    %2483 = vmatpush2.msra.mxu0 0.0
    %2484 = vmatprep.subr.mxu0 0.0
    %2485 = vmatpush2.msra.mxu0 0.0
    %2486 = vmatprep.subr.mxu0 0.0
    %2487 = vmatpush2.msra.mxu0 0.0
    %2488 = vmatprep.subr.mxu0 0.0
    %2489 = vmatpush2.msra.mxu0 0.0
    %2490 = vmatprep.subr.mxu0 0.0
    %2491 = vmatpush2.msra.mxu0 0.0
    %2492 = vmatprep.subr.mxu0 0.0
    %2493 = vmatpush2.msra.mxu0 0.0
    %2494 = vmatprep.mubr.f32.mxu0 0.0
    %2495 = vmatmul.mubr.f32.gmra.mxu0 %v2410
    %v2496 = vpop.f32.mrf.mxu0
    %v2497 = vadd.f32 %v2429, %v2496
    %v2498 = vpop.f32.mrf.mxu0
    %2499 = vdwg.mxu0
    %v2500 = vmax.f32 %v2497, 0.0
    %s2501 = scalar_lea.vmem [#allocation2], 2560
    %v2502 = vld [vmem:[%s2501] sm:$0xff]
    %v2503 = vld [vmem:[%s2501 + $0x8] sm:$0xff]
    %v2504 = vld [vmem:[%s2501 + $0x10] sm:$0xff]
    %v2505 = vld [vmem:[%s2501 + $0x18] sm:$0xff]
    %v2506 = vld [vmem:[%s2501 + $0x20] sm:$0xff]
    %v2507 = vld [vmem:[%s2501 + $0x28] sm:$0xff]
    %v2508 = vld [vmem:[%s2501 + $0x30] sm:$0xff]
    %v2509 = vld [vmem:[%s2501 + $0x38] sm:$0xff]
    %v2510 = vld [vmem:[%s2501 + $0x40] sm:$0xff]
    %v2511 = vld [vmem:[%s2501 + $0x48] sm:$0xff]
    %v2512 = vld [vmem:[%s2501 + $0x50] sm:$0xff]
    %v2513 = vld [vmem:[%s2501 + $0x58] sm:$0xff]
    %v2514 = vld [vmem:[%s2501 + $0x60] sm:$0xff]
    %v2515 = vld [vmem:[%s2501 + $0x68] sm:$0xff]
    %v2516 = vld [vmem:[%s2501 + $0x70] sm:$0xff]
    %v2517 = vld [vmem:[%s2501 + $0x78] sm:$0xff]
    %s2518 = scalar_lea.vmem [#allocation5], 208
    %v2519 = vld [vmem:[%s2518] sm:$0xff]
    %2520 = vmatprep.subr.mxu0 0.0
    %2521 = vmatpush1.msra.mxu0 %v2517
    %2522 = vmatprep.subr.mxu0 0.0
    %2523 = vmatpush1.msra.mxu0 %v2516
    %2524 = vmatprep.subr.mxu0 0.0
    %2525 = vmatpush1.msra.mxu0 %v2515
    %2526 = vmatprep.subr.mxu0 0.0
    %2527 = vmatpush1.msra.mxu0 %v2514
    %2528 = vmatprep.subr.mxu0 0.0
    %2529 = vmatpush1.msra.mxu0 %v2513
    %2530 = vmatprep.subr.mxu0 0.0
    %2531 = vmatpush1.msra.mxu0 %v2512
    %2532 = vmatprep.subr.mxu0 0.0
    %2533 = vmatpush1.msra.mxu0 %v2511
    %2534 = vmatprep.subr.mxu0 0.0
    %2535 = vmatpush1.msra.mxu0 %v2510
    %2536 = vmatprep.subr.mxu0 0.0
    %2537 = vmatpush1.msra.mxu0 %v2509
    %2538 = vmatprep.subr.mxu0 0.0
    %2539 = vmatpush1.msra.mxu0 %v2508
    %2540 = vmatprep.subr.mxu0 0.0
    %2541 = vmatpush1.msra.mxu0 %v2507
    %2542 = vmatprep.subr.mxu0 0.0
    %2543 = vmatpush1.msra.mxu0 %v2506
    %2544 = vmatprep.subr.mxu0 0.0
    %2545 = vmatpush1.msra.mxu0 %v2505
    %2546 = vmatprep.subr.mxu0 0.0
    %2547 = vmatpush1.msra.mxu0 %v2504
    %2548 = vmatprep.subr.mxu0 0.0
    %2549 = vmatpush1.msra.mxu0 %v2503
    %2550 = vmatprep.subr.mxu0 0.0
    %2551 = vmatpush1.msra.mxu0 %v2502
    %2552 = vmatprep.subr.mxu0 0.0
    %2553 = vmatpush2.msra.mxu0 0.0
    %2554 = vmatprep.subr.mxu0 0.0
    %2555 = vmatpush2.msra.mxu0 0.0
    %2556 = vmatprep.subr.mxu0 0.0
    %2557 = vmatpush2.msra.mxu0 0.0
    %2558 = vmatprep.subr.mxu0 0.0
    %2559 = vmatpush2.msra.mxu0 0.0
    %2560 = vmatprep.subr.mxu0 0.0
    %2561 = vmatpush2.msra.mxu0 0.0
    %2562 = vmatprep.subr.mxu0 0.0
    %2563 = vmatpush2.msra.mxu0 0.0
    %2564 = vmatprep.subr.mxu0 0.0
    %2565 = vmatpush2.msra.mxu0 0.0
    %2566 = vmatprep.subr.mxu0 0.0
    %2567 = vmatpush2.msra.mxu0 0.0
    %2568 = vmatprep.subr.mxu0 0.0
    %2569 = vmatpush2.msra.mxu0 0.0
    %2570 = vmatprep.subr.mxu0 0.0
    %2571 = vmatpush2.msra.mxu0 0.0
    %2572 = vmatprep.subr.mxu0 0.0
    %2573 = vmatpush2.msra.mxu0 0.0
    %2574 = vmatprep.subr.mxu0 0.0
    %2575 = vmatpush2.msra.mxu0 0.0
    %2576 = vmatprep.subr.mxu0 0.0
    %2577 = vmatpush2.msra.mxu0 0.0
    %2578 = vmatprep.subr.mxu0 0.0
    %2579 = vmatpush2.msra.mxu0 0.0
    %2580 = vmatprep.subr.mxu0 0.0
    %2581 = vmatpush2.msra.mxu0 0.0
    %2582 = vmatprep.subr.mxu0 0.0
    %2583 = vmatpush2.msra.mxu0 0.0
    %2584 = vmatprep.mubr.f32.mxu0 0.0
    %2585 = vmatmul.mubr.f32.gmra.mxu0 %v2500
    %v2586 = vpop.f32.mrf.mxu0
    %v2587 = vadd.f32 %v2519, %v2586
    %v2588 = vpop.f32.mrf.mxu0
    %2589 = vdwg.mxu0
    %v2590 = vadd.f32 %v2410, %v2587
    %s2591 = scalar_lea.vmem [#allocation5], 184
    %v2592 = vld [vmem:[%s2591] sm:$0xff]
    %s2593 = scalar_lea.vmem [#allocation5], 192
    %v2594 = vld [vmem:[%s2593] sm:$0xff]
    %2595 = vadd.xlane.f32.xlu0 %v2590
    %v2596 = vpop.xlane.xlu0 %2595
    %v2597 = vmul.f32 %v2596, 0.125
    %v2598 = vmul.f32 %v2590, %v2590
    %2599 = vadd.xlane.f32.xlu0 %v2598
    %v2600 = vpop.xlane.xlu0 %2599
    %v2601 = vmul.f32 %v2600, 0.125
    %v2602 = vmul.f32 %v2597, %v2597
    %v2603 = vsub.f32 %v2601, %v2602
    %v2604 = vsub.f32 %v2590, %v2597
    %v2605 = vadd.f32 %v2603, 1e-05
    %v2606 = vrsqrt.pop %v2605
    %v2607 = vmul.f32 %v2604, %v2606
    %v2608 = vmul.f32 %v2607, %v2592
    %v2609 = vadd.f32 %v2608, %v2594
    %s2610 = scalar_lea.vmem [#allocation2], 2688
    %v2611 = vld [vmem:[%s2610] sm:$0xff]
    %v2612 = vld [vmem:[%s2610 + $0x8] sm:$0xff]
    %v2613 = vld [vmem:[%s2610 + $0x10] sm:$0xff]
    %v2614 = vld [vmem:[%s2610 + $0x18] sm:$0xff]
    %v2615 = vld [vmem:[%s2610 + $0x20] sm:$0xff]
    %v2616 = vld [vmem:[%s2610 + $0x28] sm:$0xff]
    %v2617 = vld [vmem:[%s2610 + $0x30] sm:$0xff]
    %v2618 = vld [vmem:[%s2610 + $0x38] sm:$0xff]
    %v2619 = vld [vmem:[%s2610 + $0x40] sm:$0xff]
    %v2620 = vld [vmem:[%s2610 + $0x48] sm:$0xff]
    %v2621 = vld [vmem:[%s2610 + $0x50] sm:$0xff]
    %v2622 = vld [vmem:[%s2610 + $0x58] sm:$0xff]
    %v2623 = vld [vmem:[%s2610 + $0x60] sm:$0xff]
    %v2624 = vld [vmem:[%s2610 + $0x68] sm:$0xff]
    %v2625 = vld [vmem:[%s2610 + $0x70] sm:$0xff]
    %v2626 = vld [vmem:[%s2610 + $0x78] sm:$0xff]
    %s2627 = scalar_lea.vmem [#allocation5], 216
    %v2628 = vld [vmem:[%s2627] sm:$0xff]
    %2629 = vmatprep.subr.mxu0 0.0
    %2630 = vmatpush1.msra.mxu0 %v2626
    %2631 = vmatprep.subr.mxu0 0.0
    %2632 = vmatpush1.msra.mxu0 %v2625
    %2633 = vmatprep.subr.mxu0 0.0
    %2634 = vmatpush1.msra.mxu0 %v2624
    %2635 = vmatprep.subr.mxu0 0.0
    %2636 = vmatpush1.msra.mxu0 %v2623
    %2637 = vmatprep.subr.mxu0 0.0
    %2638 = vmatpush1.msra.mxu0 %v2622
    %2639 = vmatprep.subr.mxu0 0.0
    %2640 = vmatpush1.msra.mxu0 %v2621
    %2641 = vmatprep.subr.mxu0 0.0
    %2642 = vmatpush1.msra.mxu0 %v2620
    %2643 = vmatprep.subr.mxu0 0.0
    %2644 = vmatpush1.msra.mxu0 %v2619
    %2645 = vmatprep.subr.mxu0 0.0
    %2646 = vmatpush1.msra.mxu0 %v2618
    %2647 = vmatprep.subr.mxu0 0.0
    %2648 = vmatpush1.msra.mxu0 %v2617
    %2649 = vmatprep.subr.mxu0 0.0
    %2650 = vmatpush1.msra.mxu0 %v2616
    %2651 = vmatprep.subr.mxu0 0.0
    %2652 = vmatpush1.msra.mxu0 %v2615
    %2653 = vmatprep.subr.mxu0 0.0
    %2654 = vmatpush1.msra.mxu0 %v2614
    %2655 = vmatprep.subr.mxu0 0.0
    %2656 = vmatpush1.msra.mxu0 %v2613
    %2657 = vmatprep.subr.mxu0 0.0
    %2658 = vmatpush1.msra.mxu0 %v2612
    %2659 = vmatprep.subr.mxu0 0.0
    %2660 = vmatpush1.msra.mxu0 %v2611
    %2661 = vmatprep.subr.mxu0 0.0
    %2662 = vmatpush2.msra.mxu0 0.0
    %2663 = vmatprep.subr.mxu0 0.0
    %2664 = vmatpush2.msra.mxu0 0.0
    %2665 = vmatprep.subr.mxu0 0.0
    %2666 = vmatpush2.msra.mxu0 0.0
    %2667 = vmatprep.subr.mxu0 0.0
    %2668 = vmatpush2.msra.mxu0 0.0
    %2669 = vmatprep.subr.mxu0 0.0
    %2670 = vmatpush2.msra.mxu0 0.0
    %2671 = vmatprep.subr.mxu0 0.0
    %2672 = vmatpush2.msra.mxu0 0.0
    %2673 = vmatprep.subr.mxu0 0.0
    %2674 = vmatpush2.msra.mxu0 0.0
    %2675 = vmatprep.subr.mxu0 0.0
    %2676 = vmatpush2.msra.mxu0 0.0
    %2677 = vmatprep.subr.mxu0 0.0
    %2678 = vmatpush2.msra.mxu0 0.0
    %2679 = vmatprep.subr.mxu0 0.0
    %2680 = vmatpush2.msra.mxu0 0.0
    %2681 = vmatprep.subr.mxu0 0.0
    %2682 = vmatpush2.msra.mxu0 0.0
    %2683 = vmatprep.subr.mxu0 0.0
    %2684 = vmatpush2.msra.mxu0 0.0
    %2685 = vmatprep.subr.mxu0 0.0
    %2686 = vmatpush2.msra.mxu0 0.0
    %2687 = vmatprep.subr.mxu0 0.0
    %2688 = vmatpush2.msra.mxu0 0.0
    %2689 = vmatprep.subr.mxu0 0.0
    %2690 = vmatpush2.msra.mxu0 0.0
    %2691 = vmatprep.subr.mxu0 0.0
    %2692 = vmatpush2.msra.mxu0 0.0
    %2693 = vmatprep.mubr.f32.mxu0 0.0
    %2694 = vmatmul.mubr.f32.gmra.mxu0 %v2609
    %v2695 = vpop.f32.mrf.mxu0
    %v2696 = vadd.f32 %v2628, %v2695
    %v2697 = vpop.f32.mrf.mxu0
    %2698 = vdwg.mxu0
    %2699 = vst [vmem:[#allocation7] sm:$0xff] %v2696
    // Predicated region
    $region22: #{classic_transformer_forward.1} parent=1 // pred_check
      _
    $region23: #{classic_transformer_forward.1} parent=1 // pred_check_branch
      %2701 = sbr.rel (0) target = $region25
    $region24: #{classic_transformer_forward.1} parent=1 // pred_region
      %s2703 = ssub.s32 128, 128
      %2704 = vsyncadd [#allocation4], %s2703
      %s2706 = sshll.u32 [#allocation7], 4
      %s2707 = int_to_ptr.vmem [resolvable:$true] %s2706
      %2709 = dma.vmem_to_hbm [thread:$0]  %s2707, 128, %s3, [#allocation4]
    $region25: #{classic_transformer_forward.1} parent=1 // pred_fallthru
      _
    // Predicated region
    $region26: #{classic_transformer_forward.1} parent=1 // pred_check
      _
    $region27: #{classic_transformer_forward.1} parent=1 // pred_check_branch
      %2711 = sbr.rel (0) target = $region29
    $region28: #{classic_transformer_forward.1} parent=1 // pred_region
      %2712 = dma.done [#allocation4], 128
    $region29: #{classic_transformer_forward.1} parent=1 // pred_fallthru
      _
    %2713 = vsyncpa [#allocation3], 1
    %2714 = vsyncpa [#allocation6], 1
    %2715 = vsyncpa [#allocation4], 1

</llo_original>
